<compile_context>
chip_gen: v5e
topology: v5e:2x2
jax: 0.10.0
libtpu: 0.0.40
codegen_flags: <defaults>
</compile_context>

<pallas_src>
import jax
import jax.numpy as jnp
from jax.experimental import pallas as pl
from jax.experimental.pallas import tpu as pltpu

LAYER_DIMS = [784, 512, 256, 128, 64, 10]
OUT_PAD = 128  # lane-dense logits block; real logits live in columns [:10]


def mlp_kernel(x_ref,
               w1_ref, b1_ref,
               w2_ref, b2_ref,
               w3_ref, b3_ref,
               w4_ref, b4_ref,
               w5_ref, b5_ref,
               o_ref):
    def dense_relu(h_bf16, w_ref, b_ref):
        # bf16 x bf16 -> f32 accumulate on the MXU; bias + ReLU in f32 on the
        # VPU (v5e VPU has no bf16), then narrow back to bf16 for the next dot.
        acc = jnp.dot(h_bf16, w_ref[...], preferred_element_type=jnp.float32)
        return jnp.maximum(acc + b_ref[...], 0.0).astype(jnp.bfloat16)

    # f32 HBM tile -> bf16 MXU operand, cast in-kernel (no wrapper pre-pass).
    h = x_ref[...].astype(jnp.bfloat16)     # (TM, 784)
    h = dense_relu(h, w1_ref, b1_ref)       # 784 -> 512
    h = dense_relu(h, w2_ref, b2_ref)       # 512 -> 256
    h = dense_relu(h, w3_ref, b3_ref)       # 256 -> 128
    h = dense_relu(h, w4_ref, b4_ref)       # 128 ->  64

    # Final Linear (no activation).  W5/b5 are zero-padded 10 -> 128 lanes so
    # this is a full-lane matmul and the store is unmasked; written as bf16.
    o_ref[...] = (jnp.dot(h, w5_ref[...], preferred_element_type=jnp.float32)
                  + b5_ref[...]).astype(o_ref.dtype)


def _round_up(v, m):
    return ((v + m - 1) // m) * m


def _choose_tm(n, tm):
    # Clamp to the batch, rounded to a bf16-sublane-friendly multiple of 16.
    tm = max(16, min(tm, _round_up(n, 16)))
    # v7x megacore: for a big batch guarantee >= 2 grid steps so both
    # TensorCores get work; harmless on single-TC v5e / v6e.
    if n >= 512 and pl.cdiv(n, tm) < 2:
        tm = max(256, _round_up(pl.cdiv(n, 2), 16))
    return tm


def net_forward(x_nchw, params, *, tm=1024):
    """Forward pass matching the PyTorch Net.

    x_nchw: (N, 1, 28, 28) float32.
    params: list of (W_t (in, out) f32, b (1, out) f32), pre-transposed.
    Returns (N, 10) float32 logits.
    """
    n = x_nchw.shape[0]
    x = x_nchw.reshape(n, LAYER_DIMS[0])          # stays f32; no cast pre-pass

    tm = _choose_tm(n, tm)

    # Small-batch fast path: a single tiny tile is dominated by fixed
    # pallas_call overhead -> let XLA's fused dot chain handle it.
    if pl.cdiv(n, tm) == 1 and tm <= 128:
        return reference_forward(x_nchw, params)

    n_pad = tm * pl.cdiv(n, tm)
    if n_pad != n:
        x = jnp.pad(x, ((0, n_pad - n), (0, 0)))

    flat = [x]
    in_specs = [pl.BlockSpec((tm, LAYER_DIMS[0]), lambda i: (i, 0))]
    n_layers = len(params)
    for li, (w, b) in enumerate(params):
        w = w.astype(jnp.bfloat16)          # bf16 MXU operands
        b = b.astype(jnp.float32)           # f32 bias add
        if li == n_layers - 1:
            w = jnp.pad(w, ((0, 0), (0, OUT_PAD - w.shape[1])))
            b = jnp.pad(b, ((0, 0), (0, OUT_PAD - b.shape[1])))
        flat.extend([w, b])
        # Constant block index -> parameters stay VMEM-resident and are not
        # re-fetched after grid step 0.
        in_specs.append(pl.BlockSpec(w.shape, lambda i: (0, 0)))
        in_specs.append(pl.BlockSpec(b.shape, lambda i: (0, 0)))

    out = pl.pallas_call(
        mlp_kernel,
        out_shape=jax.ShapeDtypeStruct((n_pad, OUT_PAD), jnp.bfloat16),
        grid_spec=pl.GridSpec(
            grid=(n_pad // tm,),
            in_specs=in_specs,
            out_specs=pl.BlockSpec((tm, OUT_PAD), lambda i: (i, 0)),
        ),
        compiler_params=pltpu.CompilerParams(
            dimension_semantics=("parallel",),   # megacore split on v7x
            vmem_limit_bytes=32 << 20,           # ~15 MiB footprint at TM=1024
        ),
    )(*flat)

    # Slice off batch padding and the 118 zero lanes; restore f32 logits.
    return out[:n, :LAYER_DIMS[-1]].astype(jnp.float32)


def init_params(key):
    """Deterministic init mirroring nn.Linear shapes (W: (out,in), b: (out,)),
    stored pre-transposed as (in, out) / (1, out) in f32."""
    params = []
    for i in range(len(LAYER_DIMS) - 1):
        fan_in, fan_out = LAYER_DIMS[i], LAYER_DIMS[i + 1]
        key, kw, kb = jax.random.split(key, 3)
        bound = 1.0 / jnp.sqrt(fan_in)
        w_t = jax.random.uniform(kw, (fan_in, fan_out), jnp.float32, -bound, bound)
        b = jax.random.uniform(kb, (1, fan_out), jnp.float32, -bound, bound)
        params.append((w_t, b))
    return params


def reference_forward(x_nchw, params):
    """Pure-JAX f32 reference matching the PyTorch forward."""
    h = x_nchw.reshape(x_nchw.shape[0], LAYER_DIMS[0])
    for i, (w, b) in enumerate(params):
        h = h @ w + b
        if i < len(params) - 1:
            h = jnp.maximum(h, 0.0)
    return h


if __name__ == "__main__":
    key = jax.random.PRNGKey(0)
    key, kx1, kx2, kx3 = jax.random.split(key, 4)
    params = init_params(key)

    # 1) Tiny batch: exercises the small-batch fast path (pure JAX, exact).
    x_small = jax.random.normal(kx1, (8, 1, 28, 28), jnp.float32)
    out_small = jax.block_until_ready(net_forward(x_small, params))
    ref_small = reference_forward(x_small, params)
    assert out_small.shape == (8, 10), out_small.shape
    assert jnp.allclose(out_small, ref_small, atol=1e-5, rtol=1e-5), \
        "mismatch vs JAX reference (batch=8, fast path)"

    # 2) Multi-tile kernel path with batch padding (grid=3 at tm=128).
    x_mid = jax.random.normal(kx2, (300, 1, 28, 28), jnp.float32)
    out_mid = jax.block_until_ready(net_forward(x_mid, params, tm=128))
    ref_mid = reference_forward(x_mid, params)
    assert out_mid.shape == (300, 10), out_mid.shape
    # bf16 MXU operands + bf16 logits writeback -> relaxed tolerance.
    assert jnp.allclose(out_mid, ref_mid, atol=3e-2, rtol=3e-2), \
        "mismatch vs JAX reference (batch=300)"

    # 3) Default tile: megacore clamp kicks in (n=600 -> tm=304, grid=2).
    x_big = jax.random.normal(kx3, (600, 1, 28, 28), jnp.float32)
    out_big = jax.block_until_ready(net_forward(x_big, params))
    ref_big = reference_forward(x_big, params)
    assert out_big.shape == (600, 10), out_big.shape
    assert jnp.allclose(out_big, ref_big, atol=3e-2, rtol=3e-2), \
        "mismatch vs JAX reference (batch=600)"

    print("KERNEL_OK")
</pallas_src>

<mosaic_0001>
module attributes {stable_mosaic.version = 11 : i64} {
  func.func @mlp_kernel(%arg0: i32, %arg1: memref<128x784xf32, #tpu.memory_space<vmem>>, %arg2: memref<784x512xbf16, #tpu.memory_space<vmem>>, %arg3: memref<1x512xf32, #tpu.memory_space<vmem>>, %arg4: memref<512x256xbf16, #tpu.memory_space<vmem>>, %arg5: memref<1x256xf32, #tpu.memory_space<vmem>>, %arg6: memref<256x128xbf16, #tpu.memory_space<vmem>>, %arg7: memref<1x128xf32, #tpu.memory_space<vmem>>, %arg8: memref<128x64xbf16, #tpu.memory_space<vmem>>, %arg9: memref<1x64xf32, #tpu.memory_space<vmem>>, %arg10: memref<64x128xbf16, #tpu.memory_space<vmem>>, %arg11: memref<1x128xf32, #tpu.memory_space<vmem>>, %arg12: memref<128x128xbf16, #tpu.memory_space<vmem>>) attributes {dimension_semantics = [#tpu.dimension_semantics<parallel>], iteration_bounds = array<i64: 3>, scalar_prefetch = 0 : i64, scratch_operands = 0 : i64, tpu.core_type = #tpu.core_type<tc>, window_params = [{transform_indices = @transform_0, window_bounds = array<i64: 128, 784>}, {pipeline_mode = #tpu.pipeline_mode<synchronous>, transform_indices = @transform_1, window_bounds = array<i64: 784, 512>}, {pipeline_mode = #tpu.pipeline_mode<synchronous>, transform_indices = @transform_2, window_bounds = array<i64: 1, 512>}, {pipeline_mode = #tpu.pipeline_mode<synchronous>, transform_indices = @transform_3, window_bounds = array<i64: 512, 256>}, {pipeline_mode = #tpu.pipeline_mode<synchronous>, transform_indices = @transform_4, window_bounds = array<i64: 1, 256>}, {pipeline_mode = #tpu.pipeline_mode<synchronous>, transform_indices = @transform_5, window_bounds = array<i64: 256, 128>}, {pipeline_mode = #tpu.pipeline_mode<synchronous>, transform_indices = @transform_6, window_bounds = array<i64: 1, 128>}, {pipeline_mode = #tpu.pipeline_mode<synchronous>, transform_indices = @transform_7, window_bounds = array<i64: 128, 64>}, {pipeline_mode = #tpu.pipeline_mode<synchronous>, transform_indices = @transform_8, window_bounds = array<i64: 1, 64>}, {pipeline_mode = #tpu.pipeline_mode<synchronous>, transform_indices = @transform_9, window_bounds = array<i64: 64, 128>}, {pipeline_mode = #tpu.pipeline_mode<synchronous>, transform_indices = @transform_10, window_bounds = array<i64: 1, 128>}, {transform_indices = @transform_11, window_bounds = array<i64: 128, 128>}]} {
    %c0 = arith.constant 0 : index
    %c0_0 = arith.constant 0 : index
    %0 = vector.load %arg1[%c0, %c0_0] : memref<128x784xf32, #tpu.memory_space<vmem>>, vector<128x784xf32>
    %1 = arith.truncf %0 : vector<128x784xf32> to vector<128x784xbf16>
    %c0_1 = arith.constant 0 : index
    %c0_2 = arith.constant 0 : index
    %2 = vector.load %arg2[%c0_1, %c0_2] : memref<784x512xbf16, #tpu.memory_space<vmem>>, vector<784x512xbf16>
    %cst = arith.constant dense<0.000000e+00> : vector<128x512xf32>
    %3 = tpu.matmul %1, %2, %cst {dimension_numbers = #tpu.dot_dimension_numbers<[1], [0], [0], [1], [0, 0, 1, 1], [], []>} : vector<128x784xbf16>, vector<784x512xbf16>, vector<128x512xf32> -> vector<128x512xf32>
    %c0_3 = arith.constant 0 : index
    %c0_4 = arith.constant 0 : index
    %4 = vector.load %arg3[%c0_3, %c0_4] : memref<1x512xf32, #tpu.memory_space<vmem>>, vector<1x512xf32>
    %5 = vector.broadcast %4 : vector<1x512xf32> to vector<128x512xf32>
    %6 = arith.addf %3, %5 : vector<128x512xf32>
    %cst_5 = arith.constant 0.000000e+00 : f32
    %7 = vector.broadcast %cst_5 : f32 to vector<128x512xf32>
    %8 = arith.maximumf %6, %7 : vector<128x512xf32>
    %9 = arith.truncf %8 : vector<128x512xf32> to vector<128x512xbf16>
    %c0_6 = arith.constant 0 : index
    %c0_7 = arith.constant 0 : index
    %10 = vector.load %arg4[%c0_6, %c0_7] : memref<512x256xbf16, #tpu.memory_space<vmem>>, vector<512x256xbf16>
    %cst_8 = arith.constant dense<0.000000e+00> : vector<128x256xf32>
    %11 = tpu.matmul %9, %10, %cst_8 {dimension_numbers = #tpu.dot_dimension_numbers<[1], [0], [0], [1], [0, 0, 1, 1], [], []>} : vector<128x512xbf16>, vector<512x256xbf16>, vector<128x256xf32> -> vector<128x256xf32>
    %c0_9 = arith.constant 0 : index
    %c0_10 = arith.constant 0 : index
    %12 = vector.load %arg5[%c0_9, %c0_10] : memref<1x256xf32, #tpu.memory_space<vmem>>, vector<1x256xf32>
    %13 = vector.broadcast %12 : vector<1x256xf32> to vector<128x256xf32>
    %14 = arith.addf %11, %13 : vector<128x256xf32>
    %cst_11 = arith.constant 0.000000e+00 : f32
    %15 = vector.broadcast %cst_11 : f32 to vector<128x256xf32>
    %16 = arith.maximumf %14, %15 : vector<128x256xf32>
    %17 = arith.truncf %16 : vector<128x256xf32> to vector<128x256xbf16>
    %c0_12 = arith.constant 0 : index
    %c0_13 = arith.constant 0 : index
    %18 = vector.load %arg6[%c0_12, %c0_13] : memref<256x128xbf16, #tpu.memory_space<vmem>>, vector<256x128xbf16>
    %cst_14 = arith.constant dense<0.000000e+00> : vector<128x128xf32>
    %19 = tpu.matmul %17, %18, %cst_14 {dimension_numbers = #tpu.dot_dimension_numbers<[1], [0], [0], [1], [0, 0, 1, 1], [], []>} : vector<128x256xbf16>, vector<256x128xbf16>, vector<128x128xf32> -> vector<128x128xf32>
    %c0_15 = arith.constant 0 : index
    %c0_16 = arith.constant 0 : index
    %20 = vector.load %arg7[%c0_15, %c0_16] : memref<1x128xf32, #tpu.memory_space<vmem>>, vector<1x128xf32>
    %21 = vector.broadcast %20 : vector<1x128xf32> to vector<128x128xf32>
    %22 = arith.addf %19, %21 : vector<128x128xf32>
    %cst_17 = arith.constant 0.000000e+00 : f32
    %23 = vector.broadcast %cst_17 : f32 to vector<128x128xf32>
    %24 = arith.maximumf %22, %23 : vector<128x128xf32>
    %25 = arith.truncf %24 : vector<128x128xf32> to vector<128x128xbf16>
    %c0_18 = arith.constant 0 : index
    %c0_19 = arith.constant 0 : index
    %26 = vector.load %arg8[%c0_18, %c0_19] : memref<128x64xbf16, #tpu.memory_space<vmem>>, vector<128x64xbf16>
    %cst_20 = arith.constant dense<0.000000e+00> : vector<128x64xf32>
    %27 = tpu.matmul %25, %26, %cst_20 {dimension_numbers = #tpu.dot_dimension_numbers<[1], [0], [0], [1], [0, 0, 1, 1], [], []>} : vector<128x128xbf16>, vector<128x64xbf16>, vector<128x64xf32> -> vector<128x64xf32>
    %c0_21 = arith.constant 0 : index
    %c0_22 = arith.constant 0 : index
    %28 = vector.load %arg9[%c0_21, %c0_22] : memref<1x64xf32, #tpu.memory_space<vmem>>, vector<1x64xf32>
    %29 = vector.broadcast %28 : vector<1x64xf32> to vector<128x64xf32>
    %30 = arith.addf %27, %29 : vector<128x64xf32>
    %cst_23 = arith.constant 0.000000e+00 : f32
    %31 = vector.broadcast %cst_23 : f32 to vector<128x64xf32>
    %32 = arith.maximumf %30, %31 : vector<128x64xf32>
    %33 = arith.truncf %32 : vector<128x64xf32> to vector<128x64xbf16>
    %c0_24 = arith.constant 0 : index
    %c0_25 = arith.constant 0 : index
    %34 = vector.load %arg10[%c0_24, %c0_25] : memref<64x128xbf16, #tpu.memory_space<vmem>>, vector<64x128xbf16>
    %cst_26 = arith.constant dense<0.000000e+00> : vector<128x128xf32>
    %35 = tpu.matmul %33, %34, %cst_26 {dimension_numbers = #tpu.dot_dimension_numbers<[1], [0], [0], [1], [0, 0, 1, 1], [], []>} : vector<128x64xbf16>, vector<64x128xbf16>, vector<128x128xf32> -> vector<128x128xf32>
    %c0_27 = arith.constant 0 : index
    %c0_28 = arith.constant 0 : index
    %36 = vector.load %arg11[%c0_27, %c0_28] : memref<1x128xf32, #tpu.memory_space<vmem>>, vector<1x128xf32>
    %37 = vector.broadcast %36 : vector<1x128xf32> to vector<128x128xf32>
    %38 = arith.addf %35, %37 : vector<128x128xf32>
    %39 = arith.truncf %38 : vector<128x128xf32> to vector<128x128xbf16>
    %c0_29 = arith.constant 0 : index
    %c0_30 = arith.constant 0 : index
    %40 = vector.load %arg12[%c0_29, %c0_30] : memref<128x128xbf16, #tpu.memory_space<vmem>>, vector<128x128xbf16>
    tpu.vector_store %arg12[%c0_29, %c0_30], %39 {strides = array<i32>} : memref<128x128xbf16, #tpu.memory_space<vmem>>, vector<128x128xbf16>,
    return
  }
  func.func @transform_0(%arg0: i32) -> (i32, i32) {
    %c0_i32 = arith.constant 0 : i32
    %c0_i32_0 = arith.constant 0 : i32
    return %arg0, %c0_i32 : i32, i32
  }
  func.func @transform_1(%arg0: i32) -> (i32, i32) {
    %c0_i32 = arith.constant 0 : i32
    %c0_i32_0 = arith.constant 0 : i32
    %c0_i32_1 = arith.constant 0 : i32
    return %c0_i32, %c0_i32_0 : i32, i32
  }
  func.func @transform_2(%arg0: i32) -> (i32, i32) {
    %c0_i32 = arith.constant 0 : i32
    %c0_i32_0 = arith.constant 0 : i32
    %c0_i32_1 = arith.constant 0 : i32
    return %c0_i32, %c0_i32_0 : i32, i32
  }
  func.func @transform_3(%arg0: i32) -> (i32, i32) {
    %c0_i32 = arith.constant 0 : i32
    %c0_i32_0 = arith.constant 0 : i32
    %c0_i32_1 = arith.constant 0 : i32
    return %c0_i32, %c0_i32_0 : i32, i32
  }
  func.func @transform_4(%arg0: i32) -> (i32, i32) {
    %c0_i32 = arith.constant 0 : i32
    %c0_i32_0 = arith.constant 0 : i32
    %c0_i32_1 = arith.constant 0 : i32
    return %c0_i32, %c0_i32_0 : i32, i32
  }
  func.func @transform_5(%arg0: i32) -> (i32, i32) {
    %c0_i32 = arith.constant 0 : i32
    %c0_i32_0 = arith.constant 0 : i32
    %c0_i32_1 = arith.constant 0 : i32
    return %c0_i32, %c0_i32_0 : i32, i32
  }
  func.func @transform_6(%arg0: i32) -> (i32, i32) {
    %c0_i32 = arith.constant 0 : i32
    %c0_i32_0 = arith.constant 0 : i32
    %c0_i32_1 = arith.constant 0 : i32
    return %c0_i32, %c0_i32_0 : i32, i32
  }
  func.func @transform_7(%arg0: i32) -> (i32, i32) {
    %c0_i32 = arith.constant 0 : i32
    %c0_i32_0 = arith.constant 0 : i32
    %c0_i32_1 = arith.constant 0 : i32
    return %c0_i32, %c0_i32_0 : i32, i32
  }
  func.func @transform_8(%arg0: i32) -> (i32, i32) {
    %c0_i32 = arith.constant 0 : i32
    %c0_i32_0 = arith.constant 0 : i32
    %c0_i32_1 = arith.constant 0 : i32
    return %c0_i32, %c0_i32_0 : i32, i32
  }
  func.func @transform_9(%arg0: i32) -> (i32, i32) {
    %c0_i32 = arith.constant 0 : i32
    %c0_i32_0 = arith.constant 0 : i32
    %c0_i32_1 = arith.constant 0 : i32
    return %c0_i32, %c0_i32_0 : i32, i32
  }
  func.func @transform_10(%arg0: i32) -> (i32, i32) {
    %c0_i32 = arith.constant 0 : i32
    %c0_i32_0 = arith.constant 0 : i32
    %c0_i32_1 = arith.constant 0 : i32
    return %c0_i32, %c0_i32_0 : i32, i32
  }
  func.func @transform_11(%arg0: i32) -> (i32, i32) {
    %c0_i32 = arith.constant 0 : i32
    %c0_i32_0 = arith.constant 0 : i32
    return %arg0, %c0_i32 : i32, i32
  }
}

</mosaic_0001>

<llo_original>
// kernel: tpu_custom_call.1
$region0: #{tpu_custom_call.1}
  #allocation0 [shape = 'u32[]', space=smem, size = 0x4, offset = 0x4, fixed_abs, tag = 'smem constant byte address 0x4 - core index']
  #allocation1 [shape = 'u32[72,128]{1,0:T(1,128)}', space=vmem, size = 0x9000, scoped, tag = 'internal scratch']
  %s0 = inlined_call_operand.vmem [shape: f32[384,784], index: 0, kind: input, shape index: {}]
  %s1 = inlined_call_operand.vmem [shape: bf16[784,512], index: 1, kind: input, shape index: {}]
  %s2 = inlined_call_operand.vmem [shape: f32[1,512], index: 2, kind: input, shape index: {}]
  %s3 = inlined_call_operand.vmem [shape: bf16[512,256], index: 3, kind: input, shape index: {}]
  %s4 = inlined_call_operand.vmem [shape: f32[1,256], index: 4, kind: input, shape index: {}]
  %s5 = inlined_call_operand.vmem [shape: bf16[256,128], index: 5, kind: input, shape index: {}]
  %s6 = inlined_call_operand.vmem [shape: f32[1,128], index: 6, kind: input, shape index: {}]
  %s7 = inlined_call_operand.vmem [shape: bf16[128,64], index: 7, kind: input, shape index: {}]
  %s8 = inlined_call_operand.vmem [shape: f32[1,64], index: 8, kind: input, shape index: {}]
  %s9 = inlined_call_operand.vmem [shape: bf16[64,128], index: 9, kind: input, shape index: {}]
  %s10 = inlined_call_operand.vmem [shape: f32[1,128], index: 10, kind: input, shape index: {}]
  %s11 = inlined_call_operand.hbm [shape: bf16[384,128], index: 11, kind: output, shape index: {}]
  %s12 = sld [smem:[#allocation0]]
  $region77: #{tpu_custom_call.1} parent=0
    _
  %s14 = ssub.s32 1, %s12
  %s15 = scalar_select 0, %s14, %s12
  $region1: #{tpu_custom_call.1} parent=0
    #allocation2 [shape = 'u8[65536]{0}', space=vmem, size = 0x10000, scoped, tag = 'output window, operand 0']
    #allocation3 [shape = 's32[2]{0}', space=sflag, size = 0x8, scoped, tag = 'scoped memory for tpu_custom_call.1']
    %16 = vsyncpa [#allocation3], 0
    %s17 = scalar_lea.sflag [#allocation3], 1
    %18 = vsyncpa %s17, 0
    loop: start=0, step=1, limit=5
    $region2: #{tpu_custom_call.1} parent=1 // loop_pre_header
      _
    $region3: #{tpu_custom_call.1} parent=1 // loop_header
      %s20 = sphi 0, %s24
      %p21 = scmp.ge.s32.totalorder %s20, 5
      %s30 = sphi 0, %s32
      %s33 = sphi 0, %s30
      %s34 = sphi 0, %s33
      %s50 = sphi 0, %s34
      %s54 = sphi 0, %s54
      %s56 = sphi 0, %s54
      %s57 = sphi 0, %s56
      %s71 = sphi 0, %s57
      %s75 = sphi 0, %s75
      %s77 = sphi 0, %s75
      %s78 = sphi 0, %s77
      %s92 = sphi 0, %s78
      %s96 = sphi 0, %s96
      %s98 = sphi 0, %s96
      %s99 = sphi 0, %s98
      %s113 = sphi 0, %s99
      %s117 = sphi 0, %s117
      %s119 = sphi 0, %s117
      %s120 = sphi 0, %s119
      %s134 = sphi 0, %s120
      %s138 = sphi 0, %s138
      %s140 = sphi 0, %s138
      %s141 = sphi 0, %s140
      %s155 = sphi 0, %s141
      %s159 = sphi 0, %s159
      %s161 = sphi 0, %s159
      %s162 = sphi 0, %s161
      %s176 = sphi 0, %s162
      %s180 = sphi 0, %s180
      %s182 = sphi 0, %s180
      %s183 = sphi 0, %s182
      %s197 = sphi 0, %s183
      %s201 = sphi 0, %s201
      %s203 = sphi 0, %s201
      %s204 = sphi 0, %s203
      %s218 = sphi 0, %s204
      %s222 = sphi 0, %s222
      %s224 = sphi 0, %s222
      %s225 = sphi 0, %s224
      %s239 = sphi 0, %s225
      %s243 = sphi 0, %s243
      %s245 = sphi 0, %s243
      %s246 = sphi 0, %s245
      %s260 = sphi 0, %s246
      %s266 = sphi 0, %s268
      %s269 = sphi 0, %s266
      %s270 = sphi 0, %s269
      %s286 = sphi 0, %s270
    $region4: #{tpu_custom_call.1} parent=1 // loop_header_branch
      %23 = sbr.rel (%p21) target = $region8
    $region5: #{tpu_custom_call.1} parent=1 // loop_body
      %s25 = ssub.s32 %s20, 1
      %s26 = ssub.s32 %s20, 2
      %s27 = sadd.s32 %s20, 1
      %s28 = ssub.s32 %s20, %s27
      %p29 = scmp.eq.s32.totalorder %s28, 0
      %s31 = sadd.s32 %s30, 1
      %s32 = scalar_select %p29, %s30, %s31
      %p35 = pneg %p29
      %p36 = scmp.eq.s32.totalorder %s20, 2
      %p37 = por %p35, %p36
      %p38 = scmp.ne.s32.totalorder %s30, %s33
      %p39 = scmp.eq.s32.totalorder %s20, 0
      %p40 = por %p38, %p39
      %p41 = scmp.ne.s32.totalorder %s30, %s33
      %p42 = scmp.eq.s32.totalorder %s25, 2
      %p43 = por %p41, %p42
      %p44 = scmp.ne.s32.totalorder %s33, %s34
      %p45 = scmp.eq.s32.totalorder %s25, 0
      %p46 = por %p44, %p45
      %p47 = scmp.ne.s32.totalorder %s33, %s34
      %p48 = scmp.eq.s32.totalorder %s26, 2
      %p49 = por %p47, %p48
      %p51 = scmp.ne.s32.totalorder %s34, %s50
      %p52 = scmp.eq.s32.totalorder %s26, 0
      %p53 = por %p51, %p52
      %s55 = sadd.s32 %s54, 1
      %p58 = scmp.eq.s32.totalorder %s20, 2
      %p59 = scmp.ne.s32.totalorder %s54, %s56
      %p60 = scmp.eq.s32.totalorder %s20, 0
      %p61 = por %p59, %p60
      %p62 = scmp.ne.s32.totalorder %s54, %s56
      %p63 = scmp.eq.s32.totalorder %s25, 2
      %p64 = por %p62, %p63
      %p65 = scmp.ne.s32.totalorder %s56, %s57
      %p66 = scmp.eq.s32.totalorder %s25, 0
      %p67 = por %p65, %p66
      %p68 = scmp.ne.s32.totalorder %s56, %s57
      %p69 = scmp.eq.s32.totalorder %s26, 2
      %p70 = por %p68, %p69
      %p72 = scmp.ne.s32.totalorder %s57, %s71
      %p73 = scmp.eq.s32.totalorder %s26, 0
      %p74 = por %p72, %p73
      %s76 = sadd.s32 %s75, 1
      %p79 = scmp.eq.s32.totalorder %s20, 2
      %p80 = scmp.ne.s32.totalorder %s75, %s77
      %p81 = scmp.eq.s32.totalorder %s20, 0
      %p82 = por %p80, %p81
      %p83 = scmp.ne.s32.totalorder %s75, %s77
      %p84 = scmp.eq.s32.totalorder %s25, 2
      %p85 = por %p83, %p84
      %p86 = scmp.ne.s32.totalorder %s77, %s78
      %p87 = scmp.eq.s32.totalorder %s25, 0
      %p88 = por %p86, %p87
      %p89 = scmp.ne.s32.totalorder %s77, %s78
      %p90 = scmp.eq.s32.totalorder %s26, 2
      %p91 = por %p89, %p90
      %p93 = scmp.ne.s32.totalorder %s78, %s92
      %p94 = scmp.eq.s32.totalorder %s26, 0
      %p95 = por %p93, %p94
      %s97 = sadd.s32 %s96, 1
      %p100 = scmp.eq.s32.totalorder %s20, 2
      %p101 = scmp.ne.s32.totalorder %s96, %s98
      %p102 = scmp.eq.s32.totalorder %s20, 0
      %p103 = por %p101, %p102
      %p104 = scmp.ne.s32.totalorder %s96, %s98
      %p105 = scmp.eq.s32.totalorder %s25, 2
      %p106 = por %p104, %p105
      %p107 = scmp.ne.s32.totalorder %s98, %s99
      %p108 = scmp.eq.s32.totalorder %s25, 0
      %p109 = por %p107, %p108
      %p110 = scmp.ne.s32.totalorder %s98, %s99
      %p111 = scmp.eq.s32.totalorder %s26, 2
      %p112 = por %p110, %p111
      %p114 = scmp.ne.s32.totalorder %s99, %s113
      %p115 = scmp.eq.s32.totalorder %s26, 0
      %p116 = por %p114, %p115
      %s118 = sadd.s32 %s117, 1
      %p121 = scmp.eq.s32.totalorder %s20, 2
      %p122 = scmp.ne.s32.totalorder %s117, %s119
      %p123 = scmp.eq.s32.totalorder %s20, 0
      %p124 = por %p122, %p123
      %p125 = scmp.ne.s32.totalorder %s117, %s119
      %p126 = scmp.eq.s32.totalorder %s25, 2
      %p127 = por %p125, %p126
      %p128 = scmp.ne.s32.totalorder %s119, %s120
      %p129 = scmp.eq.s32.totalorder %s25, 0
      %p130 = por %p128, %p129
      %p131 = scmp.ne.s32.totalorder %s119, %s120
      %p132 = scmp.eq.s32.totalorder %s26, 2
      %p133 = por %p131, %p132
      %p135 = scmp.ne.s32.totalorder %s120, %s134
      %p136 = scmp.eq.s32.totalorder %s26, 0
      %p137 = por %p135, %p136
      %s139 = sadd.s32 %s138, 1
      %p142 = scmp.eq.s32.totalorder %s20, 2
      %p143 = scmp.ne.s32.totalorder %s138, %s140
      %p144 = scmp.eq.s32.totalorder %s20, 0
      %p145 = por %p143, %p144
      %p146 = scmp.ne.s32.totalorder %s138, %s140
      %p147 = scmp.eq.s32.totalorder %s25, 2
      %p148 = por %p146, %p147
      %p149 = scmp.ne.s32.totalorder %s140, %s141
      %p150 = scmp.eq.s32.totalorder %s25, 0
      %p151 = por %p149, %p150
      %p152 = scmp.ne.s32.totalorder %s140, %s141
      %p153 = scmp.eq.s32.totalorder %s26, 2
      %p154 = por %p152, %p153
      %p156 = scmp.ne.s32.totalorder %s141, %s155
      %p157 = scmp.eq.s32.totalorder %s26, 0
      %p158 = por %p156, %p157
      %s160 = sadd.s32 %s159, 1
      %p163 = scmp.eq.s32.totalorder %s20, 2
      %p164 = scmp.ne.s32.totalorder %s159, %s161
      %p165 = scmp.eq.s32.totalorder %s20, 0
      %p166 = por %p164, %p165
      %p167 = scmp.ne.s32.totalorder %s159, %s161
      %p168 = scmp.eq.s32.totalorder %s25, 2
      %p169 = por %p167, %p168
      %p170 = scmp.ne.s32.totalorder %s161, %s162
      %p171 = scmp.eq.s32.totalorder %s25, 0
      %p172 = por %p170, %p171
      %p173 = scmp.ne.s32.totalorder %s161, %s162
      %p174 = scmp.eq.s32.totalorder %s26, 2
      %p175 = por %p173, %p174
      %p177 = scmp.ne.s32.totalorder %s162, %s176
      %p178 = scmp.eq.s32.totalorder %s26, 0
      %p179 = por %p177, %p178
      %s181 = sadd.s32 %s180, 1
      %p184 = scmp.eq.s32.totalorder %s20, 2
      %p185 = scmp.ne.s32.totalorder %s180, %s182
      %p186 = scmp.eq.s32.totalorder %s20, 0
      %p187 = por %p185, %p186
      %p188 = scmp.ne.s32.totalorder %s180, %s182
      %p189 = scmp.eq.s32.totalorder %s25, 2
      %p190 = por %p188, %p189
      %p191 = scmp.ne.s32.totalorder %s182, %s183
      %p192 = scmp.eq.s32.totalorder %s25, 0
      %p193 = por %p191, %p192
      %p194 = scmp.ne.s32.totalorder %s182, %s183
      %p195 = scmp.eq.s32.totalorder %s26, 2
      %p196 = por %p194, %p195
      %p198 = scmp.ne.s32.totalorder %s183, %s197
      %p199 = scmp.eq.s32.totalorder %s26, 0
      %p200 = por %p198, %p199
      %s202 = sadd.s32 %s201, 1
      %p205 = scmp.eq.s32.totalorder %s20, 2
      %p206 = scmp.ne.s32.totalorder %s201, %s203
      %p207 = scmp.eq.s32.totalorder %s20, 0
      %p208 = por %p206, %p207
      %p209 = scmp.ne.s32.totalorder %s201, %s203
      %p210 = scmp.eq.s32.totalorder %s25, 2
      %p211 = por %p209, %p210
      %p212 = scmp.ne.s32.totalorder %s203, %s204
      %p213 = scmp.eq.s32.totalorder %s25, 0
      %p214 = por %p212, %p213
      %p215 = scmp.ne.s32.totalorder %s203, %s204
      %p216 = scmp.eq.s32.totalorder %s26, 2
      %p217 = por %p215, %p216
      %p219 = scmp.ne.s32.totalorder %s204, %s218
      %p220 = scmp.eq.s32.totalorder %s26, 0
      %p221 = por %p219, %p220
      %s223 = sadd.s32 %s222, 1
      %p226 = scmp.eq.s32.totalorder %s20, 2
      %p227 = scmp.ne.s32.totalorder %s222, %s224
      %p228 = scmp.eq.s32.totalorder %s20, 0
      %p229 = por %p227, %p228
      %p230 = scmp.ne.s32.totalorder %s222, %s224
      %p231 = scmp.eq.s32.totalorder %s25, 2
      %p232 = por %p230, %p231
      %p233 = scmp.ne.s32.totalorder %s224, %s225
      %p234 = scmp.eq.s32.totalorder %s25, 0
      %p235 = por %p233, %p234
      %p236 = scmp.ne.s32.totalorder %s224, %s225
      %p237 = scmp.eq.s32.totalorder %s26, 2
      %p238 = por %p236, %p237
      %p240 = scmp.ne.s32.totalorder %s225, %s239
      %p241 = scmp.eq.s32.totalorder %s26, 0
      %p242 = por %p240, %p241
      %s244 = sadd.s32 %s243, 1
      %p247 = scmp.eq.s32.totalorder %s20, 2
      %p248 = scmp.ne.s32.totalorder %s243, %s245
      %p249 = scmp.eq.s32.totalorder %s20, 0
      %p250 = por %p248, %p249
      %p251 = scmp.ne.s32.totalorder %s243, %s245
      %p252 = scmp.eq.s32.totalorder %s25, 2
      %p253 = por %p251, %p252
      %p254 = scmp.ne.s32.totalorder %s245, %s246
      %p255 = scmp.eq.s32.totalorder %s25, 0
      %p256 = por %p254, %p255
      %p257 = scmp.ne.s32.totalorder %s245, %s246
      %p258 = scmp.eq.s32.totalorder %s26, 2
      %p259 = por %p257, %p258
      %p261 = scmp.ne.s32.totalorder %s246, %s260
      %p262 = scmp.eq.s32.totalorder %s26, 0
      %p263 = por %p261, %p262
      %s264 = ssub.s32 %s20, %s27
      %p265 = scmp.eq.s32.totalorder %s264, 0
      %s267 = sadd.s32 %s266, 1
      %s268 = scalar_select %p265, %s266, %s267
      %p271 = pneg %p265
      %p272 = scmp.eq.s32.totalorder %s20, 2
      %p273 = por %p271, %p272
      %p274 = scmp.ne.s32.totalorder %s266, %s269
      %p275 = scmp.eq.s32.totalorder %s20, 0
      %p276 = por %p274, %p275
      %p277 = scmp.ne.s32.totalorder %s266, %s269
      %p278 = scmp.eq.s32.totalorder %s25, 2
      %p279 = por %p277, %p278
      %p280 = scmp.ne.s32.totalorder %s269, %s270
      %p281 = scmp.eq.s32.totalorder %s25, 0
      %p282 = por %p280, %p281
      %p283 = scmp.ne.s32.totalorder %s269, %s270
      %p284 = scmp.eq.s32.totalorder %s26, 2
      %p285 = por %p283, %p284
      %p287 = scmp.ne.s32.totalorder %s270, %s286
      %p288 = scmp.eq.s32.totalorder %s26, 0
      %p289 = por %p287, %p288
      %p290 = scmp.le.s32.totalorder 1, %s20
      %p291 = scmp.lt.s32.totalorder %s20, 4
      %p292 = pnand %p290, %p291
      %p293 = pneg %p292
      // Predicated region
      $region9: #{tpu_custom_call.1} parent=5 // pred_check
        _
      $region10: #{tpu_custom_call.1} parent=5 // pred_check_branch
        %295 = sbr.rel (%p292) target = $region12
      $region11: #{tpu_custom_call.1} parent=5 // pred_region
        %s296 = ssub.s32 %s20, 1
        // Predicated region
        $region13: #{tpu_custom_call.1} parent=11 // pred_check
          %p297 = pneg %p67
        $region14: #{tpu_custom_call.1} parent=11 // pred_check_branch
          %299 = sbr.rel (%p297) target = $region16
        $region15: #{tpu_custom_call.1} parent=11 // pred_region
          _
        $region16: #{tpu_custom_call.1} parent=11 // pred_fallthru
          _
        // Predicated region
        $region17: #{tpu_custom_call.1} parent=11 // pred_check
          %p300 = pneg %p88
        $region18: #{tpu_custom_call.1} parent=11 // pred_check_branch
          %302 = sbr.rel (%p300) target = $region20
        $region19: #{tpu_custom_call.1} parent=11 // pred_region
          _
        $region20: #{tpu_custom_call.1} parent=11 // pred_fallthru
          _
        // Predicated region
        $region21: #{tpu_custom_call.1} parent=11 // pred_check
          %p303 = pneg %p109
        $region22: #{tpu_custom_call.1} parent=11 // pred_check_branch
          %305 = sbr.rel (%p303) target = $region24
        $region23: #{tpu_custom_call.1} parent=11 // pred_region
          _
        $region24: #{tpu_custom_call.1} parent=11 // pred_fallthru
          _
        // Predicated region
        $region25: #{tpu_custom_call.1} parent=11 // pred_check
          %p306 = pneg %p130
        $region26: #{tpu_custom_call.1} parent=11 // pred_check_branch
          %308 = sbr.rel (%p306) target = $region28
        $region27: #{tpu_custom_call.1} parent=11 // pred_region
          _
        $region28: #{tpu_custom_call.1} parent=11 // pred_fallthru
          _
        // Predicated region
        $region29: #{tpu_custom_call.1} parent=11 // pred_check
          %p309 = pneg %p151
        $region30: #{tpu_custom_call.1} parent=11 // pred_check_branch
          %311 = sbr.rel (%p309) target = $region32
        $region31: #{tpu_custom_call.1} parent=11 // pred_region
          _
        $region32: #{tpu_custom_call.1} parent=11 // pred_fallthru
          _
        // Predicated region
        $region33: #{tpu_custom_call.1} parent=11 // pred_check
          %p312 = pneg %p172
        $region34: #{tpu_custom_call.1} parent=11 // pred_check_branch
          %314 = sbr.rel (%p312) target = $region36
        $region35: #{tpu_custom_call.1} parent=11 // pred_region
          _
        $region36: #{tpu_custom_call.1} parent=11 // pred_fallthru
          _
        // Predicated region
        $region37: #{tpu_custom_call.1} parent=11 // pred_check
          %p315 = pneg %p193
        $region38: #{tpu_custom_call.1} parent=11 // pred_check_branch
          %317 = sbr.rel (%p315) target = $region40
        $region39: #{tpu_custom_call.1} parent=11 // pred_region
          _
        $region40: #{tpu_custom_call.1} parent=11 // pred_fallthru
          _
        // Predicated region
        $region41: #{tpu_custom_call.1} parent=11 // pred_check
          %p318 = pneg %p214
        $region42: #{tpu_custom_call.1} parent=11 // pred_check_branch
          %320 = sbr.rel (%p318) target = $region44
        $region43: #{tpu_custom_call.1} parent=11 // pred_region
          _
        $region44: #{tpu_custom_call.1} parent=11 // pred_fallthru
          _
        // Predicated region
        $region45: #{tpu_custom_call.1} parent=11 // pred_check
          %p321 = pneg %p235
        $region46: #{tpu_custom_call.1} parent=11 // pred_check_branch
          %323 = sbr.rel (%p321) target = $region48
        $region47: #{tpu_custom_call.1} parent=11 // pred_region
          _
        $region48: #{tpu_custom_call.1} parent=11 // pred_fallthru
          _
        // Predicated region
        $region49: #{tpu_custom_call.1} parent=11 // pred_check
          %p324 = pneg %p256
        $region50: #{tpu_custom_call.1} parent=11 // pred_check_branch
          %326 = sbr.rel (%p324) target = $region52
        $region51: #{tpu_custom_call.1} parent=11 // pred_region
          _
        $region52: #{tpu_custom_call.1} parent=11 // pred_fallthru
          _
      $region12: #{tpu_custom_call.1} parent=5 // pred_fallthru
        _
      %p327 = scmp.lt.s32.totalorder %s20, 3
      // Predicated region
      $region53: #{tpu_custom_call.1} parent=5 // pred_check
        %p328 = pneg %p327
      $region54: #{tpu_custom_call.1} parent=5 // pred_check_branch
        %330 = sbr.rel (%p328) target = $region56
      $region55: #{tpu_custom_call.1} parent=5 // pred_region
        // Predicated region
        $region57: #{tpu_custom_call.1} parent=55 // pred_check
          %p331 = pneg %p40
        $region58: #{tpu_custom_call.1} parent=55 // pred_check_branch
          %333 = sbr.rel (%p331) target = $region60
        $region59: #{tpu_custom_call.1} parent=55 // pred_region
          %s334 = smul.u32 16, %s20
          %p335 = scmp.lt.s32.totalorder %s334, 47
          %s336 = scalar_select %p335, %s334, 47
          %s337 = smul.addr %s336, 7
          %s338 = smul.addr %s337, 8
          %s339 = scalar_lea.vmem %s0, %s338
          %s340 = smul.u32 16, %s20
        $region60: #{tpu_custom_call.1} parent=55 // pred_fallthru
          _
      $region56: #{tpu_custom_call.1} parent=5 // pred_fallthru
        _
      %p341 = scmp.le.s32.totalorder 1, %s20
      %p342 = scmp.lt.s32.totalorder %s20, 4
      %p343 = pnand %p341, %p342
      %p344 = pneg %p343
      // Predicated region
      $region61: #{tpu_custom_call.1} parent=5 // pred_check
        _
      $region62: #{tpu_custom_call.1} parent=5 // pred_check_branch
        %346 = sbr.rel (%p343) target = $region64
      $region63: #{tpu_custom_call.1} parent=5 // pred_region
        %s347 = ssub.s32 %s20, 1
        %s348 = smul.u32 16, %s25
        %p349 = scmp.lt.s32.totalorder %s348, 47
        %s350 = scalar_select %p349, %s348, 47
        %s351 = smul.addr %s350, 7
        %s352 = smul.addr %s351, 8
        %s353 = scalar_lea.vmem %s0, %s352
        %p354 = pneg %p46
        %p355 = pneg %p43
        %p356 = pneg %p67
        %p357 = pneg %p64
        %p358 = pneg %p88
        %p359 = pneg %p85
        %p360 = pneg %p109
        %p361 = pneg %p106
        %p362 = pneg %p130
        %p363 = pneg %p127
        %p364 = pneg %p151
        %p365 = pneg %p148
        %p366 = pneg %p172
        %p367 = pneg %p169
        %p368 = pneg %p193
        %p369 = pneg %p190
        %p370 = pneg %p214
        %p371 = pneg %p211
        %p372 = pneg %p235
        %p373 = pneg %p232
        %p374 = pneg %p256
        %p375 = pneg %p253
        %p376 = pneg %p282
        %p377 = pneg %p279
        %s378 = sand.u32 %s269, 1
        %s379 = scalar_lea.sflag [#allocation3], %s378
        %s380 = sand.u32 %s269, 1
        %s381 = smul.addr %s380, 64
        %s382 = scalar_lea.vmem [#allocation2], %s381
        %s383 = smul.u32 16, %s25
        %p384 = scmp.lt.s32.totalorder %s383, 47
        %s385 = scalar_select %p384, %s383, 47
        %s386 = smul.addr %s385, 7
        %s387 = smul.addr %s386, 8
        %s388 = scalar_lea.vmem %s0, %s387
        %s389 = smul.u32 16, %s25
        %s390 = smul.u32 16, %s25
        %v392 = vld [vmem:[%s388] sm:$0xff]
        %v393 = vld [vmem:[%s388 + $0x8] sm:$0xff]
        %v394 = vld [vmem:[%s388 + $0x10] sm:$0xff]
        %v395 = vld [vmem:[%s388 + $0x18] sm:$0xff]
        %v396 = vld [vmem:[%s388 + $0x20] sm:$0xff]
        %v397 = vld [vmem:[%s388 + $0x28] sm:$0xff]
        %v398 = vld [vmem:[%s388 + $0x30] sm:$0xff]
        %v399 = vld [vmem:[%s388 + $0x38] sm:$0xff]
        %v400 = vld [vmem:[%s388 + $0x40] sm:$0xff]
        %v401 = vld [vmem:[%s388 + $0x48] sm:$0xff]
        %v402 = vld [vmem:[%s388 + $0x50] sm:$0xff]
        %v403 = vld [vmem:[%s388 + $0x58] sm:$0xff]
        %v404 = vld [vmem:[%s388 + $0x60] sm:$0xff]
        %v405 = vld [vmem:[%s388 + $0x68] sm:$0xff]
        %v406 = vld [vmem:[%s388 + $0x70] sm:$0xff]
        %v407 = vld [vmem:[%s388 + $0x78] sm:$0xff]
        %v408 = vld [vmem:[%s388 + $0x80] sm:$0xff]
        %v409 = vld [vmem:[%s388 + $0x88] sm:$0xff]
        %v410 = vld [vmem:[%s388 + $0x90] sm:$0xff]
        %v411 = vld [vmem:[%s388 + $0x98] sm:$0xff]
        %v412 = vld [vmem:[%s388 + $0xa0] sm:$0xff]
        %v413 = vld [vmem:[%s388 + $0xa8] sm:$0xff]
        %v414 = vld [vmem:[%s388 + $0xb0] sm:$0xff]
        %v415 = vld [vmem:[%s388 + $0xb8] sm:$0xff]
        %v416 = vld [vmem:[%s388 + $0xc0] sm:$0xff]
        %v417 = vld [vmem:[%s388 + $0xc8] sm:$0xff]
        %v418 = vld [vmem:[%s388 + $0xd0] sm:$0xff]
        %v419 = vld [vmem:[%s388 + $0xd8] sm:$0xff]
        %v420 = vld [vmem:[%s388 + $0xe0] sm:$0xff]
        %v421 = vld [vmem:[%s388 + $0xe8] sm:$0xff]
        %v422 = vld [vmem:[%s388 + $0xf0] sm:$0xff]
        %v423 = vld [vmem:[%s388 + $0xf8] sm:$0xff]
        %v424 = vld [vmem:[%s388 + $0x100] sm:$0xff]
        %v425 = vld [vmem:[%s388 + $0x108] sm:$0xff]
        %v426 = vld [vmem:[%s388 + $0x110] sm:$0xff]
        %v427 = vld [vmem:[%s388 + $0x118] sm:$0xff]
        %v428 = vld [vmem:[%s388 + $0x120] sm:$0xff]
        %v429 = vld [vmem:[%s388 + $0x128] sm:$0xff]
        %v430 = vld [vmem:[%s388 + $0x130] sm:$0xff]
        %v431 = vld [vmem:[%s388 + $0x138] sm:$0xff]
        %v432 = vld [vmem:[%s388 + $0x140] sm:$0xff]
        %v433 = vld [vmem:[%s388 + $0x148] sm:$0xff]
        %v434 = vld [vmem:[%s388 + $0x150] sm:$0xff]
        %v435 = vld [vmem:[%s388 + $0x158] sm:$0xff]
        %v436 = vld [vmem:[%s388 + $0x160] sm:$0xff]
        %v437 = vld [vmem:[%s388 + $0x168] sm:$0xff]
        %v438 = vld [vmem:[%s388 + $0x170] sm:$0xff]
        %v439 = vld [vmem:[%s388 + $0x178] sm:$0xff]
        %v440 = vld [vmem:[%s388 + $0x180] sm:$0xff]
        %v441 = vld [vmem:[%s388 + $0x188] sm:$0xff]
        %v442 = vld [vmem:[%s388 + $0x190] sm:$0xff]
        %v443 = vld [vmem:[%s388 + $0x198] sm:$0xff]
        %v444 = vld [vmem:[%s388 + $0x1a0] sm:$0xff]
        %v445 = vld [vmem:[%s388 + $0x1a8] sm:$0xff]
        %v446 = vld [vmem:[%s388 + $0x1b0] sm:$0xff]
        %v447 = vld [vmem:[%s388 + $0x1b8] sm:$0xff]
        %v448 = vld [vmem:[%s388 + $0x1c0] sm:$0xff]
        %v449 = vld [vmem:[%s388 + $0x1c8] sm:$0xff]
        %v450 = vld [vmem:[%s388 + $0x1d0] sm:$0xff]
        %v451 = vld [vmem:[%s388 + $0x1d8] sm:$0xff]
        %v452 = vld [vmem:[%s388 + $0x1e0] sm:$0xff]
        %v453 = vld [vmem:[%s388 + $0x1e8] sm:$0xff]
        %v454 = vld [vmem:[%s388 + $0x1f0] sm:$0xff]
        %v455 = vld [vmem:[%s388 + $0x1f8] sm:$0xff]
        %v456 = vld [vmem:[%s388 + $0x200] sm:$0xff]
        %v457 = vld [vmem:[%s388 + $0x208] sm:$0xff]
        %v458 = vld [vmem:[%s388 + $0x210] sm:$0xff]
        %v459 = vld [vmem:[%s388 + $0x218] sm:$0xff]
        %v460 = vld [vmem:[%s388 + $0x220] sm:$0xff]
        %v461 = vld [vmem:[%s388 + $0x228] sm:$0xff]
        %v462 = vld [vmem:[%s388 + $0x230] sm:$0xff]
        %v463 = vld [vmem:[%s388 + $0x238] sm:$0xff]
        %v464 = vld [vmem:[%s388 + $0x240] sm:$0xff]
        %v465 = vld [vmem:[%s388 + $0x248] sm:$0xff]
        %v466 = vld [vmem:[%s388 + $0x250] sm:$0xff]
        %v467 = vld [vmem:[%s388 + $0x258] sm:$0xff]
        %v468 = vld [vmem:[%s388 + $0x260] sm:$0xff]
        %v469 = vld [vmem:[%s388 + $0x268] sm:$0xff]
        %v470 = vld [vmem:[%s388 + $0x270] sm:$0xff]
        %v471 = vld [vmem:[%s388 + $0x278] sm:$0xff]
        %v472 = vld [vmem:[%s388 + $0x280] sm:$0xff]
        %v473 = vld [vmem:[%s388 + $0x288] sm:$0xff]
        %v474 = vld [vmem:[%s388 + $0x290] sm:$0xff]
        %v475 = vld [vmem:[%s388 + $0x298] sm:$0xff]
        %v476 = vld [vmem:[%s388 + $0x2a0] sm:$0xff]
        %v477 = vld [vmem:[%s388 + $0x2a8] sm:$0xff]
        %v478 = vld [vmem:[%s388 + $0x2b0] sm:$0xff]
        %v479 = vld [vmem:[%s388 + $0x2b8] sm:$0xff]
        %v480 = vld [vmem:[%s388 + $0x2c0] sm:$0xff]
        %v481 = vld [vmem:[%s388 + $0x2c8] sm:$0xff]
        %v482 = vld [vmem:[%s388 + $0x2d0] sm:$0xff]
        %v483 = vld [vmem:[%s388 + $0x2d8] sm:$0xff]
        %v484 = vld [vmem:[%s388 + $0x2e0] sm:$0xff]
        %v485 = vld [vmem:[%s388 + $0x2e8] sm:$0xff]
        %v486 = vld [vmem:[%s388 + $0x2f0] sm:$0xff]
        %v487 = vld [vmem:[%s388 + $0x2f8] sm:$0xff]
        %v488 = vld [vmem:[%s388 + $0x300] sm:$0xff]
        %v489 = vld [vmem:[%s388 + $0x308] sm:$0xff]
        %v490 = vld [vmem:[%s388 + $0x310] sm:$0xff]
        %v491 = vld [vmem:[%s388 + $0x318] sm:$0xff]
        %v492 = vld [vmem:[%s388 + $0x320] sm:$0xff]
        %v493 = vld [vmem:[%s388 + $0x328] sm:$0xff]
        %v494 = vld [vmem:[%s388 + $0x330] sm:$0xff]
        %v495 = vld [vmem:[%s388 + $0x338] sm:$0xff]
        %v496 = vld [vmem:[%s388 + $0x340] sm:$0xff]
        %v497 = vld [vmem:[%s388 + $0x348] sm:$0xff]
        %v498 = vld [vmem:[%s388 + $0x350] sm:$0xff]
        %v499 = vld [vmem:[%s388 + $0x358] sm:$0xff]
        %v500 = vld [vmem:[%s388 + $0x360] sm:$0xff]
        %v501 = vld [vmem:[%s388 + $0x368] sm:$0xff]
        %v502 = vld [vmem:[%s388 + $0x370] sm:$0xff]
        %v503 = vld [vmem:[%s388 + $0x378] sm:$0xff]
        %v504 = vpack.c.bf16 %v399, %v392
        %v505 = vpack.c.bf16 %v400, %v393
        %v506 = vpack.c.bf16 %v401, %v394
        %v507 = vpack.c.bf16 %v402, %v395
        %v508 = vpack.c.bf16 %v403, %v396
        %v509 = vpack.c.bf16 %v404, %v397
        %v510 = vpack.c.bf16 %v405, %v398
        %v511 = vpack.c.bf16 %v413, %v406
        %v512 = vpack.c.bf16 %v414, %v407
        %v513 = vpack.c.bf16 %v415, %v408
        %v514 = vpack.c.bf16 %v416, %v409
        %v515 = vpack.c.bf16 %v417, %v410
        %v516 = vpack.c.bf16 %v418, %v411
        %v517 = vpack.c.bf16 %v419, %v412
        %v518 = vpack.c.bf16 %v427, %v420
        %v519 = vpack.c.bf16 %v428, %v421
        %v520 = vpack.c.bf16 %v429, %v422
        %v521 = vpack.c.bf16 %v430, %v423
        %v522 = vpack.c.bf16 %v431, %v424
        %v523 = vpack.c.bf16 %v432, %v425
        %v524 = vpack.c.bf16 %v433, %v426
        %v525 = vpack.c.bf16 %v441, %v434
        %v526 = vpack.c.bf16 %v442, %v435
        %v527 = vpack.c.bf16 %v443, %v436
        %v528 = vpack.c.bf16 %v444, %v437
        %v529 = vpack.c.bf16 %v445, %v438
        %v530 = vpack.c.bf16 %v446, %v439
        %v531 = vpack.c.bf16 %v447, %v440
        %v532 = vpack.c.bf16 %v455, %v448
        %v533 = vpack.c.bf16 %v456, %v449
        %v534 = vpack.c.bf16 %v457, %v450
        %v535 = vpack.c.bf16 %v458, %v451
        %v536 = vpack.c.bf16 %v459, %v452
        %v537 = vpack.c.bf16 %v460, %v453
        %v538 = vpack.c.bf16 %v461, %v454
        %v539 = vpack.c.bf16 %v469, %v462
        %v540 = vpack.c.bf16 %v470, %v463
        %v541 = vpack.c.bf16 %v471, %v464
        %v542 = vpack.c.bf16 %v472, %v465
        %v543 = vpack.c.bf16 %v473, %v466
        %v544 = vpack.c.bf16 %v474, %v467
        %v545 = vpack.c.bf16 %v475, %v468
        %v546 = vpack.c.bf16 %v483, %v476
        %v547 = vpack.c.bf16 %v484, %v477
        %v548 = vpack.c.bf16 %v485, %v478
        %v549 = vpack.c.bf16 %v486, %v479
        %v550 = vpack.c.bf16 %v487, %v480
        %v551 = vpack.c.bf16 %v488, %v481
        %v552 = vpack.c.bf16 %v489, %v482
        %v553 = vpack.c.bf16 %v497, %v490
        %v554 = vpack.c.bf16 %v498, %v491
        %v555 = vpack.c.bf16 %v499, %v492
        %v556 = vpack.c.bf16 %v500, %v493
        %v557 = vpack.c.bf16 %v501, %v494
        %v558 = vpack.c.bf16 %v502, %v495
        %v559 = vpack.c.bf16 %v503, %v496
        %v560 = vld [vmem:[%s1] sm:$0xff]
        %v561 = vld [vmem:[%s1 + $0x8] sm:$0xff]
        %v562 = vld [vmem:[%s1 + $0x10] sm:$0xff]
        %v563 = vld [vmem:[%s1 + $0x18] sm:$0xff]
        %v564 = vld [vmem:[%s1 + $0x20] sm:$0xff]
        %v565 = vld [vmem:[%s1 + $0x28] sm:$0xff]
        %v566 = vld [vmem:[%s1 + $0x30] sm:$0xff]
        %v567 = vld [vmem:[%s1 + $0x38] sm:$0xff]
        %v568 = vld [vmem:[%s1 + $0x40] sm:$0xff]
        %v569 = vld [vmem:[%s1 + $0x48] sm:$0xff]
        %v570 = vld [vmem:[%s1 + $0x50] sm:$0xff]
        %v571 = vld [vmem:[%s1 + $0x58] sm:$0xff]
        %v572 = vld [vmem:[%s1 + $0x60] sm:$0xff]
        %v573 = vld [vmem:[%s1 + $0x68] sm:$0xff]
        %v574 = vld [vmem:[%s1 + $0x70] sm:$0xff]
        %v575 = vld [vmem:[%s1 + $0x78] sm:$0xff]
        %v576 = vld [vmem:[%s1 + $0x80] sm:$0xff]
        %v577 = vld [vmem:[%s1 + $0x88] sm:$0xff]
        %v578 = vld [vmem:[%s1 + $0x90] sm:$0xff]
        %v579 = vld [vmem:[%s1 + $0x98] sm:$0xff]
        %v580 = vld [vmem:[%s1 + $0xa0] sm:$0xff]
        %v581 = vld [vmem:[%s1 + $0xa8] sm:$0xff]
        %v582 = vld [vmem:[%s1 + $0xb0] sm:$0xff]
        %v583 = vld [vmem:[%s1 + $0xb8] sm:$0xff]
        %v584 = vld [vmem:[%s1 + $0xc0] sm:$0xff]
        %v585 = vld [vmem:[%s1 + $0xc8] sm:$0xff]
        %v586 = vld [vmem:[%s1 + $0xd0] sm:$0xff]
        %v587 = vld [vmem:[%s1 + $0xd8] sm:$0xff]
        %v588 = vld [vmem:[%s1 + $0xe0] sm:$0xff]
        %v589 = vld [vmem:[%s1 + $0xe8] sm:$0xff]
        %v590 = vld [vmem:[%s1 + $0xf0] sm:$0xff]
        %v591 = vld [vmem:[%s1 + $0xf8] sm:$0xff]
        %v592 = vld [vmem:[%s1 + $0x100] sm:$0xff]
        %v593 = vld [vmem:[%s1 + $0x108] sm:$0xff]
        %v594 = vld [vmem:[%s1 + $0x110] sm:$0xff]
        %v595 = vld [vmem:[%s1 + $0x118] sm:$0xff]
        %v596 = vld [vmem:[%s1 + $0x120] sm:$0xff]
        %v597 = vld [vmem:[%s1 + $0x128] sm:$0xff]
        %v598 = vld [vmem:[%s1 + $0x130] sm:$0xff]
        %v599 = vld [vmem:[%s1 + $0x138] sm:$0xff]
        %v600 = vld [vmem:[%s1 + $0x140] sm:$0xff]
        %v601 = vld [vmem:[%s1 + $0x148] sm:$0xff]
        %v602 = vld [vmem:[%s1 + $0x150] sm:$0xff]
        %v603 = vld [vmem:[%s1 + $0x158] sm:$0xff]
        %v604 = vld [vmem:[%s1 + $0x160] sm:$0xff]
        %v605 = vld [vmem:[%s1 + $0x168] sm:$0xff]
        %v606 = vld [vmem:[%s1 + $0x170] sm:$0xff]
        %v607 = vld [vmem:[%s1 + $0x178] sm:$0xff]
        %v608 = vld [vmem:[%s1 + $0x180] sm:$0xff]
        %v609 = vld [vmem:[%s1 + $0x188] sm:$0xff]
        %v610 = vld [vmem:[%s1 + $0x190] sm:$0xff]
        %v611 = vld [vmem:[%s1 + $0x198] sm:$0xff]
        %v612 = vld [vmem:[%s1 + $0x1a0] sm:$0xff]
        %v613 = vld [vmem:[%s1 + $0x1a8] sm:$0xff]
        %v614 = vld [vmem:[%s1 + $0x1b0] sm:$0xff]
        %v615 = vld [vmem:[%s1 + $0x1b8] sm:$0xff]
        %v616 = vld [vmem:[%s1 + $0x1c0] sm:$0xff]
        %v617 = vld [vmem:[%s1 + $0x1c8] sm:$0xff]
        %v618 = vld [vmem:[%s1 + $0x1d0] sm:$0xff]
        %v619 = vld [vmem:[%s1 + $0x1d8] sm:$0xff]
        %v620 = vld [vmem:[%s1 + $0x1e0] sm:$0xff]
        %v621 = vld [vmem:[%s1 + $0x1e8] sm:$0xff]
        %v622 = vld [vmem:[%s1 + $0x1f0] sm:$0xff]
        %v623 = vld [vmem:[%s1 + $0x1f8] sm:$0xff]
        %v624 = vld [vmem:[%s1 + $0x200] sm:$0xff]
        %v625 = vld [vmem:[%s1 + $0x208] sm:$0xff]
        %v626 = vld [vmem:[%s1 + $0x210] sm:$0xff]
        %v627 = vld [vmem:[%s1 + $0x218] sm:$0xff]
        %v628 = vld [vmem:[%s1 + $0x220] sm:$0xff]
        %v629 = vld [vmem:[%s1 + $0x228] sm:$0xff]
        %v630 = vld [vmem:[%s1 + $0x230] sm:$0xff]
        %v631 = vld [vmem:[%s1 + $0x238] sm:$0xff]
        %v632 = vld [vmem:[%s1 + $0x240] sm:$0xff]
        %v633 = vld [vmem:[%s1 + $0x248] sm:$0xff]
        %v634 = vld [vmem:[%s1 + $0x250] sm:$0xff]
        %v635 = vld [vmem:[%s1 + $0x258] sm:$0xff]
        %v636 = vld [vmem:[%s1 + $0x260] sm:$0xff]
        %v637 = vld [vmem:[%s1 + $0x268] sm:$0xff]
        %v638 = vld [vmem:[%s1 + $0x270] sm:$0xff]
        %v639 = vld [vmem:[%s1 + $0x278] sm:$0xff]
        %v640 = vld [vmem:[%s1 + $0x280] sm:$0xff]
        %v641 = vld [vmem:[%s1 + $0x288] sm:$0xff]
        %v642 = vld [vmem:[%s1 + $0x290] sm:$0xff]
        %v643 = vld [vmem:[%s1 + $0x298] sm:$0xff]
        %v644 = vld [vmem:[%s1 + $0x2a0] sm:$0xff]
        %v645 = vld [vmem:[%s1 + $0x2a8] sm:$0xff]
        %v646 = vld [vmem:[%s1 + $0x2b0] sm:$0xff]
        %v647 = vld [vmem:[%s1 + $0x2b8] sm:$0xff]
        %v648 = vld [vmem:[%s1 + $0x2c0] sm:$0xff]
        %v649 = vld [vmem:[%s1 + $0x2c8] sm:$0xff]
        %v650 = vld [vmem:[%s1 + $0x2d0] sm:$0xff]
        %v651 = vld [vmem:[%s1 + $0x2d8] sm:$0xff]
        %v652 = vld [vmem:[%s1 + $0x2e0] sm:$0xff]
        %v653 = vld [vmem:[%s1 + $0x2e8] sm:$0xff]
        %v654 = vld [vmem:[%s1 + $0x2f0] sm:$0xff]
        %v655 = vld [vmem:[%s1 + $0x2f8] sm:$0xff]
        %v656 = vld [vmem:[%s1 + $0x300] sm:$0xff]
        %v657 = vld [vmem:[%s1 + $0x308] sm:$0xff]
        %v658 = vld [vmem:[%s1 + $0x310] sm:$0xff]
        %v659 = vld [vmem:[%s1 + $0x318] sm:$0xff]
        %v660 = vld [vmem:[%s1 + $0x320] sm:$0xff]
        %v661 = vld [vmem:[%s1 + $0x328] sm:$0xff]
        %v662 = vld [vmem:[%s1 + $0x330] sm:$0xff]
        %v663 = vld [vmem:[%s1 + $0x338] sm:$0xff]
        %v664 = vld [vmem:[%s1 + $0x340] sm:$0xff]
        %v665 = vld [vmem:[%s1 + $0x348] sm:$0xff]
        %v666 = vld [vmem:[%s1 + $0x350] sm:$0xff]
        %v667 = vld [vmem:[%s1 + $0x358] sm:$0xff]
        %v668 = vld [vmem:[%s1 + $0x360] sm:$0xff]
        %v669 = vld [vmem:[%s1 + $0x368] sm:$0xff]
        %v670 = vld [vmem:[%s1 + $0x370] sm:$0xff]
        %v671 = vld [vmem:[%s1 + $0x378] sm:$0xff]
        %v672 = vld [vmem:[%s1 + $0x380] sm:$0xff]
        %v673 = vld [vmem:[%s1 + $0x388] sm:$0xff]
        %v674 = vld [vmem:[%s1 + $0x390] sm:$0xff]
        %v675 = vld [vmem:[%s1 + $0x398] sm:$0xff]
        %v676 = vld [vmem:[%s1 + $0x3a0] sm:$0xff]
        %v677 = vld [vmem:[%s1 + $0x3a8] sm:$0xff]
        %v678 = vld [vmem:[%s1 + $0x3b0] sm:$0xff]
        %v679 = vld [vmem:[%s1 + $0x3b8] sm:$0xff]
        %v680 = vld [vmem:[%s1 + $0x3c0] sm:$0xff]
        %v681 = vld [vmem:[%s1 + $0x3c8] sm:$0xff]
        %v682 = vld [vmem:[%s1 + $0x3d0] sm:$0xff]
        %v683 = vld [vmem:[%s1 + $0x3d8] sm:$0xff]
        %v684 = vld [vmem:[%s1 + $0x3e0] sm:$0xff]
        %v685 = vld [vmem:[%s1 + $0x3e8] sm:$0xff]
        %v686 = vld [vmem:[%s1 + $0x3f0] sm:$0xff]
        %v687 = vld [vmem:[%s1 + $0x3f8] sm:$0xff]
        %v688 = vld [vmem:[%s1 + $0x400] sm:$0xff]
        %v689 = vld [vmem:[%s1 + $0x408] sm:$0xff]
        %v690 = vld [vmem:[%s1 + $0x410] sm:$0xff]
        %v691 = vld [vmem:[%s1 + $0x418] sm:$0xff]
        %v692 = vld [vmem:[%s1 + $0x420] sm:$0xff]
        %v693 = vld [vmem:[%s1 + $0x428] sm:$0xff]
        %v694 = vld [vmem:[%s1 + $0x430] sm:$0xff]
        %v695 = vld [vmem:[%s1 + $0x438] sm:$0xff]
        %v696 = vld [vmem:[%s1 + $0x440] sm:$0xff]
        %v697 = vld [vmem:[%s1 + $0x448] sm:$0xff]
        %v698 = vld [vmem:[%s1 + $0x450] sm:$0xff]
        %v699 = vld [vmem:[%s1 + $0x458] sm:$0xff]
        %v700 = vld [vmem:[%s1 + $0x460] sm:$0xff]
        %v701 = vld [vmem:[%s1 + $0x468] sm:$0xff]
        %v702 = vld [vmem:[%s1 + $0x470] sm:$0xff]
        %v703 = vld [vmem:[%s1 + $0x478] sm:$0xff]
        %v704 = vld [vmem:[%s1 + $0x480] sm:$0xff]
        %v705 = vld [vmem:[%s1 + $0x488] sm:$0xff]
        %v706 = vld [vmem:[%s1 + $0x490] sm:$0xff]
        %v707 = vld [vmem:[%s1 + $0x498] sm:$0xff]
        %v708 = vld [vmem:[%s1 + $0x4a0] sm:$0xff]
        %v709 = vld [vmem:[%s1 + $0x4a8] sm:$0xff]
        %v710 = vld [vmem:[%s1 + $0x4b0] sm:$0xff]
        %v711 = vld [vmem:[%s1 + $0x4b8] sm:$0xff]
        %v712 = vld [vmem:[%s1 + $0x4c0] sm:$0xff]
        %v713 = vld [vmem:[%s1 + $0x4c8] sm:$0xff]
        %v714 = vld [vmem:[%s1 + $0x4d0] sm:$0xff]
        %v715 = vld [vmem:[%s1 + $0x4d8] sm:$0xff]
        %v716 = vld [vmem:[%s1 + $0x4e0] sm:$0xff]
        %v717 = vld [vmem:[%s1 + $0x4e8] sm:$0xff]
        %v718 = vld [vmem:[%s1 + $0x4f0] sm:$0xff]
        %v719 = vld [vmem:[%s1 + $0x4f8] sm:$0xff]
        %v720 = vld [vmem:[%s1 + $0x500] sm:$0xff]
        %v721 = vld [vmem:[%s1 + $0x508] sm:$0xff]
        %v722 = vld [vmem:[%s1 + $0x510] sm:$0xff]
        %v723 = vld [vmem:[%s1 + $0x518] sm:$0xff]
        %v724 = vld [vmem:[%s1 + $0x520] sm:$0xff]
        %v725 = vld [vmem:[%s1 + $0x528] sm:$0xff]
        %v726 = vld [vmem:[%s1 + $0x530] sm:$0xff]
        %v727 = vld [vmem:[%s1 + $0x538] sm:$0xff]
        %v728 = vld [vmem:[%s1 + $0x540] sm:$0xff]
        %v729 = vld [vmem:[%s1 + $0x548] sm:$0xff]
        %v730 = vld [vmem:[%s1 + $0x550] sm:$0xff]
        %v731 = vld [vmem:[%s1 + $0x558] sm:$0xff]
        %v732 = vld [vmem:[%s1 + $0x560] sm:$0xff]
        %v733 = vld [vmem:[%s1 + $0x568] sm:$0xff]
        %v734 = vld [vmem:[%s1 + $0x570] sm:$0xff]
        %v735 = vld [vmem:[%s1 + $0x578] sm:$0xff]
        %v736 = vld [vmem:[%s1 + $0x580] sm:$0xff]
        %v737 = vld [vmem:[%s1 + $0x588] sm:$0xff]
        %v738 = vld [vmem:[%s1 + $0x590] sm:$0xff]
        %v739 = vld [vmem:[%s1 + $0x598] sm:$0xff]
        %v740 = vld [vmem:[%s1 + $0x5a0] sm:$0xff]
        %v741 = vld [vmem:[%s1 + $0x5a8] sm:$0xff]
        %v742 = vld [vmem:[%s1 + $0x5b0] sm:$0xff]
        %v743 = vld [vmem:[%s1 + $0x5b8] sm:$0xff]
        %v744 = vld [vmem:[%s1 + $0x5c0] sm:$0xff]
        %v745 = vld [vmem:[%s1 + $0x5c8] sm:$0xff]
        %v746 = vld [vmem:[%s1 + $0x5d0] sm:$0xff]
        %v747 = vld [vmem:[%s1 + $0x5d8] sm:$0xff]
        %v748 = vld [vmem:[%s1 + $0x5e0] sm:$0xff]
        %v749 = vld [vmem:[%s1 + $0x5e8] sm:$0xff]
        %v750 = vld [vmem:[%s1 + $0x5f0] sm:$0xff]
        %v751 = vld [vmem:[%s1 + $0x5f8] sm:$0xff]
        %v752 = vld [vmem:[%s1 + $0x600] sm:$0xff]
        %v753 = vld [vmem:[%s1 + $0x608] sm:$0xff]
        %v754 = vld [vmem:[%s1 + $0x610] sm:$0xff]
        %v755 = vld [vmem:[%s1 + $0x618] sm:$0xff]
        %v756 = vld [vmem:[%s2] sm:$0xf]
        %v758 = vperm.slane %v756, 0
        %v759 = vperm.slane %v756, 1
        %v760 = vperm.slane %v756, 2
        %v761 = vperm.slane %v756, 3
        %v962 = vunpack.c.l.b16 %v560
        %v963 = vunpack.c.h.b16 %v560
        %v964 = vunpack.c.l.b16 %v561
        %v965 = vunpack.c.h.b16 %v561
        %v966 = vunpack.c.l.b16 %v562
        %v967 = vunpack.c.h.b16 %v562
        %v968 = vunpack.c.l.b16 %v563
        %v969 = vunpack.c.h.b16 %v563
        %v970 = vunpack.c.l.b16 %v564
        %v971 = vunpack.c.h.b16 %v564
        %v972 = vunpack.c.l.b16 %v565
        %v973 = vunpack.c.h.b16 %v565
        %v974 = vunpack.c.l.b16 %v566
        %v975 = vunpack.c.h.b16 %v566
        %v976 = vunpack.c.l.b16 %v567
        %v977 = vunpack.c.h.b16 %v567
        %v978 = vunpack.c.l.b16 %v568
        %v979 = vunpack.c.h.b16 %v568
        %v980 = vunpack.c.l.b16 %v569
        %v981 = vunpack.c.h.b16 %v569
        %v982 = vunpack.c.l.b16 %v570
        %v983 = vunpack.c.h.b16 %v570
        %v984 = vunpack.c.l.b16 %v571
        %v985 = vunpack.c.h.b16 %v571
        %v986 = vunpack.c.l.b16 %v572
        %v987 = vunpack.c.h.b16 %v572
        %v988 = vunpack.c.l.b16 %v573
        %v989 = vunpack.c.h.b16 %v573
        %v990 = vunpack.c.l.b16 %v574
        %v991 = vunpack.c.h.b16 %v574
        %v992 = vunpack.c.l.b16 %v575
        %v993 = vunpack.c.h.b16 %v575
        %v994 = vunpack.c.l.b16 %v576
        %v995 = vunpack.c.h.b16 %v576
        %v996 = vunpack.c.l.b16 %v577
        %v997 = vunpack.c.h.b16 %v577
        %v998 = vunpack.c.l.b16 %v578
        %v999 = vunpack.c.h.b16 %v578
        %v1000 = vunpack.c.l.b16 %v579
        %v1001 = vunpack.c.h.b16 %v579
        %v1002 = vunpack.c.l.b16 %v580
        %v1003 = vunpack.c.h.b16 %v580
        %v1004 = vunpack.c.l.b16 %v581
        %v1005 = vunpack.c.h.b16 %v581
        %v1006 = vunpack.c.l.b16 %v582
        %v1007 = vunpack.c.h.b16 %v582
        %v1008 = vunpack.c.l.b16 %v583
        %v1009 = vunpack.c.h.b16 %v583
        %v1010 = vunpack.c.l.b16 %v584
        %v1011 = vunpack.c.h.b16 %v584
        %v1012 = vunpack.c.l.b16 %v585
        %v1013 = vunpack.c.h.b16 %v585
        %v1014 = vunpack.c.l.b16 %v586
        %v1015 = vunpack.c.h.b16 %v586
        %v1016 = vunpack.c.l.b16 %v587
        %v1017 = vunpack.c.h.b16 %v587
        %v1018 = vunpack.c.l.b16 %v588
        %v1019 = vunpack.c.h.b16 %v588
        %v1020 = vunpack.c.l.b16 %v589
        %v1021 = vunpack.c.h.b16 %v589
        %v1022 = vunpack.c.l.b16 %v590
        %v1023 = vunpack.c.h.b16 %v590
        %v1024 = vunpack.c.l.b16 %v591
        %v1025 = vunpack.c.h.b16 %v591
        %v1026 = vunpack.c.l.b16 %v592
        %v1027 = vunpack.c.h.b16 %v592
        %v1028 = vunpack.c.l.b16 %v593
        %v1029 = vunpack.c.h.b16 %v593
        %v1030 = vunpack.c.l.b16 %v594
        %v1031 = vunpack.c.h.b16 %v594
        %v1032 = vunpack.c.l.b16 %v595
        %v1033 = vunpack.c.h.b16 %v595
        %v1034 = vunpack.c.l.b16 %v596
        %v1035 = vunpack.c.h.b16 %v596
        %v1036 = vunpack.c.l.b16 %v597
        %v1037 = vunpack.c.h.b16 %v597
        %v1038 = vunpack.c.l.b16 %v598
        %v1039 = vunpack.c.h.b16 %v598
        %v1040 = vunpack.c.l.b16 %v599
        %v1041 = vunpack.c.h.b16 %v599
        %v1042 = vunpack.c.l.b16 %v600
        %v1043 = vunpack.c.h.b16 %v600
        %v1044 = vunpack.c.l.b16 %v601
        %v1045 = vunpack.c.h.b16 %v601
        %v1046 = vunpack.c.l.b16 %v602
        %v1047 = vunpack.c.h.b16 %v602
        %v1048 = vunpack.c.l.b16 %v603
        %v1049 = vunpack.c.h.b16 %v603
        %v1050 = vunpack.c.l.b16 %v604
        %v1051 = vunpack.c.h.b16 %v604
        %v1052 = vunpack.c.l.b16 %v605
        %v1053 = vunpack.c.h.b16 %v605
        %v1054 = vunpack.c.l.b16 %v606
        %v1055 = vunpack.c.h.b16 %v606
        %v1056 = vunpack.c.l.b16 %v607
        %v1057 = vunpack.c.h.b16 %v607
        %v1058 = vunpack.c.l.b16 %v608
        %v1059 = vunpack.c.h.b16 %v608
        %v1060 = vunpack.c.l.b16 %v609
        %v1061 = vunpack.c.h.b16 %v609
        %v1062 = vunpack.c.l.b16 %v610
        %v1063 = vunpack.c.h.b16 %v610
        %v1064 = vunpack.c.l.b16 %v611
        %v1065 = vunpack.c.h.b16 %v611
        %v1066 = vunpack.c.l.b16 %v612
        %v1067 = vunpack.c.h.b16 %v612
        %v1068 = vunpack.c.l.b16 %v613
        %v1069 = vunpack.c.h.b16 %v613
        %v1070 = vunpack.c.l.b16 %v614
        %v1071 = vunpack.c.h.b16 %v614
        %v1072 = vunpack.c.l.b16 %v615
        %v1073 = vunpack.c.h.b16 %v615
        %v1074 = vunpack.c.l.b16 %v616
        %v1075 = vunpack.c.h.b16 %v616
        %v1076 = vunpack.c.l.b16 %v617
        %v1077 = vunpack.c.h.b16 %v617
        %v1078 = vunpack.c.l.b16 %v618
        %v1079 = vunpack.c.h.b16 %v618
        %v1080 = vunpack.c.l.b16 %v619
        %v1081 = vunpack.c.h.b16 %v619
        %v1082 = vunpack.c.l.b16 %v620
        %v1083 = vunpack.c.h.b16 %v620
        %v1084 = vunpack.c.l.b16 %v621
        %v1085 = vunpack.c.h.b16 %v621
        %v1086 = vunpack.c.l.b16 %v622
        %v1087 = vunpack.c.h.b16 %v622
        %v1088 = vunpack.c.l.b16 %v623
        %v1089 = vunpack.c.h.b16 %v623
        %v1090 = vunpack.c.l.b16 %v624
        %v1091 = vunpack.c.h.b16 %v624
        %v1092 = vunpack.c.l.b16 %v625
        %v1093 = vunpack.c.h.b16 %v625
        %v1094 = vunpack.c.l.b16 %v626
        %v1095 = vunpack.c.h.b16 %v626
        %v1096 = vunpack.c.l.b16 %v627
        %v1097 = vunpack.c.h.b16 %v627
        %v1098 = vunpack.c.l.b16 %v628
        %v1099 = vunpack.c.h.b16 %v628
        %v1100 = vunpack.c.l.b16 %v629
        %v1101 = vunpack.c.h.b16 %v629
        %v1102 = vunpack.c.l.b16 %v630
        %v1103 = vunpack.c.h.b16 %v630
        %v1104 = vunpack.c.l.b16 %v631
        %v1105 = vunpack.c.h.b16 %v631
        %v1106 = vunpack.c.l.b16 %v632
        %v1107 = vunpack.c.h.b16 %v632
        %v1108 = vunpack.c.l.b16 %v633
        %v1109 = vunpack.c.h.b16 %v633
        %v1110 = vunpack.c.l.b16 %v634
        %v1111 = vunpack.c.h.b16 %v634
        %v1112 = vunpack.c.l.b16 %v635
        %v1113 = vunpack.c.h.b16 %v635
        %v1114 = vunpack.c.l.b16 %v636
        %v1115 = vunpack.c.h.b16 %v636
        %v1116 = vunpack.c.l.b16 %v637
        %v1117 = vunpack.c.h.b16 %v637
        %v1118 = vunpack.c.l.b16 %v638
        %v1119 = vunpack.c.h.b16 %v638
        %v1120 = vunpack.c.l.b16 %v639
        %v1121 = vunpack.c.h.b16 %v639
        %v1122 = vunpack.c.l.b16 %v640
        %v1123 = vunpack.c.h.b16 %v640
        %v1124 = vunpack.c.l.b16 %v641
        %v1125 = vunpack.c.h.b16 %v641
        %v1126 = vunpack.c.l.b16 %v642
        %v1127 = vunpack.c.h.b16 %v642
        %v1128 = vunpack.c.l.b16 %v643
        %v1129 = vunpack.c.h.b16 %v643
        %v1130 = vunpack.c.l.b16 %v644
        %v1131 = vunpack.c.h.b16 %v644
        %v1132 = vunpack.c.l.b16 %v645
        %v1133 = vunpack.c.h.b16 %v645
        %v1134 = vunpack.c.l.b16 %v646
        %v1135 = vunpack.c.h.b16 %v646
        %v1136 = vunpack.c.l.b16 %v647
        %v1137 = vunpack.c.h.b16 %v647
        %v1138 = vunpack.c.l.b16 %v648
        %v1139 = vunpack.c.h.b16 %v648
        %v1140 = vunpack.c.l.b16 %v649
        %v1141 = vunpack.c.h.b16 %v649
        %v1142 = vunpack.c.l.b16 %v650
        %v1143 = vunpack.c.h.b16 %v650
        %v1144 = vunpack.c.l.b16 %v651
        %v1145 = vunpack.c.h.b16 %v651
        %v1146 = vunpack.c.l.b16 %v652
        %v1147 = vunpack.c.h.b16 %v652
        %v1148 = vunpack.c.l.b16 %v653
        %v1149 = vunpack.c.h.b16 %v653
        %v1150 = vunpack.c.l.b16 %v654
        %v1151 = vunpack.c.h.b16 %v654
        %v1152 = vunpack.c.l.b16 %v655
        %v1153 = vunpack.c.h.b16 %v655
        %v1154 = vunpack.c.l.b16 %v656
        %v1155 = vunpack.c.h.b16 %v656
        %v1156 = vunpack.c.l.b16 %v657
        %v1157 = vunpack.c.h.b16 %v657
        %v1158 = vunpack.c.l.b16 %v658
        %v1159 = vunpack.c.h.b16 %v658
        %v1160 = vunpack.c.l.b16 %v659
        %v1161 = vunpack.c.h.b16 %v659
        %v1162 = vunpack.c.l.b16 %v660
        %v1163 = vunpack.c.h.b16 %v660
        %v1164 = vunpack.c.l.b16 %v661
        %v1165 = vunpack.c.h.b16 %v661
        %v1166 = vunpack.c.l.b16 %v662
        %v1167 = vunpack.c.h.b16 %v662
        %v1168 = vunpack.c.l.b16 %v663
        %v1169 = vunpack.c.h.b16 %v663
        %v1170 = vunpack.c.l.b16 %v664
        %v1171 = vunpack.c.h.b16 %v664
        %v1172 = vunpack.c.l.b16 %v665
        %v1173 = vunpack.c.h.b16 %v665
        %v1174 = vunpack.c.l.b16 %v666
        %v1175 = vunpack.c.h.b16 %v666
        %v1176 = vunpack.c.l.b16 %v667
        %v1177 = vunpack.c.h.b16 %v667
        %v1178 = vunpack.c.l.b16 %v668
        %v1179 = vunpack.c.h.b16 %v668
        %v1180 = vunpack.c.l.b16 %v669
        %v1181 = vunpack.c.h.b16 %v669
        %v1182 = vunpack.c.l.b16 %v670
        %v1183 = vunpack.c.h.b16 %v670
        %v1184 = vunpack.c.l.b16 %v671
        %v1185 = vunpack.c.h.b16 %v671
        %v1186 = vunpack.c.l.b16 %v672
        %v1187 = vunpack.c.h.b16 %v672
        %v1188 = vunpack.c.l.b16 %v673
        %v1189 = vunpack.c.h.b16 %v673
        %v1190 = vunpack.c.l.b16 %v674
        %v1191 = vunpack.c.h.b16 %v674
        %v1192 = vunpack.c.l.b16 %v675
        %v1193 = vunpack.c.h.b16 %v675
        %v1194 = vunpack.c.l.b16 %v676
        %v1195 = vunpack.c.h.b16 %v676
        %v1196 = vunpack.c.l.b16 %v677
        %v1197 = vunpack.c.h.b16 %v677
        %v1198 = vunpack.c.l.b16 %v678
        %v1199 = vunpack.c.h.b16 %v678
        %v1200 = vunpack.c.l.b16 %v679
        %v1201 = vunpack.c.h.b16 %v679
        %v1202 = vunpack.c.l.b16 %v680
        %v1203 = vunpack.c.h.b16 %v680
        %v1204 = vunpack.c.l.b16 %v681
        %v1205 = vunpack.c.h.b16 %v681
        %v1206 = vunpack.c.l.b16 %v682
        %v1207 = vunpack.c.h.b16 %v682
        %v1208 = vunpack.c.l.b16 %v683
        %v1209 = vunpack.c.h.b16 %v683
        %v1210 = vunpack.c.l.b16 %v684
        %v1211 = vunpack.c.h.b16 %v684
        %v1212 = vunpack.c.l.b16 %v685
        %v1213 = vunpack.c.h.b16 %v685
        %v1214 = vunpack.c.l.b16 %v686
        %v1215 = vunpack.c.h.b16 %v686
        %v1216 = vunpack.c.l.b16 %v687
        %v1217 = vunpack.c.h.b16 %v687
        %v1218 = vunpack.c.l.b16 %v688
        %v1219 = vunpack.c.h.b16 %v688
        %v1220 = vunpack.c.l.b16 %v689
        %v1221 = vunpack.c.h.b16 %v689
        %v1222 = vunpack.c.l.b16 %v690
        %v1223 = vunpack.c.h.b16 %v690
        %v1224 = vunpack.c.l.b16 %v691
        %v1225 = vunpack.c.h.b16 %v691
        %v1226 = vunpack.c.l.b16 %v692
        %v1227 = vunpack.c.h.b16 %v692
        %v1228 = vunpack.c.l.b16 %v693
        %v1229 = vunpack.c.h.b16 %v693
        %v1230 = vunpack.c.l.b16 %v694
        %v1231 = vunpack.c.h.b16 %v694
        %v1232 = vunpack.c.l.b16 %v695
        %v1233 = vunpack.c.h.b16 %v695
        %v1234 = vunpack.c.l.b16 %v696
        %v1235 = vunpack.c.h.b16 %v696
        %v1236 = vunpack.c.l.b16 %v697
        %v1237 = vunpack.c.h.b16 %v697
        %v1238 = vunpack.c.l.b16 %v698
        %v1239 = vunpack.c.h.b16 %v698
        %v1240 = vunpack.c.l.b16 %v699
        %v1241 = vunpack.c.h.b16 %v699
        %v1242 = vunpack.c.l.b16 %v700
        %v1243 = vunpack.c.h.b16 %v700
        %v1244 = vunpack.c.l.b16 %v701
        %v1245 = vunpack.c.h.b16 %v701
        %v1246 = vunpack.c.l.b16 %v702
        %v1247 = vunpack.c.h.b16 %v702
        %v1248 = vunpack.c.l.b16 %v703
        %v1249 = vunpack.c.h.b16 %v703
        %v1250 = vunpack.c.l.b16 %v704
        %v1251 = vunpack.c.h.b16 %v704
        %v1252 = vunpack.c.l.b16 %v705
        %v1253 = vunpack.c.h.b16 %v705
        %v1254 = vunpack.c.l.b16 %v706
        %v1255 = vunpack.c.h.b16 %v706
        %v1256 = vunpack.c.l.b16 %v707
        %v1257 = vunpack.c.h.b16 %v707
        %v1258 = vunpack.c.l.b16 %v708
        %v1259 = vunpack.c.h.b16 %v708
        %v1260 = vunpack.c.l.b16 %v709
        %v1261 = vunpack.c.h.b16 %v709
        %v1262 = vunpack.c.l.b16 %v710
        %v1263 = vunpack.c.h.b16 %v710
        %v1264 = vunpack.c.l.b16 %v711
        %v1265 = vunpack.c.h.b16 %v711
        %v1266 = vunpack.c.l.b16 %v712
        %v1267 = vunpack.c.h.b16 %v712
        %v1268 = vunpack.c.l.b16 %v713
        %v1269 = vunpack.c.h.b16 %v713
        %v1270 = vunpack.c.l.b16 %v714
        %v1271 = vunpack.c.h.b16 %v714
        %v1272 = vunpack.c.l.b16 %v715
        %v1273 = vunpack.c.h.b16 %v715
        %v1274 = vunpack.c.l.b16 %v716
        %v1275 = vunpack.c.h.b16 %v716
        %v1276 = vunpack.c.l.b16 %v717
        %v1277 = vunpack.c.h.b16 %v717
        %v1278 = vunpack.c.l.b16 %v718
        %v1279 = vunpack.c.h.b16 %v718
        %v1280 = vunpack.c.l.b16 %v719
        %v1281 = vunpack.c.h.b16 %v719
        %v1282 = vunpack.c.l.b16 %v720
        %v1283 = vunpack.c.h.b16 %v720
        %v1284 = vunpack.c.l.b16 %v721
        %v1285 = vunpack.c.h.b16 %v721
        %v1286 = vunpack.c.l.b16 %v722
        %v1287 = vunpack.c.h.b16 %v722
        %v1288 = vunpack.c.l.b16 %v723
        %v1289 = vunpack.c.h.b16 %v723
        %v1290 = vunpack.c.l.b16 %v724
        %v1291 = vunpack.c.h.b16 %v724
        %v1292 = vunpack.c.l.b16 %v725
        %v1293 = vunpack.c.h.b16 %v725
        %v1294 = vunpack.c.l.b16 %v726
        %v1295 = vunpack.c.h.b16 %v726
        %v1296 = vunpack.c.l.b16 %v727
        %v1297 = vunpack.c.h.b16 %v727
        %v1298 = vunpack.c.l.b16 %v728
        %v1299 = vunpack.c.h.b16 %v728
        %v1300 = vunpack.c.l.b16 %v729
        %v1301 = vunpack.c.h.b16 %v729
        %v1302 = vunpack.c.l.b16 %v730
        %v1303 = vunpack.c.h.b16 %v730
        %v1304 = vunpack.c.l.b16 %v731
        %v1305 = vunpack.c.h.b16 %v731
        %v1306 = vunpack.c.l.b16 %v732
        %v1307 = vunpack.c.h.b16 %v732
        %v1308 = vunpack.c.l.b16 %v733
        %v1309 = vunpack.c.h.b16 %v733
        %v1310 = vunpack.c.l.b16 %v734
        %v1311 = vunpack.c.h.b16 %v734
        %v1312 = vunpack.c.l.b16 %v735
        %v1313 = vunpack.c.h.b16 %v735
        %v1314 = vunpack.c.l.b16 %v736
        %v1315 = vunpack.c.h.b16 %v736
        %v1316 = vunpack.c.l.b16 %v737
        %v1317 = vunpack.c.h.b16 %v737
        %v1318 = vunpack.c.l.b16 %v738
        %v1319 = vunpack.c.h.b16 %v738
        %v1320 = vunpack.c.l.b16 %v739
        %v1321 = vunpack.c.h.b16 %v739
        %v1322 = vunpack.c.l.b16 %v740
        %v1323 = vunpack.c.h.b16 %v740
        %v1324 = vunpack.c.l.b16 %v741
        %v1325 = vunpack.c.h.b16 %v741
        %v1326 = vunpack.c.l.b16 %v742
        %v1327 = vunpack.c.h.b16 %v742
        %v1328 = vunpack.c.l.b16 %v743
        %v1329 = vunpack.c.h.b16 %v743
        %v1330 = vunpack.c.l.b16 %v744
        %v1331 = vunpack.c.h.b16 %v744
        %v1332 = vunpack.c.l.b16 %v745
        %v1333 = vunpack.c.h.b16 %v745
        %v1334 = vunpack.c.l.b16 %v746
        %v1335 = vunpack.c.h.b16 %v746
        %v1336 = vunpack.c.l.b16 %v747
        %v1337 = vunpack.c.h.b16 %v747
        %v1338 = vunpack.c.l.b16 %v748
        %v1339 = vunpack.c.h.b16 %v748
        %v1340 = vunpack.c.l.b16 %v749
        %v1341 = vunpack.c.h.b16 %v749
        %v1342 = vunpack.c.l.b16 %v750
        %v1343 = vunpack.c.h.b16 %v750
        %v1344 = vunpack.c.l.b16 %v751
        %v1345 = vunpack.c.h.b16 %v751
        %v1346 = vunpack.c.l.b16 %v752
        %v1347 = vunpack.c.h.b16 %v752
        %v1348 = vunpack.c.l.b16 %v753
        %v1349 = vunpack.c.h.b16 %v753
        %v1350 = vunpack.c.l.b16 %v754
        %v1351 = vunpack.c.h.b16 %v754
        %v1352 = vunpack.c.l.b16 %v755
        %v1353 = vunpack.c.h.b16 %v755
        %v1354 = vpack.c.b16 %v966, %v962
        %v1355 = vpack.c.b16 %v967, %v963
        %v1356 = vpack.c.b16 %v968, %v964
        %v1357 = vpack.c.b16 %v969, %v965
        %v1358 = vpack.c.b16 %v974, %v970
        %v1359 = vpack.c.b16 %v975, %v971
        %v1360 = vpack.c.b16 %v976, %v972
        %v1361 = vpack.c.b16 %v977, %v973
        %v1362 = vpack.c.b16 %v982, %v978
        %v1363 = vpack.c.b16 %v983, %v979
        %v1364 = vpack.c.b16 %v984, %v980
        %v1365 = vpack.c.b16 %v985, %v981
        %v1366 = vpack.c.b16 %v990, %v986
        %v1367 = vpack.c.b16 %v991, %v987
        %v1368 = vpack.c.b16 %v992, %v988
        %v1369 = vpack.c.b16 %v993, %v989
        %v1370 = vpack.c.b16 %v998, %v994
        %v1371 = vpack.c.b16 %v999, %v995
        %v1372 = vpack.c.b16 %v1000, %v996
        %v1373 = vpack.c.b16 %v1001, %v997
        %v1374 = vpack.c.b16 %v1006, %v1002
        %v1375 = vpack.c.b16 %v1007, %v1003
        %v1376 = vpack.c.b16 %v1008, %v1004
        %v1377 = vpack.c.b16 %v1009, %v1005
        %v1378 = vpack.c.b16 %v1014, %v1010
        %v1379 = vpack.c.b16 %v1015, %v1011
        %v1380 = vpack.c.b16 %v1016, %v1012
        %v1381 = vpack.c.b16 %v1017, %v1013
        %v1382 = vpack.c.b16 %v1022, %v1018
        %v1383 = vpack.c.b16 %v1023, %v1019
        %v1384 = vpack.c.b16 %v1024, %v1020
        %v1385 = vpack.c.b16 %v1025, %v1021
        %v1386 = vpack.c.b16 %v1030, %v1026
        %v1387 = vpack.c.b16 %v1031, %v1027
        %v1388 = vpack.c.b16 %v1032, %v1028
        %v1389 = vpack.c.b16 %v1033, %v1029
        %v1390 = vpack.c.b16 %v1038, %v1034
        %v1391 = vpack.c.b16 %v1039, %v1035
        %v1392 = vpack.c.b16 %v1040, %v1036
        %v1393 = vpack.c.b16 %v1041, %v1037
        %v1394 = vpack.c.b16 %v1046, %v1042
        %v1395 = vpack.c.b16 %v1047, %v1043
        %v1396 = vpack.c.b16 %v1048, %v1044
        %v1397 = vpack.c.b16 %v1049, %v1045
        %v1398 = vpack.c.b16 %v1054, %v1050
        %v1399 = vpack.c.b16 %v1055, %v1051
        %v1400 = vpack.c.b16 %v1056, %v1052
        %v1401 = vpack.c.b16 %v1057, %v1053
        %v1402 = vpack.c.b16 %v1062, %v1058
        %v1403 = vpack.c.b16 %v1063, %v1059
        %v1404 = vpack.c.b16 %v1064, %v1060
        %v1405 = vpack.c.b16 %v1065, %v1061
        %v1406 = vpack.c.b16 %v1070, %v1066
        %v1407 = vpack.c.b16 %v1071, %v1067
        %v1408 = vpack.c.b16 %v1072, %v1068
        %v1409 = vpack.c.b16 %v1073, %v1069
        %v1410 = vpack.c.b16 %v1078, %v1074
        %v1411 = vpack.c.b16 %v1079, %v1075
        %v1412 = vpack.c.b16 %v1080, %v1076
        %v1413 = vpack.c.b16 %v1081, %v1077
        %v1414 = vpack.c.b16 %v1086, %v1082
        %v1415 = vpack.c.b16 %v1087, %v1083
        %v1416 = vpack.c.b16 %v1088, %v1084
        %v1417 = vpack.c.b16 %v1089, %v1085
        %v1418 = vpack.c.b16 %v1094, %v1090
        %v1419 = vpack.c.b16 %v1095, %v1091
        %v1420 = vpack.c.b16 %v1096, %v1092
        %v1421 = vpack.c.b16 %v1097, %v1093
        %v1422 = vpack.c.b16 %v1102, %v1098
        %v1423 = vpack.c.b16 %v1103, %v1099
        %v1424 = vpack.c.b16 %v1104, %v1100
        %v1425 = vpack.c.b16 %v1105, %v1101
        %v1426 = vpack.c.b16 %v1110, %v1106
        %v1427 = vpack.c.b16 %v1111, %v1107
        %v1428 = vpack.c.b16 %v1112, %v1108
        %v1429 = vpack.c.b16 %v1113, %v1109
        %v1430 = vpack.c.b16 %v1118, %v1114
        %v1431 = vpack.c.b16 %v1119, %v1115
        %v1432 = vpack.c.b16 %v1120, %v1116
        %v1433 = vpack.c.b16 %v1121, %v1117
        %v1434 = vpack.c.b16 %v1126, %v1122
        %v1435 = vpack.c.b16 %v1127, %v1123
        %v1436 = vpack.c.b16 %v1128, %v1124
        %v1437 = vpack.c.b16 %v1129, %v1125
        %v1438 = vpack.c.b16 %v1134, %v1130
        %v1439 = vpack.c.b16 %v1135, %v1131
        %v1440 = vpack.c.b16 %v1136, %v1132
        %v1441 = vpack.c.b16 %v1137, %v1133
        %v1442 = vpack.c.b16 %v1142, %v1138
        %v1443 = vpack.c.b16 %v1143, %v1139
        %v1444 = vpack.c.b16 %v1144, %v1140
        %v1445 = vpack.c.b16 %v1145, %v1141
        %v1446 = vpack.c.b16 %v1150, %v1146
        %v1447 = vpack.c.b16 %v1151, %v1147
        %v1448 = vpack.c.b16 %v1152, %v1148
        %v1449 = vpack.c.b16 %v1153, %v1149
        %v1450 = vpack.c.b16 %v1158, %v1154
        %v1451 = vpack.c.b16 %v1159, %v1155
        %v1452 = vpack.c.b16 %v1160, %v1156
        %v1453 = vpack.c.b16 %v1161, %v1157
        %v1454 = vpack.c.b16 %v1166, %v1162
        %v1455 = vpack.c.b16 %v1167, %v1163
        %v1456 = vpack.c.b16 %v1168, %v1164
        %v1457 = vpack.c.b16 %v1169, %v1165
        %v1458 = vpack.c.b16 %v1174, %v1170
        %v1459 = vpack.c.b16 %v1175, %v1171
        %v1460 = vpack.c.b16 %v1176, %v1172
        %v1461 = vpack.c.b16 %v1177, %v1173
        %v1462 = vpack.c.b16 %v1182, %v1178
        %v1463 = vpack.c.b16 %v1183, %v1179
        %v1464 = vpack.c.b16 %v1184, %v1180
        %v1465 = vpack.c.b16 %v1185, %v1181
        %v1466 = vpack.c.b16 %v1190, %v1186
        %v1467 = vpack.c.b16 %v1191, %v1187
        %v1468 = vpack.c.b16 %v1192, %v1188
        %v1469 = vpack.c.b16 %v1193, %v1189
        %v1470 = vpack.c.b16 %v1198, %v1194
        %v1471 = vpack.c.b16 %v1199, %v1195
        %v1472 = vpack.c.b16 %v1200, %v1196
        %v1473 = vpack.c.b16 %v1201, %v1197
        %v1474 = vpack.c.b16 %v1206, %v1202
        %v1475 = vpack.c.b16 %v1207, %v1203
        %v1476 = vpack.c.b16 %v1208, %v1204
        %v1477 = vpack.c.b16 %v1209, %v1205
        %v1478 = vpack.c.b16 %v1214, %v1210
        %v1479 = vpack.c.b16 %v1215, %v1211
        %v1480 = vpack.c.b16 %v1216, %v1212
        %v1481 = vpack.c.b16 %v1217, %v1213
        %v1482 = vpack.c.b16 %v1222, %v1218
        %v1483 = vpack.c.b16 %v1223, %v1219
        %v1484 = vpack.c.b16 %v1224, %v1220
        %v1485 = vpack.c.b16 %v1225, %v1221
        %v1486 = vpack.c.b16 %v1230, %v1226
        %v1487 = vpack.c.b16 %v1231, %v1227
        %v1488 = vpack.c.b16 %v1232, %v1228
        %v1489 = vpack.c.b16 %v1233, %v1229
        %v1490 = vpack.c.b16 %v1238, %v1234
        %v1491 = vpack.c.b16 %v1239, %v1235
        %v1492 = vpack.c.b16 %v1240, %v1236
        %v1493 = vpack.c.b16 %v1241, %v1237
        %v1494 = vpack.c.b16 %v1246, %v1242
        %v1495 = vpack.c.b16 %v1247, %v1243
        %v1496 = vpack.c.b16 %v1248, %v1244
        %v1497 = vpack.c.b16 %v1249, %v1245
        %v1498 = vpack.c.b16 %v1254, %v1250
        %v1499 = vpack.c.b16 %v1255, %v1251
        %v1500 = vpack.c.b16 %v1256, %v1252
        %v1501 = vpack.c.b16 %v1257, %v1253
        %v1502 = vpack.c.b16 %v1262, %v1258
        %v1503 = vpack.c.b16 %v1263, %v1259
        %v1504 = vpack.c.b16 %v1264, %v1260
        %v1505 = vpack.c.b16 %v1265, %v1261
        %v1506 = vpack.c.b16 %v1270, %v1266
        %v1507 = vpack.c.b16 %v1271, %v1267
        %v1508 = vpack.c.b16 %v1272, %v1268
        %v1509 = vpack.c.b16 %v1273, %v1269
        %v1510 = vpack.c.b16 %v1278, %v1274
        %v1511 = vpack.c.b16 %v1279, %v1275
        %v1512 = vpack.c.b16 %v1280, %v1276
        %v1513 = vpack.c.b16 %v1281, %v1277
        %v1514 = vpack.c.b16 %v1286, %v1282
        %v1515 = vpack.c.b16 %v1287, %v1283
        %v1516 = vpack.c.b16 %v1288, %v1284
        %v1517 = vpack.c.b16 %v1289, %v1285
        %v1518 = vpack.c.b16 %v1294, %v1290
        %v1519 = vpack.c.b16 %v1295, %v1291
        %v1520 = vpack.c.b16 %v1296, %v1292
        %v1521 = vpack.c.b16 %v1297, %v1293
        %v1522 = vpack.c.b16 %v1302, %v1298
        %v1523 = vpack.c.b16 %v1303, %v1299
        %v1524 = vpack.c.b16 %v1304, %v1300
        %v1525 = vpack.c.b16 %v1305, %v1301
        %v1526 = vpack.c.b16 %v1310, %v1306
        %v1527 = vpack.c.b16 %v1311, %v1307
        %v1528 = vpack.c.b16 %v1312, %v1308
        %v1529 = vpack.c.b16 %v1313, %v1309
        %v1530 = vpack.c.b16 %v1318, %v1314
        %v1531 = vpack.c.b16 %v1319, %v1315
        %v1532 = vpack.c.b16 %v1320, %v1316
        %v1533 = vpack.c.b16 %v1321, %v1317
        %v1534 = vpack.c.b16 %v1326, %v1322
        %v1535 = vpack.c.b16 %v1327, %v1323
        %v1536 = vpack.c.b16 %v1328, %v1324
        %v1537 = vpack.c.b16 %v1329, %v1325
        %v1538 = vpack.c.b16 %v1334, %v1330
        %v1539 = vpack.c.b16 %v1335, %v1331
        %v1540 = vpack.c.b16 %v1336, %v1332
        %v1541 = vpack.c.b16 %v1337, %v1333
        %v1542 = vpack.c.b16 %v1342, %v1338
        %v1543 = vpack.c.b16 %v1343, %v1339
        %v1544 = vpack.c.b16 %v1344, %v1340
        %v1545 = vpack.c.b16 %v1345, %v1341
        %v1546 = vpack.c.b16 %v1350, %v1346
        %v1547 = vpack.c.b16 %v1351, %v1347
        %v1548 = vpack.c.b16 %v1352, %v1348
        %v1549 = vpack.c.b16 %v1353, %v1349
        %vm1746 = vcmask 130048
        %v1748 = vsel %vm1746, %v510, 0
        %v1751 = vsel %vm1746, %v517, 0
        %v1754 = vsel %vm1746, %v524, 0
        %v1757 = vsel %vm1746, %v531, 0
        %v1760 = vsel %vm1746, %v538, 0
        %v1763 = vsel %vm1746, %v545, 0
        %v1766 = vsel %vm1746, %v552, 0
        %v1769 = vsel %vm1746, %v559, 0
        %1771 = vmatpush.bf16.msra.mxu0 %v1382
        %1772 = vmatpush.bf16.msra.mxu0 %v1378
        %1773 = vmatpush.bf16.msra.mxu0 %v1374
        %1774 = vmatpush.bf16.msra.mxu0 %v1370
        %1775 = vmatpush.bf16.msra.mxu0 %v1366
        %1776 = vmatpush.bf16.msra.mxu0 %v1362
        %1777 = vmatpush.bf16.msra.mxu0 %v1358
        %1778 = vmatpush.bf16.msra.mxu0 %v1354
        %1779 = vmatmul.bf16.gmra.mxu0 %v504
        %v1780 = vpop.f32.mrf.mxu0
        %v1781 = vadd.f32 %v758, %v1780
        %v1782 = vpop.f32.mrf.mxu0
        %v1783 = vadd.f32 %v758, %v1782
        %1784 = vmatmul.bf16.gmra.mxu0 %v511
        %v1785 = vpop.f32.mrf.mxu0
        %v1786 = vadd.f32 %v758, %v1785
        %v1787 = vpop.f32.mrf.mxu0
        %v1788 = vadd.f32 %v758, %v1787
        %1789 = vmatmul.bf16.gmra.mxu0 %v518
        %v1790 = vpop.f32.mrf.mxu0
        %v1791 = vadd.f32 %v758, %v1790
        %v1792 = vpop.f32.mrf.mxu0
        %v1793 = vadd.f32 %v758, %v1792
        %1794 = vmatmul.bf16.gmra.mxu0 %v525
        %v1795 = vpop.f32.mrf.mxu0
        %v1796 = vadd.f32 %v758, %v1795
        %v1797 = vpop.f32.mrf.mxu0
        %v1798 = vadd.f32 %v758, %v1797
        %1799 = vmatmul.bf16.gmra.mxu0 %v532
        %v1800 = vpop.f32.mrf.mxu0
        %v1801 = vadd.f32 %v758, %v1800
        %v1802 = vpop.f32.mrf.mxu0
        %v1803 = vadd.f32 %v758, %v1802
        %1804 = vmatmul.bf16.gmra.mxu0 %v539
        %v1805 = vpop.f32.mrf.mxu0
        %v1806 = vadd.f32 %v758, %v1805
        %v1807 = vpop.f32.mrf.mxu0
        %v1808 = vadd.f32 %v758, %v1807
        %1809 = vmatmul.bf16.gmra.mxu0 %v546
        %v1810 = vpop.f32.mrf.mxu0
        %v1811 = vadd.f32 %v758, %v1810
        %v1812 = vpop.f32.mrf.mxu0
        %v1813 = vadd.f32 %v758, %v1812
        %1814 = vmatmul.bf16.gmra.mxu0 %v553
        %v1815 = vpop.f32.mrf.mxu0
        %v1816 = vadd.f32 %v758, %v1815
        %v1817 = vpop.f32.mrf.mxu0
        %v1818 = vadd.f32 %v758, %v1817
        %1819 = vdwg.mxu0
        %1820 = vmatpush.bf16.msra.mxu0 %v1414
        %1821 = vmatpush.bf16.msra.mxu0 %v1410
        %1822 = vmatpush.bf16.msra.mxu0 %v1406
        %1823 = vmatpush.bf16.msra.mxu0 %v1402
        %1824 = vmatpush.bf16.msra.mxu0 %v1398
        %1825 = vmatpush.bf16.msra.mxu0 %v1394
        %1826 = vmatpush.bf16.msra.mxu0 %v1390
        %1827 = vmatpush.bf16.msra.mxu0 %v1386
        %1828 = vmatmul.bf16.gmra.mxu0 %v505
        %v1829 = vpop.f32.mrf.mxu0
        %v1830 = vadd.f32 %v1781, %v1829
        %v1831 = vpop.f32.mrf.mxu0
        %v1832 = vadd.f32 %v1783, %v1831
        %1833 = vmatmul.bf16.gmra.mxu0 %v512
        %v1834 = vpop.f32.mrf.mxu0
        %v1835 = vadd.f32 %v1786, %v1834
        %v1836 = vpop.f32.mrf.mxu0
        %v1837 = vadd.f32 %v1788, %v1836
        %1838 = vmatmul.bf16.gmra.mxu0 %v519
        %v1839 = vpop.f32.mrf.mxu0
        %v1840 = vadd.f32 %v1791, %v1839
        %v1841 = vpop.f32.mrf.mxu0
        %v1842 = vadd.f32 %v1793, %v1841
        %1843 = vmatmul.bf16.gmra.mxu0 %v526
        %v1844 = vpop.f32.mrf.mxu0
        %v1845 = vadd.f32 %v1796, %v1844
        %v1846 = vpop.f32.mrf.mxu0
        %v1847 = vadd.f32 %v1798, %v1846
        %1848 = vmatmul.bf16.gmra.mxu0 %v533
        %v1849 = vpop.f32.mrf.mxu0
        %v1850 = vadd.f32 %v1801, %v1849
        %v1851 = vpop.f32.mrf.mxu0
        %v1852 = vadd.f32 %v1803, %v1851
        %1853 = vmatmul.bf16.gmra.mxu0 %v540
        %v1854 = vpop.f32.mrf.mxu0
        %v1855 = vadd.f32 %v1806, %v1854
        %v1856 = vpop.f32.mrf.mxu0
        %v1857 = vadd.f32 %v1808, %v1856
        %1858 = vmatmul.bf16.gmra.mxu0 %v547
        %v1859 = vpop.f32.mrf.mxu0
        %v1860 = vadd.f32 %v1811, %v1859
        %v1861 = vpop.f32.mrf.mxu0
        %v1862 = vadd.f32 %v1813, %v1861
        %1863 = vmatmul.bf16.gmra.mxu0 %v554
        %v1864 = vpop.f32.mrf.mxu0
        %v1865 = vadd.f32 %v1816, %v1864
        %v1866 = vpop.f32.mrf.mxu0
        %v1867 = vadd.f32 %v1818, %v1866
        %1868 = vdwg.mxu0
        %1869 = vmatpush.bf16.msra.mxu0 %v1446
        %1870 = vmatpush.bf16.msra.mxu0 %v1442
        %1871 = vmatpush.bf16.msra.mxu0 %v1438
        %1872 = vmatpush.bf16.msra.mxu0 %v1434
        %1873 = vmatpush.bf16.msra.mxu0 %v1430
        %1874 = vmatpush.bf16.msra.mxu0 %v1426
        %1875 = vmatpush.bf16.msra.mxu0 %v1422
        %1876 = vmatpush.bf16.msra.mxu0 %v1418
        %1877 = vmatmul.bf16.gmra.mxu0 %v506
        %v1878 = vpop.f32.mrf.mxu0
        %v1879 = vadd.f32 %v1830, %v1878
        %v1880 = vpop.f32.mrf.mxu0
        %v1881 = vadd.f32 %v1832, %v1880
        %1882 = vmatmul.bf16.gmra.mxu0 %v513
        %v1883 = vpop.f32.mrf.mxu0
        %v1884 = vadd.f32 %v1835, %v1883
        %v1885 = vpop.f32.mrf.mxu0
        %v1886 = vadd.f32 %v1837, %v1885
        %1887 = vmatmul.bf16.gmra.mxu0 %v520
        %v1888 = vpop.f32.mrf.mxu0
        %v1889 = vadd.f32 %v1840, %v1888
        %v1890 = vpop.f32.mrf.mxu0
        %v1891 = vadd.f32 %v1842, %v1890
        %1892 = vmatmul.bf16.gmra.mxu0 %v527
        %v1893 = vpop.f32.mrf.mxu0
        %v1894 = vadd.f32 %v1845, %v1893
        %v1895 = vpop.f32.mrf.mxu0
        %v1896 = vadd.f32 %v1847, %v1895
        %1897 = vmatmul.bf16.gmra.mxu0 %v534
        %v1898 = vpop.f32.mrf.mxu0
        %v1899 = vadd.f32 %v1850, %v1898
        %v1900 = vpop.f32.mrf.mxu0
        %v1901 = vadd.f32 %v1852, %v1900
        %1902 = vmatmul.bf16.gmra.mxu0 %v541
        %v1903 = vpop.f32.mrf.mxu0
        %v1904 = vadd.f32 %v1855, %v1903
        %v1905 = vpop.f32.mrf.mxu0
        %v1906 = vadd.f32 %v1857, %v1905
        %1907 = vmatmul.bf16.gmra.mxu0 %v548
        %v1908 = vpop.f32.mrf.mxu0
        %v1909 = vadd.f32 %v1860, %v1908
        %v1910 = vpop.f32.mrf.mxu0
        %v1911 = vadd.f32 %v1862, %v1910
        %1912 = vmatmul.bf16.gmra.mxu0 %v555
        %v1913 = vpop.f32.mrf.mxu0
        %v1914 = vadd.f32 %v1865, %v1913
        %v1915 = vpop.f32.mrf.mxu0
        %v1916 = vadd.f32 %v1867, %v1915
        %1917 = vdwg.mxu0
        %1918 = vmatpush.bf16.msra.mxu0 %v1478
        %1919 = vmatpush.bf16.msra.mxu0 %v1474
        %1920 = vmatpush.bf16.msra.mxu0 %v1470
        %1921 = vmatpush.bf16.msra.mxu0 %v1466
        %1922 = vmatpush.bf16.msra.mxu0 %v1462
        %1923 = vmatpush.bf16.msra.mxu0 %v1458
        %1924 = vmatpush.bf16.msra.mxu0 %v1454
        %1925 = vmatpush.bf16.msra.mxu0 %v1450
        %1926 = vmatmul.bf16.gmra.mxu0 %v507
        %v1927 = vpop.f32.mrf.mxu0
        %v1928 = vadd.f32 %v1879, %v1927
        %v1929 = vpop.f32.mrf.mxu0
        %v1930 = vadd.f32 %v1881, %v1929
        %1931 = vmatmul.bf16.gmra.mxu0 %v514
        %v1932 = vpop.f32.mrf.mxu0
        %v1933 = vadd.f32 %v1884, %v1932
        %v1934 = vpop.f32.mrf.mxu0
        %v1935 = vadd.f32 %v1886, %v1934
        %1936 = vmatmul.bf16.gmra.mxu0 %v521
        %v1937 = vpop.f32.mrf.mxu0
        %v1938 = vadd.f32 %v1889, %v1937
        %v1939 = vpop.f32.mrf.mxu0
        %v1940 = vadd.f32 %v1891, %v1939
        %1941 = vmatmul.bf16.gmra.mxu0 %v528
        %v1942 = vpop.f32.mrf.mxu0
        %v1943 = vadd.f32 %v1894, %v1942
        %v1944 = vpop.f32.mrf.mxu0
        %v1945 = vadd.f32 %v1896, %v1944
        %1946 = vmatmul.bf16.gmra.mxu0 %v535
        %v1947 = vpop.f32.mrf.mxu0
        %v1948 = vadd.f32 %v1899, %v1947
        %v1949 = vpop.f32.mrf.mxu0
        %v1950 = vadd.f32 %v1901, %v1949
        %1951 = vmatmul.bf16.gmra.mxu0 %v542
        %v1952 = vpop.f32.mrf.mxu0
        %v1953 = vadd.f32 %v1904, %v1952
        %v1954 = vpop.f32.mrf.mxu0
        %v1955 = vadd.f32 %v1906, %v1954
        %1956 = vmatmul.bf16.gmra.mxu0 %v549
        %v1957 = vpop.f32.mrf.mxu0
        %v1958 = vadd.f32 %v1909, %v1957
        %v1959 = vpop.f32.mrf.mxu0
        %v1960 = vadd.f32 %v1911, %v1959
        %1961 = vmatmul.bf16.gmra.mxu0 %v556
        %v1962 = vpop.f32.mrf.mxu0
        %v1963 = vadd.f32 %v1914, %v1962
        %v1964 = vpop.f32.mrf.mxu0
        %v1965 = vadd.f32 %v1916, %v1964
        %1966 = vdwg.mxu0
        %1967 = vmatpush.bf16.msra.mxu0 %v1510
        %1968 = vmatpush.bf16.msra.mxu0 %v1506
        %1969 = vmatpush.bf16.msra.mxu0 %v1502
        %1970 = vmatpush.bf16.msra.mxu0 %v1498
        %1971 = vmatpush.bf16.msra.mxu0 %v1494
        %1972 = vmatpush.bf16.msra.mxu0 %v1490
        %1973 = vmatpush.bf16.msra.mxu0 %v1486
        %1974 = vmatpush.bf16.msra.mxu0 %v1482
        %1975 = vmatmul.bf16.gmra.mxu0 %v508
        %v1976 = vpop.f32.mrf.mxu0
        %v1977 = vadd.f32 %v1928, %v1976
        %v1978 = vpop.f32.mrf.mxu0
        %v1979 = vadd.f32 %v1930, %v1978
        %1980 = vmatmul.bf16.gmra.mxu0 %v515
        %v1981 = vpop.f32.mrf.mxu0
        %v1982 = vadd.f32 %v1933, %v1981
        %v1983 = vpop.f32.mrf.mxu0
        %v1984 = vadd.f32 %v1935, %v1983
        %1985 = vmatmul.bf16.gmra.mxu0 %v522
        %v1986 = vpop.f32.mrf.mxu0
        %v1987 = vadd.f32 %v1938, %v1986
        %v1988 = vpop.f32.mrf.mxu0
        %v1989 = vadd.f32 %v1940, %v1988
        %1990 = vmatmul.bf16.gmra.mxu0 %v529
        %v1991 = vpop.f32.mrf.mxu0
        %v1992 = vadd.f32 %v1943, %v1991
        %v1993 = vpop.f32.mrf.mxu0
        %v1994 = vadd.f32 %v1945, %v1993
        %1995 = vmatmul.bf16.gmra.mxu0 %v536
        %v1996 = vpop.f32.mrf.mxu0
        %v1997 = vadd.f32 %v1948, %v1996
        %v1998 = vpop.f32.mrf.mxu0
        %v1999 = vadd.f32 %v1950, %v1998
        %2000 = vmatmul.bf16.gmra.mxu0 %v543
        %v2001 = vpop.f32.mrf.mxu0
        %v2002 = vadd.f32 %v1953, %v2001
        %v2003 = vpop.f32.mrf.mxu0
        %v2004 = vadd.f32 %v1955, %v2003
        %2005 = vmatmul.bf16.gmra.mxu0 %v550
        %v2006 = vpop.f32.mrf.mxu0
        %v2007 = vadd.f32 %v1958, %v2006
        %v2008 = vpop.f32.mrf.mxu0
        %v2009 = vadd.f32 %v1960, %v2008
        %2010 = vmatmul.bf16.gmra.mxu0 %v557
        %v2011 = vpop.f32.mrf.mxu0
        %v2012 = vadd.f32 %v1963, %v2011
        %v2013 = vpop.f32.mrf.mxu0
        %v2014 = vadd.f32 %v1965, %v2013
        %2015 = vdwg.mxu0
        %2016 = vmatpush.bf16.msra.mxu0 %v1542
        %2017 = vmatpush.bf16.msra.mxu0 %v1538
        %2018 = vmatpush.bf16.msra.mxu0 %v1534
        %2019 = vmatpush.bf16.msra.mxu0 %v1530
        %2020 = vmatpush.bf16.msra.mxu0 %v1526
        %2021 = vmatpush.bf16.msra.mxu0 %v1522
        %2022 = vmatpush.bf16.msra.mxu0 %v1518
        %2023 = vmatpush.bf16.msra.mxu0 %v1514
        %2024 = vmatmul.bf16.gmra.mxu0 %v509
        %v2025 = vpop.f32.mrf.mxu0
        %v2026 = vadd.f32 %v1977, %v2025
        %v2027 = vpop.f32.mrf.mxu0
        %v2028 = vadd.f32 %v1979, %v2027
        %2029 = vmatmul.bf16.gmra.mxu0 %v516
        %v2030 = vpop.f32.mrf.mxu0
        %v2031 = vadd.f32 %v1982, %v2030
        %v2032 = vpop.f32.mrf.mxu0
        %v2033 = vadd.f32 %v1984, %v2032
        %2034 = vmatmul.bf16.gmra.mxu0 %v523
        %v2035 = vpop.f32.mrf.mxu0
        %v2036 = vadd.f32 %v1987, %v2035
        %v2037 = vpop.f32.mrf.mxu0
        %v2038 = vadd.f32 %v1989, %v2037
        %2039 = vmatmul.bf16.gmra.mxu0 %v530
        %v2040 = vpop.f32.mrf.mxu0
        %v2041 = vadd.f32 %v1992, %v2040
        %v2042 = vpop.f32.mrf.mxu0
        %v2043 = vadd.f32 %v1994, %v2042
        %2044 = vmatmul.bf16.gmra.mxu0 %v537
        %v2045 = vpop.f32.mrf.mxu0
        %v2046 = vadd.f32 %v1997, %v2045
        %v2047 = vpop.f32.mrf.mxu0
        %v2048 = vadd.f32 %v1999, %v2047
        %2049 = vmatmul.bf16.gmra.mxu0 %v544
        %v2050 = vpop.f32.mrf.mxu0
        %v2051 = vadd.f32 %v2002, %v2050
        %v2052 = vpop.f32.mrf.mxu0
        %v2053 = vadd.f32 %v2004, %v2052
        %2054 = vmatmul.bf16.gmra.mxu0 %v551
        %v2055 = vpop.f32.mrf.mxu0
        %v2056 = vadd.f32 %v2007, %v2055
        %v2057 = vpop.f32.mrf.mxu0
        %v2058 = vadd.f32 %v2009, %v2057
        %2059 = vmatmul.bf16.gmra.mxu0 %v558
        %v2060 = vpop.f32.mrf.mxu0
        %v2061 = vadd.f32 %v2012, %v2060
        %v2062 = vpop.f32.mrf.mxu0
        %v2063 = vadd.f32 %v2014, %v2062
        %2064 = vdwg.mxu0
        %2065 = vmatpush.bf16.msra.mxu0 0
        %2066 = vmatpush.bf16.msra.mxu0 0
        %2067 = vmatpush.bf16.msra.mxu0 0
        %2068 = vmatpush.bf16.msra.mxu0 0
        %2069 = vmatpush.bf16.msra.mxu0 0
        %2070 = vmatpush.bf16.msra.mxu0 0
        %2071 = vmatpush.bf16.msra.mxu0 0
        %2072 = vmatpush.bf16.msra.mxu0 %v1546
        %2073 = vmatmul.bf16.gmra.mxu0 %v1748
        %v2074 = vpop.f32.mrf.mxu0
        %v2075 = vadd.f32 %v2026, %v2074
        %v2076 = vpop.f32.mrf.mxu0
        %v2077 = vadd.f32 %v2028, %v2076
        %2078 = vmatmul.bf16.gmra.mxu0 %v1751
        %v2079 = vpop.f32.mrf.mxu0
        %v2080 = vadd.f32 %v2031, %v2079
        %v2081 = vpop.f32.mrf.mxu0
        %v2082 = vadd.f32 %v2033, %v2081
        %2083 = vmatmul.bf16.gmra.mxu0 %v1754
        %v2084 = vpop.f32.mrf.mxu0
        %v2085 = vadd.f32 %v2036, %v2084
        %v2086 = vpop.f32.mrf.mxu0
        %v2087 = vadd.f32 %v2038, %v2086
        %2088 = vmatmul.bf16.gmra.mxu0 %v1757
        %v2089 = vpop.f32.mrf.mxu0
        %v2090 = vadd.f32 %v2041, %v2089
        %v2091 = vpop.f32.mrf.mxu0
        %v2092 = vadd.f32 %v2043, %v2091
        %2093 = vmatmul.bf16.gmra.mxu0 %v1760
        %v2094 = vpop.f32.mrf.mxu0
        %v2095 = vadd.f32 %v2046, %v2094
        %v2096 = vpop.f32.mrf.mxu0
        %v2097 = vadd.f32 %v2048, %v2096
        %2098 = vmatmul.bf16.gmra.mxu0 %v1763
        %v2099 = vpop.f32.mrf.mxu0
        %v2100 = vadd.f32 %v2051, %v2099
        %v2101 = vpop.f32.mrf.mxu0
        %v2102 = vadd.f32 %v2053, %v2101
        %2103 = vmatmul.bf16.gmra.mxu0 %v1766
        %v2104 = vpop.f32.mrf.mxu0
        %v2105 = vadd.f32 %v2056, %v2104
        %v2106 = vpop.f32.mrf.mxu0
        %v2107 = vadd.f32 %v2058, %v2106
        %2108 = vmatmul.bf16.gmra.mxu0 %v1769
        %v2109 = vpop.f32.mrf.mxu0
        %v2110 = vadd.f32 %v2061, %v2109
        %v2111 = vpop.f32.mrf.mxu0
        %v2112 = vadd.f32 %v2063, %v2111
        %2113 = vdwg.mxu0
        %2114 = vmatpush.bf16.msra.mxu0 %v1383
        %2115 = vmatpush.bf16.msra.mxu0 %v1379
        %2116 = vmatpush.bf16.msra.mxu0 %v1375
        %2117 = vmatpush.bf16.msra.mxu0 %v1371
        %2118 = vmatpush.bf16.msra.mxu0 %v1367
        %2119 = vmatpush.bf16.msra.mxu0 %v1363
        %2120 = vmatpush.bf16.msra.mxu0 %v1359
        %2121 = vmatpush.bf16.msra.mxu0 %v1355
        %2122 = vmatmul.bf16.gmra.mxu0 %v504
        %v2123 = vpop.f32.mrf.mxu0
        %v2124 = vadd.f32 %v759, %v2123
        %v2125 = vpop.f32.mrf.mxu0
        %v2126 = vadd.f32 %v759, %v2125
        %2127 = vmatmul.bf16.gmra.mxu0 %v511
        %v2128 = vpop.f32.mrf.mxu0
        %v2129 = vadd.f32 %v759, %v2128
        %v2130 = vpop.f32.mrf.mxu0
        %v2131 = vadd.f32 %v759, %v2130
        %2132 = vmatmul.bf16.gmra.mxu0 %v518
        %v2133 = vpop.f32.mrf.mxu0
        %v2134 = vadd.f32 %v759, %v2133
        %v2135 = vpop.f32.mrf.mxu0
        %v2136 = vadd.f32 %v759, %v2135
        %2137 = vmatmul.bf16.gmra.mxu0 %v525
        %v2138 = vpop.f32.mrf.mxu0
        %v2139 = vadd.f32 %v759, %v2138
        %v2140 = vpop.f32.mrf.mxu0
        %v2141 = vadd.f32 %v759, %v2140
        %2142 = vmatmul.bf16.gmra.mxu0 %v532
        %v2143 = vpop.f32.mrf.mxu0
        %v2144 = vadd.f32 %v759, %v2143
        %v2145 = vpop.f32.mrf.mxu0
        %v2146 = vadd.f32 %v759, %v2145
        %2147 = vmatmul.bf16.gmra.mxu0 %v539
        %v2148 = vpop.f32.mrf.mxu0
        %v2149 = vadd.f32 %v759, %v2148
        %v2150 = vpop.f32.mrf.mxu0
        %v2151 = vadd.f32 %v759, %v2150
        %2152 = vmatmul.bf16.gmra.mxu0 %v546
        %v2153 = vpop.f32.mrf.mxu0
        %v2154 = vadd.f32 %v759, %v2153
        %v2155 = vpop.f32.mrf.mxu0
        %v2156 = vadd.f32 %v759, %v2155
        %2157 = vmatmul.bf16.gmra.mxu0 %v553
        %v2158 = vpop.f32.mrf.mxu0
        %v2159 = vadd.f32 %v759, %v2158
        %v2160 = vpop.f32.mrf.mxu0
        %v2161 = vadd.f32 %v759, %v2160
        %2162 = vdwg.mxu0
        %2163 = vmatpush.bf16.msra.mxu0 %v1415
        %2164 = vmatpush.bf16.msra.mxu0 %v1411
        %2165 = vmatpush.bf16.msra.mxu0 %v1407
        %2166 = vmatpush.bf16.msra.mxu0 %v1403
        %2167 = vmatpush.bf16.msra.mxu0 %v1399
        %2168 = vmatpush.bf16.msra.mxu0 %v1395
        %2169 = vmatpush.bf16.msra.mxu0 %v1391
        %2170 = vmatpush.bf16.msra.mxu0 %v1387
        %2171 = vmatmul.bf16.gmra.mxu0 %v505
        %v2172 = vpop.f32.mrf.mxu0
        %v2173 = vadd.f32 %v2124, %v2172
        %v2174 = vpop.f32.mrf.mxu0
        %v2175 = vadd.f32 %v2126, %v2174
        %2176 = vmatmul.bf16.gmra.mxu0 %v512
        %v2177 = vpop.f32.mrf.mxu0
        %v2178 = vadd.f32 %v2129, %v2177
        %v2179 = vpop.f32.mrf.mxu0
        %v2180 = vadd.f32 %v2131, %v2179
        %2181 = vmatmul.bf16.gmra.mxu0 %v519
        %v2182 = vpop.f32.mrf.mxu0
        %v2183 = vadd.f32 %v2134, %v2182
        %v2184 = vpop.f32.mrf.mxu0
        %v2185 = vadd.f32 %v2136, %v2184
        %2186 = vmatmul.bf16.gmra.mxu0 %v526
        %v2187 = vpop.f32.mrf.mxu0
        %v2188 = vadd.f32 %v2139, %v2187
        %v2189 = vpop.f32.mrf.mxu0
        %v2190 = vadd.f32 %v2141, %v2189
        %2191 = vmatmul.bf16.gmra.mxu0 %v533
        %v2192 = vpop.f32.mrf.mxu0
        %v2193 = vadd.f32 %v2144, %v2192
        %v2194 = vpop.f32.mrf.mxu0
        %v2195 = vadd.f32 %v2146, %v2194
        %2196 = vmatmul.bf16.gmra.mxu0 %v540
        %v2197 = vpop.f32.mrf.mxu0
        %v2198 = vadd.f32 %v2149, %v2197
        %v2199 = vpop.f32.mrf.mxu0
        %v2200 = vadd.f32 %v2151, %v2199
        %2201 = vmatmul.bf16.gmra.mxu0 %v547
        %v2202 = vpop.f32.mrf.mxu0
        %v2203 = vadd.f32 %v2154, %v2202
        %v2204 = vpop.f32.mrf.mxu0
        %v2205 = vadd.f32 %v2156, %v2204
        %2206 = vmatmul.bf16.gmra.mxu0 %v554
        %v2207 = vpop.f32.mrf.mxu0
        %v2208 = vadd.f32 %v2159, %v2207
        %v2209 = vpop.f32.mrf.mxu0
        %v2210 = vadd.f32 %v2161, %v2209
        %2211 = vdwg.mxu0
        %2212 = vmatpush.bf16.msra.mxu0 %v1447
        %2213 = vmatpush.bf16.msra.mxu0 %v1443
        %2214 = vmatpush.bf16.msra.mxu0 %v1439
        %2215 = vmatpush.bf16.msra.mxu0 %v1435
        %2216 = vmatpush.bf16.msra.mxu0 %v1431
        %2217 = vmatpush.bf16.msra.mxu0 %v1427
        %2218 = vmatpush.bf16.msra.mxu0 %v1423
        %2219 = vmatpush.bf16.msra.mxu0 %v1419
        %2220 = vmatmul.bf16.gmra.mxu0 %v506
        %v2221 = vpop.f32.mrf.mxu0
        %v2222 = vadd.f32 %v2173, %v2221
        %v2223 = vpop.f32.mrf.mxu0
        %v2224 = vadd.f32 %v2175, %v2223
        %2225 = vmatmul.bf16.gmra.mxu0 %v513
        %v2226 = vpop.f32.mrf.mxu0
        %v2227 = vadd.f32 %v2178, %v2226
        %v2228 = vpop.f32.mrf.mxu0
        %v2229 = vadd.f32 %v2180, %v2228
        %2230 = vmatmul.bf16.gmra.mxu0 %v520
        %v2231 = vpop.f32.mrf.mxu0
        %v2232 = vadd.f32 %v2183, %v2231
        %v2233 = vpop.f32.mrf.mxu0
        %v2234 = vadd.f32 %v2185, %v2233
        %2235 = vmatmul.bf16.gmra.mxu0 %v527
        %v2236 = vpop.f32.mrf.mxu0
        %v2237 = vadd.f32 %v2188, %v2236
        %v2238 = vpop.f32.mrf.mxu0
        %v2239 = vadd.f32 %v2190, %v2238
        %2240 = vmatmul.bf16.gmra.mxu0 %v534
        %v2241 = vpop.f32.mrf.mxu0
        %v2242 = vadd.f32 %v2193, %v2241
        %v2243 = vpop.f32.mrf.mxu0
        %v2244 = vadd.f32 %v2195, %v2243
        %2245 = vmatmul.bf16.gmra.mxu0 %v541
        %v2246 = vpop.f32.mrf.mxu0
        %v2247 = vadd.f32 %v2198, %v2246
        %v2248 = vpop.f32.mrf.mxu0
        %v2249 = vadd.f32 %v2200, %v2248
        %2250 = vmatmul.bf16.gmra.mxu0 %v548
        %v2251 = vpop.f32.mrf.mxu0
        %v2252 = vadd.f32 %v2203, %v2251
        %v2253 = vpop.f32.mrf.mxu0
        %v2254 = vadd.f32 %v2205, %v2253
        %2255 = vmatmul.bf16.gmra.mxu0 %v555
        %v2256 = vpop.f32.mrf.mxu0
        %v2257 = vadd.f32 %v2208, %v2256
        %v2258 = vpop.f32.mrf.mxu0
        %v2259 = vadd.f32 %v2210, %v2258
        %2260 = vdwg.mxu0
        %2261 = vmatpush.bf16.msra.mxu0 %v1479
        %2262 = vmatpush.bf16.msra.mxu0 %v1475
        %2263 = vmatpush.bf16.msra.mxu0 %v1471
        %2264 = vmatpush.bf16.msra.mxu0 %v1467
        %2265 = vmatpush.bf16.msra.mxu0 %v1463
        %2266 = vmatpush.bf16.msra.mxu0 %v1459
        %2267 = vmatpush.bf16.msra.mxu0 %v1455
        %2268 = vmatpush.bf16.msra.mxu0 %v1451
        %2269 = vmatmul.bf16.gmra.mxu0 %v507
        %v2270 = vpop.f32.mrf.mxu0
        %v2271 = vadd.f32 %v2222, %v2270
        %v2272 = vpop.f32.mrf.mxu0
        %v2273 = vadd.f32 %v2224, %v2272
        %2274 = vmatmul.bf16.gmra.mxu0 %v514
        %v2275 = vpop.f32.mrf.mxu0
        %v2276 = vadd.f32 %v2227, %v2275
        %v2277 = vpop.f32.mrf.mxu0
        %v2278 = vadd.f32 %v2229, %v2277
        %2279 = vmatmul.bf16.gmra.mxu0 %v521
        %v2280 = vpop.f32.mrf.mxu0
        %v2281 = vadd.f32 %v2232, %v2280
        %v2282 = vpop.f32.mrf.mxu0
        %v2283 = vadd.f32 %v2234, %v2282
        %2284 = vmatmul.bf16.gmra.mxu0 %v528
        %v2285 = vpop.f32.mrf.mxu0
        %v2286 = vadd.f32 %v2237, %v2285
        %v2287 = vpop.f32.mrf.mxu0
        %v2288 = vadd.f32 %v2239, %v2287
        %2289 = vmatmul.bf16.gmra.mxu0 %v535
        %v2290 = vpop.f32.mrf.mxu0
        %v2291 = vadd.f32 %v2242, %v2290
        %v2292 = vpop.f32.mrf.mxu0
        %v2293 = vadd.f32 %v2244, %v2292
        %2294 = vmatmul.bf16.gmra.mxu0 %v542
        %v2295 = vpop.f32.mrf.mxu0
        %v2296 = vadd.f32 %v2247, %v2295
        %v2297 = vpop.f32.mrf.mxu0
        %v2298 = vadd.f32 %v2249, %v2297
        %2299 = vmatmul.bf16.gmra.mxu0 %v549
        %v2300 = vpop.f32.mrf.mxu0
        %v2301 = vadd.f32 %v2252, %v2300
        %v2302 = vpop.f32.mrf.mxu0
        %v2303 = vadd.f32 %v2254, %v2302
        %2304 = vmatmul.bf16.gmra.mxu0 %v556
        %v2305 = vpop.f32.mrf.mxu0
        %v2306 = vadd.f32 %v2257, %v2305
        %v2307 = vpop.f32.mrf.mxu0
        %v2308 = vadd.f32 %v2259, %v2307
        %2309 = vdwg.mxu0
        %2310 = vmatpush.bf16.msra.mxu0 %v1511
        %2311 = vmatpush.bf16.msra.mxu0 %v1507
        %2312 = vmatpush.bf16.msra.mxu0 %v1503
        %2313 = vmatpush.bf16.msra.mxu0 %v1499
        %2314 = vmatpush.bf16.msra.mxu0 %v1495
        %2315 = vmatpush.bf16.msra.mxu0 %v1491
        %2316 = vmatpush.bf16.msra.mxu0 %v1487
        %2317 = vmatpush.bf16.msra.mxu0 %v1483
        %2318 = vmatmul.bf16.gmra.mxu0 %v508
        %v2319 = vpop.f32.mrf.mxu0
        %v2320 = vadd.f32 %v2271, %v2319
        %v2321 = vpop.f32.mrf.mxu0
        %v2322 = vadd.f32 %v2273, %v2321
        %2323 = vmatmul.bf16.gmra.mxu0 %v515
        %v2324 = vpop.f32.mrf.mxu0
        %v2325 = vadd.f32 %v2276, %v2324
        %v2326 = vpop.f32.mrf.mxu0
        %v2327 = vadd.f32 %v2278, %v2326
        %2328 = vmatmul.bf16.gmra.mxu0 %v522
        %v2329 = vpop.f32.mrf.mxu0
        %v2330 = vadd.f32 %v2281, %v2329
        %v2331 = vpop.f32.mrf.mxu0
        %v2332 = vadd.f32 %v2283, %v2331
        %2333 = vmatmul.bf16.gmra.mxu0 %v529
        %v2334 = vpop.f32.mrf.mxu0
        %v2335 = vadd.f32 %v2286, %v2334
        %v2336 = vpop.f32.mrf.mxu0
        %v2337 = vadd.f32 %v2288, %v2336
        %2338 = vmatmul.bf16.gmra.mxu0 %v536
        %v2339 = vpop.f32.mrf.mxu0
        %v2340 = vadd.f32 %v2291, %v2339
        %v2341 = vpop.f32.mrf.mxu0
        %v2342 = vadd.f32 %v2293, %v2341
        %2343 = vmatmul.bf16.gmra.mxu0 %v543
        %v2344 = vpop.f32.mrf.mxu0
        %v2345 = vadd.f32 %v2296, %v2344
        %v2346 = vpop.f32.mrf.mxu0
        %v2347 = vadd.f32 %v2298, %v2346
        %2348 = vmatmul.bf16.gmra.mxu0 %v550
        %v2349 = vpop.f32.mrf.mxu0
        %v2350 = vadd.f32 %v2301, %v2349
        %v2351 = vpop.f32.mrf.mxu0
        %v2352 = vadd.f32 %v2303, %v2351
        %2353 = vmatmul.bf16.gmra.mxu0 %v557
        %v2354 = vpop.f32.mrf.mxu0
        %v2355 = vadd.f32 %v2306, %v2354
        %v2356 = vpop.f32.mrf.mxu0
        %v2357 = vadd.f32 %v2308, %v2356
        %2358 = vdwg.mxu0
        %2359 = vmatpush.bf16.msra.mxu0 %v1543
        %2360 = vmatpush.bf16.msra.mxu0 %v1539
        %2361 = vmatpush.bf16.msra.mxu0 %v1535
        %2362 = vmatpush.bf16.msra.mxu0 %v1531
        %2363 = vmatpush.bf16.msra.mxu0 %v1527
        %2364 = vmatpush.bf16.msra.mxu0 %v1523
        %2365 = vmatpush.bf16.msra.mxu0 %v1519
        %2366 = vmatpush.bf16.msra.mxu0 %v1515
        %2367 = vmatmul.bf16.gmra.mxu0 %v509
        %v2368 = vpop.f32.mrf.mxu0
        %v2369 = vadd.f32 %v2320, %v2368
        %v2370 = vpop.f32.mrf.mxu0
        %v2371 = vadd.f32 %v2322, %v2370
        %2372 = vmatmul.bf16.gmra.mxu0 %v516
        %v2373 = vpop.f32.mrf.mxu0
        %v2374 = vadd.f32 %v2325, %v2373
        %v2375 = vpop.f32.mrf.mxu0
        %v2376 = vadd.f32 %v2327, %v2375
        %2377 = vmatmul.bf16.gmra.mxu0 %v523
        %v2378 = vpop.f32.mrf.mxu0
        %v2379 = vadd.f32 %v2330, %v2378
        %v2380 = vpop.f32.mrf.mxu0
        %v2381 = vadd.f32 %v2332, %v2380
        %2382 = vmatmul.bf16.gmra.mxu0 %v530
        %v2383 = vpop.f32.mrf.mxu0
        %v2384 = vadd.f32 %v2335, %v2383
        %v2385 = vpop.f32.mrf.mxu0
        %v2386 = vadd.f32 %v2337, %v2385
        %2387 = vmatmul.bf16.gmra.mxu0 %v537
        %v2388 = vpop.f32.mrf.mxu0
        %v2389 = vadd.f32 %v2340, %v2388
        %v2390 = vpop.f32.mrf.mxu0
        %v2391 = vadd.f32 %v2342, %v2390
        %2392 = vmatmul.bf16.gmra.mxu0 %v544
        %v2393 = vpop.f32.mrf.mxu0
        %v2394 = vadd.f32 %v2345, %v2393
        %v2395 = vpop.f32.mrf.mxu0
        %v2396 = vadd.f32 %v2347, %v2395
        %2397 = vmatmul.bf16.gmra.mxu0 %v551
        %v2398 = vpop.f32.mrf.mxu0
        %v2399 = vadd.f32 %v2350, %v2398
        %v2400 = vpop.f32.mrf.mxu0
        %v2401 = vadd.f32 %v2352, %v2400
        %2402 = vmatmul.bf16.gmra.mxu0 %v558
        %v2403 = vpop.f32.mrf.mxu0
        %v2404 = vadd.f32 %v2355, %v2403
        %v2405 = vpop.f32.mrf.mxu0
        %v2406 = vadd.f32 %v2357, %v2405
        %2407 = vdwg.mxu0
        %2408 = vmatpush.bf16.msra.mxu0 0
        %2409 = vmatpush.bf16.msra.mxu0 0
        %2410 = vmatpush.bf16.msra.mxu0 0
        %2411 = vmatpush.bf16.msra.mxu0 0
        %2412 = vmatpush.bf16.msra.mxu0 0
        %2413 = vmatpush.bf16.msra.mxu0 0
        %2414 = vmatpush.bf16.msra.mxu0 0
        %2415 = vmatpush.bf16.msra.mxu0 %v1547
        %2416 = vmatmul.bf16.gmra.mxu0 %v1748
        %v2417 = vpop.f32.mrf.mxu0
        %v2418 = vadd.f32 %v2369, %v2417
        %v2419 = vpop.f32.mrf.mxu0
        %v2420 = vadd.f32 %v2371, %v2419
        %2421 = vmatmul.bf16.gmra.mxu0 %v1751
        %v2422 = vpop.f32.mrf.mxu0
        %v2423 = vadd.f32 %v2374, %v2422
        %v2424 = vpop.f32.mrf.mxu0
        %v2425 = vadd.f32 %v2376, %v2424
        %2426 = vmatmul.bf16.gmra.mxu0 %v1754
        %v2427 = vpop.f32.mrf.mxu0
        %v2428 = vadd.f32 %v2379, %v2427
        %v2429 = vpop.f32.mrf.mxu0
        %v2430 = vadd.f32 %v2381, %v2429
        %2431 = vmatmul.bf16.gmra.mxu0 %v1757
        %v2432 = vpop.f32.mrf.mxu0
        %v2433 = vadd.f32 %v2384, %v2432
        %v2434 = vpop.f32.mrf.mxu0
        %v2435 = vadd.f32 %v2386, %v2434
        %2436 = vmatmul.bf16.gmra.mxu0 %v1760
        %v2437 = vpop.f32.mrf.mxu0
        %v2438 = vadd.f32 %v2389, %v2437
        %v2439 = vpop.f32.mrf.mxu0
        %v2440 = vadd.f32 %v2391, %v2439
        %2441 = vmatmul.bf16.gmra.mxu0 %v1763
        %v2442 = vpop.f32.mrf.mxu0
        %v2443 = vadd.f32 %v2394, %v2442
        %v2444 = vpop.f32.mrf.mxu0
        %v2445 = vadd.f32 %v2396, %v2444
        %2446 = vmatmul.bf16.gmra.mxu0 %v1766
        %v2447 = vpop.f32.mrf.mxu0
        %v2448 = vadd.f32 %v2399, %v2447
        %v2449 = vpop.f32.mrf.mxu0
        %v2450 = vadd.f32 %v2401, %v2449
        %2451 = vmatmul.bf16.gmra.mxu0 %v1769
        %v2452 = vpop.f32.mrf.mxu0
        %v2453 = vadd.f32 %v2404, %v2452
        %v2454 = vpop.f32.mrf.mxu0
        %v2455 = vadd.f32 %v2406, %v2454
        %2456 = vdwg.mxu0
        %2457 = vmatpush.bf16.msra.mxu0 %v1384
        %2458 = vmatpush.bf16.msra.mxu0 %v1380
        %2459 = vmatpush.bf16.msra.mxu0 %v1376
        %2460 = vmatpush.bf16.msra.mxu0 %v1372
        %2461 = vmatpush.bf16.msra.mxu0 %v1368
        %2462 = vmatpush.bf16.msra.mxu0 %v1364
        %2463 = vmatpush.bf16.msra.mxu0 %v1360
        %2464 = vmatpush.bf16.msra.mxu0 %v1356
        %2465 = vmatmul.bf16.gmra.mxu0 %v504
        %v2466 = vpop.f32.mrf.mxu0
        %v2467 = vadd.f32 %v760, %v2466
        %v2468 = vpop.f32.mrf.mxu0
        %v2469 = vadd.f32 %v760, %v2468
        %2470 = vmatmul.bf16.gmra.mxu0 %v511
        %v2471 = vpop.f32.mrf.mxu0
        %v2472 = vadd.f32 %v760, %v2471
        %v2473 = vpop.f32.mrf.mxu0
        %v2474 = vadd.f32 %v760, %v2473
        %2475 = vmatmul.bf16.gmra.mxu0 %v518
        %v2476 = vpop.f32.mrf.mxu0
        %v2477 = vadd.f32 %v760, %v2476
        %v2478 = vpop.f32.mrf.mxu0
        %v2479 = vadd.f32 %v760, %v2478
        %2480 = vmatmul.bf16.gmra.mxu0 %v525
        %v2481 = vpop.f32.mrf.mxu0
        %v2482 = vadd.f32 %v760, %v2481
        %v2483 = vpop.f32.mrf.mxu0
        %v2484 = vadd.f32 %v760, %v2483
        %2485 = vmatmul.bf16.gmra.mxu0 %v532
        %v2486 = vpop.f32.mrf.mxu0
        %v2487 = vadd.f32 %v760, %v2486
        %v2488 = vpop.f32.mrf.mxu0
        %v2489 = vadd.f32 %v760, %v2488
        %2490 = vmatmul.bf16.gmra.mxu0 %v539
        %v2491 = vpop.f32.mrf.mxu0
        %v2492 = vadd.f32 %v760, %v2491
        %v2493 = vpop.f32.mrf.mxu0
        %v2494 = vadd.f32 %v760, %v2493
        %2495 = vmatmul.bf16.gmra.mxu0 %v546
        %v2496 = vpop.f32.mrf.mxu0
        %v2497 = vadd.f32 %v760, %v2496
        %v2498 = vpop.f32.mrf.mxu0
        %v2499 = vadd.f32 %v760, %v2498
        %2500 = vmatmul.bf16.gmra.mxu0 %v553
        %v2501 = vpop.f32.mrf.mxu0
        %v2502 = vadd.f32 %v760, %v2501
        %v2503 = vpop.f32.mrf.mxu0
        %v2504 = vadd.f32 %v760, %v2503
        %2505 = vdwg.mxu0
        %2506 = vmatpush.bf16.msra.mxu0 %v1416
        %2507 = vmatpush.bf16.msra.mxu0 %v1412
        %2508 = vmatpush.bf16.msra.mxu0 %v1408
        %2509 = vmatpush.bf16.msra.mxu0 %v1404
        %2510 = vmatpush.bf16.msra.mxu0 %v1400
        %2511 = vmatpush.bf16.msra.mxu0 %v1396
        %2512 = vmatpush.bf16.msra.mxu0 %v1392
        %2513 = vmatpush.bf16.msra.mxu0 %v1388
        %2514 = vmatmul.bf16.gmra.mxu0 %v505
        %v2515 = vpop.f32.mrf.mxu0
        %v2516 = vadd.f32 %v2467, %v2515
        %v2517 = vpop.f32.mrf.mxu0
        %v2518 = vadd.f32 %v2469, %v2517
        %2519 = vmatmul.bf16.gmra.mxu0 %v512
        %v2520 = vpop.f32.mrf.mxu0
        %v2521 = vadd.f32 %v2472, %v2520
        %v2522 = vpop.f32.mrf.mxu0
        %v2523 = vadd.f32 %v2474, %v2522
        %2524 = vmatmul.bf16.gmra.mxu0 %v519
        %v2525 = vpop.f32.mrf.mxu0
        %v2526 = vadd.f32 %v2477, %v2525
        %v2527 = vpop.f32.mrf.mxu0
        %v2528 = vadd.f32 %v2479, %v2527
        %2529 = vmatmul.bf16.gmra.mxu0 %v526
        %v2530 = vpop.f32.mrf.mxu0
        %v2531 = vadd.f32 %v2482, %v2530
        %v2532 = vpop.f32.mrf.mxu0
        %v2533 = vadd.f32 %v2484, %v2532
        %2534 = vmatmul.bf16.gmra.mxu0 %v533
        %v2535 = vpop.f32.mrf.mxu0
        %v2536 = vadd.f32 %v2487, %v2535
        %v2537 = vpop.f32.mrf.mxu0
        %v2538 = vadd.f32 %v2489, %v2537
        %2539 = vmatmul.bf16.gmra.mxu0 %v540
        %v2540 = vpop.f32.mrf.mxu0
        %v2541 = vadd.f32 %v2492, %v2540
        %v2542 = vpop.f32.mrf.mxu0
        %v2543 = vadd.f32 %v2494, %v2542
        %2544 = vmatmul.bf16.gmra.mxu0 %v547
        %v2545 = vpop.f32.mrf.mxu0
        %v2546 = vadd.f32 %v2497, %v2545
        %v2547 = vpop.f32.mrf.mxu0
        %v2548 = vadd.f32 %v2499, %v2547
        %2549 = vmatmul.bf16.gmra.mxu0 %v554
        %v2550 = vpop.f32.mrf.mxu0
        %v2551 = vadd.f32 %v2502, %v2550
        %v2552 = vpop.f32.mrf.mxu0
        %v2553 = vadd.f32 %v2504, %v2552
        %2554 = vdwg.mxu0
        %2555 = vmatpush.bf16.msra.mxu0 %v1448
        %2556 = vmatpush.bf16.msra.mxu0 %v1444
        %2557 = vmatpush.bf16.msra.mxu0 %v1440
        %2558 = vmatpush.bf16.msra.mxu0 %v1436
        %2559 = vmatpush.bf16.msra.mxu0 %v1432
        %2560 = vmatpush.bf16.msra.mxu0 %v1428
        %2561 = vmatpush.bf16.msra.mxu0 %v1424
        %2562 = vmatpush.bf16.msra.mxu0 %v1420
        %2563 = vmatmul.bf16.gmra.mxu0 %v506
        %v2564 = vpop.f32.mrf.mxu0
        %v2565 = vadd.f32 %v2516, %v2564
        %v2566 = vpop.f32.mrf.mxu0
        %v2567 = vadd.f32 %v2518, %v2566
        %2568 = vmatmul.bf16.gmra.mxu0 %v513
        %v2569 = vpop.f32.mrf.mxu0
        %v2570 = vadd.f32 %v2521, %v2569
        %v2571 = vpop.f32.mrf.mxu0
        %v2572 = vadd.f32 %v2523, %v2571
        %2573 = vmatmul.bf16.gmra.mxu0 %v520
        %v2574 = vpop.f32.mrf.mxu0
        %v2575 = vadd.f32 %v2526, %v2574
        %v2576 = vpop.f32.mrf.mxu0
        %v2577 = vadd.f32 %v2528, %v2576
        %2578 = vmatmul.bf16.gmra.mxu0 %v527
        %v2579 = vpop.f32.mrf.mxu0
        %v2580 = vadd.f32 %v2531, %v2579
        %v2581 = vpop.f32.mrf.mxu0
        %v2582 = vadd.f32 %v2533, %v2581
        %2583 = vmatmul.bf16.gmra.mxu0 %v534
        %v2584 = vpop.f32.mrf.mxu0
        %v2585 = vadd.f32 %v2536, %v2584
        %v2586 = vpop.f32.mrf.mxu0
        %v2587 = vadd.f32 %v2538, %v2586
        %2588 = vmatmul.bf16.gmra.mxu0 %v541
        %v2589 = vpop.f32.mrf.mxu0
        %v2590 = vadd.f32 %v2541, %v2589
        %v2591 = vpop.f32.mrf.mxu0
        %v2592 = vadd.f32 %v2543, %v2591
        %2593 = vmatmul.bf16.gmra.mxu0 %v548
        %v2594 = vpop.f32.mrf.mxu0
        %v2595 = vadd.f32 %v2546, %v2594
        %v2596 = vpop.f32.mrf.mxu0
        %v2597 = vadd.f32 %v2548, %v2596
        %2598 = vmatmul.bf16.gmra.mxu0 %v555
        %v2599 = vpop.f32.mrf.mxu0
        %v2600 = vadd.f32 %v2551, %v2599
        %v2601 = vpop.f32.mrf.mxu0
        %v2602 = vadd.f32 %v2553, %v2601
        %2603 = vdwg.mxu0
        %2604 = vmatpush.bf16.msra.mxu0 %v1480
        %2605 = vmatpush.bf16.msra.mxu0 %v1476
        %2606 = vmatpush.bf16.msra.mxu0 %v1472
        %2607 = vmatpush.bf16.msra.mxu0 %v1468
        %2608 = vmatpush.bf16.msra.mxu0 %v1464
        %2609 = vmatpush.bf16.msra.mxu0 %v1460
        %2610 = vmatpush.bf16.msra.mxu0 %v1456
        %2611 = vmatpush.bf16.msra.mxu0 %v1452
        %2612 = vmatmul.bf16.gmra.mxu0 %v507
        %v2613 = vpop.f32.mrf.mxu0
        %v2614 = vadd.f32 %v2565, %v2613
        %v2615 = vpop.f32.mrf.mxu0
        %v2616 = vadd.f32 %v2567, %v2615
        %2617 = vmatmul.bf16.gmra.mxu0 %v514
        %v2618 = vpop.f32.mrf.mxu0
        %v2619 = vadd.f32 %v2570, %v2618
        %v2620 = vpop.f32.mrf.mxu0
        %v2621 = vadd.f32 %v2572, %v2620
        %2622 = vmatmul.bf16.gmra.mxu0 %v521
        %v2623 = vpop.f32.mrf.mxu0
        %v2624 = vadd.f32 %v2575, %v2623
        %v2625 = vpop.f32.mrf.mxu0
        %v2626 = vadd.f32 %v2577, %v2625
        %2627 = vmatmul.bf16.gmra.mxu0 %v528
        %v2628 = vpop.f32.mrf.mxu0
        %v2629 = vadd.f32 %v2580, %v2628
        %v2630 = vpop.f32.mrf.mxu0
        %v2631 = vadd.f32 %v2582, %v2630
        %2632 = vmatmul.bf16.gmra.mxu0 %v535
        %v2633 = vpop.f32.mrf.mxu0
        %v2634 = vadd.f32 %v2585, %v2633
        %v2635 = vpop.f32.mrf.mxu0
        %v2636 = vadd.f32 %v2587, %v2635
        %2637 = vmatmul.bf16.gmra.mxu0 %v542
        %v2638 = vpop.f32.mrf.mxu0
        %v2639 = vadd.f32 %v2590, %v2638
        %v2640 = vpop.f32.mrf.mxu0
        %v2641 = vadd.f32 %v2592, %v2640
        %2642 = vmatmul.bf16.gmra.mxu0 %v549
        %v2643 = vpop.f32.mrf.mxu0
        %v2644 = vadd.f32 %v2595, %v2643
        %v2645 = vpop.f32.mrf.mxu0
        %v2646 = vadd.f32 %v2597, %v2645
        %2647 = vmatmul.bf16.gmra.mxu0 %v556
        %v2648 = vpop.f32.mrf.mxu0
        %v2649 = vadd.f32 %v2600, %v2648
        %v2650 = vpop.f32.mrf.mxu0
        %v2651 = vadd.f32 %v2602, %v2650
        %2652 = vdwg.mxu0
        %2653 = vmatpush.bf16.msra.mxu0 %v1512
        %2654 = vmatpush.bf16.msra.mxu0 %v1508
        %2655 = vmatpush.bf16.msra.mxu0 %v1504
        %2656 = vmatpush.bf16.msra.mxu0 %v1500
        %2657 = vmatpush.bf16.msra.mxu0 %v1496
        %2658 = vmatpush.bf16.msra.mxu0 %v1492
        %2659 = vmatpush.bf16.msra.mxu0 %v1488
        %2660 = vmatpush.bf16.msra.mxu0 %v1484
        %2661 = vmatmul.bf16.gmra.mxu0 %v508
        %v2662 = vpop.f32.mrf.mxu0
        %v2663 = vadd.f32 %v2614, %v2662
        %v2664 = vpop.f32.mrf.mxu0
        %v2665 = vadd.f32 %v2616, %v2664
        %2666 = vmatmul.bf16.gmra.mxu0 %v515
        %v2667 = vpop.f32.mrf.mxu0
        %v2668 = vadd.f32 %v2619, %v2667
        %v2669 = vpop.f32.mrf.mxu0
        %v2670 = vadd.f32 %v2621, %v2669
        %2671 = vmatmul.bf16.gmra.mxu0 %v522
        %v2672 = vpop.f32.mrf.mxu0
        %v2673 = vadd.f32 %v2624, %v2672
        %v2674 = vpop.f32.mrf.mxu0
        %v2675 = vadd.f32 %v2626, %v2674
        %2676 = vmatmul.bf16.gmra.mxu0 %v529
        %v2677 = vpop.f32.mrf.mxu0
        %v2678 = vadd.f32 %v2629, %v2677
        %v2679 = vpop.f32.mrf.mxu0
        %v2680 = vadd.f32 %v2631, %v2679
        %2681 = vmatmul.bf16.gmra.mxu0 %v536
        %v2682 = vpop.f32.mrf.mxu0
        %v2683 = vadd.f32 %v2634, %v2682
        %v2684 = vpop.f32.mrf.mxu0
        %v2685 = vadd.f32 %v2636, %v2684
        %2686 = vmatmul.bf16.gmra.mxu0 %v543
        %v2687 = vpop.f32.mrf.mxu0
        %v2688 = vadd.f32 %v2639, %v2687
        %v2689 = vpop.f32.mrf.mxu0
        %v2690 = vadd.f32 %v2641, %v2689
        %2691 = vmatmul.bf16.gmra.mxu0 %v550
        %v2692 = vpop.f32.mrf.mxu0
        %v2693 = vadd.f32 %v2644, %v2692
        %v2694 = vpop.f32.mrf.mxu0
        %v2695 = vadd.f32 %v2646, %v2694
        %2696 = vmatmul.bf16.gmra.mxu0 %v557
        %v2697 = vpop.f32.mrf.mxu0
        %v2698 = vadd.f32 %v2649, %v2697
        %v2699 = vpop.f32.mrf.mxu0
        %v2700 = vadd.f32 %v2651, %v2699
        %2701 = vdwg.mxu0
        %2702 = vmatpush.bf16.msra.mxu0 %v1544
        %2703 = vmatpush.bf16.msra.mxu0 %v1540
        %2704 = vmatpush.bf16.msra.mxu0 %v1536
        %2705 = vmatpush.bf16.msra.mxu0 %v1532
        %2706 = vmatpush.bf16.msra.mxu0 %v1528
        %2707 = vmatpush.bf16.msra.mxu0 %v1524
        %2708 = vmatpush.bf16.msra.mxu0 %v1520
        %2709 = vmatpush.bf16.msra.mxu0 %v1516
        %2710 = vmatmul.bf16.gmra.mxu0 %v509
        %v2711 = vpop.f32.mrf.mxu0
        %v2712 = vadd.f32 %v2663, %v2711
        %v2713 = vpop.f32.mrf.mxu0
        %v2714 = vadd.f32 %v2665, %v2713
        %2715 = vmatmul.bf16.gmra.mxu0 %v516
        %v2716 = vpop.f32.mrf.mxu0
        %v2717 = vadd.f32 %v2668, %v2716
        %v2718 = vpop.f32.mrf.mxu0
        %v2719 = vadd.f32 %v2670, %v2718
        %2720 = vmatmul.bf16.gmra.mxu0 %v523
        %v2721 = vpop.f32.mrf.mxu0
        %v2722 = vadd.f32 %v2673, %v2721
        %v2723 = vpop.f32.mrf.mxu0
        %v2724 = vadd.f32 %v2675, %v2723
        %2725 = vmatmul.bf16.gmra.mxu0 %v530
        %v2726 = vpop.f32.mrf.mxu0
        %v2727 = vadd.f32 %v2678, %v2726
        %v2728 = vpop.f32.mrf.mxu0
        %v2729 = vadd.f32 %v2680, %v2728
        %2730 = vmatmul.bf16.gmra.mxu0 %v537
        %v2731 = vpop.f32.mrf.mxu0
        %v2732 = vadd.f32 %v2683, %v2731
        %v2733 = vpop.f32.mrf.mxu0
        %v2734 = vadd.f32 %v2685, %v2733
        %2735 = vmatmul.bf16.gmra.mxu0 %v544
        %v2736 = vpop.f32.mrf.mxu0
        %v2737 = vadd.f32 %v2688, %v2736
        %v2738 = vpop.f32.mrf.mxu0
        %v2739 = vadd.f32 %v2690, %v2738
        %2740 = vmatmul.bf16.gmra.mxu0 %v551
        %v2741 = vpop.f32.mrf.mxu0
        %v2742 = vadd.f32 %v2693, %v2741
        %v2743 = vpop.f32.mrf.mxu0
        %v2744 = vadd.f32 %v2695, %v2743
        %2745 = vmatmul.bf16.gmra.mxu0 %v558
        %v2746 = vpop.f32.mrf.mxu0
        %v2747 = vadd.f32 %v2698, %v2746
        %v2748 = vpop.f32.mrf.mxu0
        %v2749 = vadd.f32 %v2700, %v2748
        %2750 = vdwg.mxu0
        %2751 = vmatpush.bf16.msra.mxu0 0
        %2752 = vmatpush.bf16.msra.mxu0 0
        %2753 = vmatpush.bf16.msra.mxu0 0
        %2754 = vmatpush.bf16.msra.mxu0 0
        %2755 = vmatpush.bf16.msra.mxu0 0
        %2756 = vmatpush.bf16.msra.mxu0 0
        %2757 = vmatpush.bf16.msra.mxu0 0
        %2758 = vmatpush.bf16.msra.mxu0 %v1548
        %2759 = vmatmul.bf16.gmra.mxu0 %v1748
        %v2760 = vpop.f32.mrf.mxu0
        %v2761 = vadd.f32 %v2712, %v2760
        %v2762 = vpop.f32.mrf.mxu0
        %v2763 = vadd.f32 %v2714, %v2762
        %2764 = vmatmul.bf16.gmra.mxu0 %v1751
        %v2765 = vpop.f32.mrf.mxu0
        %v2766 = vadd.f32 %v2717, %v2765
        %v2767 = vpop.f32.mrf.mxu0
        %v2768 = vadd.f32 %v2719, %v2767
        %2769 = vmatmul.bf16.gmra.mxu0 %v1754
        %v2770 = vpop.f32.mrf.mxu0
        %v2771 = vadd.f32 %v2722, %v2770
        %v2772 = vpop.f32.mrf.mxu0
        %v2773 = vadd.f32 %v2724, %v2772
        %2774 = vmatmul.bf16.gmra.mxu0 %v1757
        %v2775 = vpop.f32.mrf.mxu0
        %v2776 = vadd.f32 %v2727, %v2775
        %v2777 = vpop.f32.mrf.mxu0
        %v2778 = vadd.f32 %v2729, %v2777
        %2779 = vmatmul.bf16.gmra.mxu0 %v1760
        %v2780 = vpop.f32.mrf.mxu0
        %v2781 = vadd.f32 %v2732, %v2780
        %v2782 = vpop.f32.mrf.mxu0
        %v2783 = vadd.f32 %v2734, %v2782
        %2784 = vmatmul.bf16.gmra.mxu0 %v1763
        %v2785 = vpop.f32.mrf.mxu0
        %v2786 = vadd.f32 %v2737, %v2785
        %v2787 = vpop.f32.mrf.mxu0
        %v2788 = vadd.f32 %v2739, %v2787
        %2789 = vmatmul.bf16.gmra.mxu0 %v1766
        %v2790 = vpop.f32.mrf.mxu0
        %v2791 = vadd.f32 %v2742, %v2790
        %v2792 = vpop.f32.mrf.mxu0
        %v2793 = vadd.f32 %v2744, %v2792
        %2794 = vmatmul.bf16.gmra.mxu0 %v1769
        %v2795 = vpop.f32.mrf.mxu0
        %v2796 = vadd.f32 %v2747, %v2795
        %v2797 = vpop.f32.mrf.mxu0
        %v2798 = vadd.f32 %v2749, %v2797
        %2799 = vdwg.mxu0
        %2800 = vmatpush.bf16.msra.mxu0 %v1385
        %2801 = vmatpush.bf16.msra.mxu0 %v1381
        %2802 = vmatpush.bf16.msra.mxu0 %v1377
        %2803 = vmatpush.bf16.msra.mxu0 %v1373
        %2804 = vmatpush.bf16.msra.mxu0 %v1369
        %2805 = vmatpush.bf16.msra.mxu0 %v1365
        %2806 = vmatpush.bf16.msra.mxu0 %v1361
        %2807 = vmatpush.bf16.msra.mxu0 %v1357
        %2808 = vmatmul.bf16.gmra.mxu0 %v504
        %v2809 = vpop.f32.mrf.mxu0
        %v2810 = vadd.f32 %v761, %v2809
        %v2811 = vpop.f32.mrf.mxu0
        %v2812 = vadd.f32 %v761, %v2811
        %2813 = vmatmul.bf16.gmra.mxu0 %v511
        %v2814 = vpop.f32.mrf.mxu0
        %v2815 = vadd.f32 %v761, %v2814
        %v2816 = vpop.f32.mrf.mxu0
        %v2817 = vadd.f32 %v761, %v2816
        %2818 = vmatmul.bf16.gmra.mxu0 %v518
        %v2819 = vpop.f32.mrf.mxu0
        %v2820 = vadd.f32 %v761, %v2819
        %v2821 = vpop.f32.mrf.mxu0
        %v2822 = vadd.f32 %v761, %v2821
        %2823 = vmatmul.bf16.gmra.mxu0 %v525
        %v2824 = vpop.f32.mrf.mxu0
        %v2825 = vadd.f32 %v761, %v2824
        %v2826 = vpop.f32.mrf.mxu0
        %v2827 = vadd.f32 %v761, %v2826
        %2828 = vmatmul.bf16.gmra.mxu0 %v532
        %v2829 = vpop.f32.mrf.mxu0
        %v2830 = vadd.f32 %v761, %v2829
        %v2831 = vpop.f32.mrf.mxu0
        %v2832 = vadd.f32 %v761, %v2831
        %2833 = vmatmul.bf16.gmra.mxu0 %v539
        %v2834 = vpop.f32.mrf.mxu0
        %v2835 = vadd.f32 %v761, %v2834
        %v2836 = vpop.f32.mrf.mxu0
        %v2837 = vadd.f32 %v761, %v2836
        %2838 = vmatmul.bf16.gmra.mxu0 %v546
        %v2839 = vpop.f32.mrf.mxu0
        %v2840 = vadd.f32 %v761, %v2839
        %v2841 = vpop.f32.mrf.mxu0
        %v2842 = vadd.f32 %v761, %v2841
        %2843 = vmatmul.bf16.gmra.mxu0 %v553
        %v2844 = vpop.f32.mrf.mxu0
        %v2845 = vadd.f32 %v761, %v2844
        %v2846 = vpop.f32.mrf.mxu0
        %v2847 = vadd.f32 %v761, %v2846
        %2848 = vdwg.mxu0
        %2849 = vmatpush.bf16.msra.mxu0 %v1417
        %2850 = vmatpush.bf16.msra.mxu0 %v1413
        %2851 = vmatpush.bf16.msra.mxu0 %v1409
        %2852 = vmatpush.bf16.msra.mxu0 %v1405
        %2853 = vmatpush.bf16.msra.mxu0 %v1401
        %2854 = vmatpush.bf16.msra.mxu0 %v1397
        %2855 = vmatpush.bf16.msra.mxu0 %v1393
        %2856 = vmatpush.bf16.msra.mxu0 %v1389
        %2857 = vmatmul.bf16.gmra.mxu0 %v505
        %v2858 = vpop.f32.mrf.mxu0
        %v2859 = vadd.f32 %v2810, %v2858
        %v2860 = vpop.f32.mrf.mxu0
        %v2861 = vadd.f32 %v2812, %v2860
        %2862 = vmatmul.bf16.gmra.mxu0 %v512
        %v2863 = vpop.f32.mrf.mxu0
        %v2864 = vadd.f32 %v2815, %v2863
        %v2865 = vpop.f32.mrf.mxu0
        %v2866 = vadd.f32 %v2817, %v2865
        %2867 = vmatmul.bf16.gmra.mxu0 %v519
        %v2868 = vpop.f32.mrf.mxu0
        %v2869 = vadd.f32 %v2820, %v2868
        %v2870 = vpop.f32.mrf.mxu0
        %v2871 = vadd.f32 %v2822, %v2870
        %2872 = vmatmul.bf16.gmra.mxu0 %v526
        %v2873 = vpop.f32.mrf.mxu0
        %v2874 = vadd.f32 %v2825, %v2873
        %v2875 = vpop.f32.mrf.mxu0
        %v2876 = vadd.f32 %v2827, %v2875
        %2877 = vmatmul.bf16.gmra.mxu0 %v533
        %v2878 = vpop.f32.mrf.mxu0
        %v2879 = vadd.f32 %v2830, %v2878
        %v2880 = vpop.f32.mrf.mxu0
        %v2881 = vadd.f32 %v2832, %v2880
        %2882 = vmatmul.bf16.gmra.mxu0 %v540
        %v2883 = vpop.f32.mrf.mxu0
        %v2884 = vadd.f32 %v2835, %v2883
        %v2885 = vpop.f32.mrf.mxu0
        %v2886 = vadd.f32 %v2837, %v2885
        %2887 = vmatmul.bf16.gmra.mxu0 %v547
        %v2888 = vpop.f32.mrf.mxu0
        %v2889 = vadd.f32 %v2840, %v2888
        %v2890 = vpop.f32.mrf.mxu0
        %v2891 = vadd.f32 %v2842, %v2890
        %2892 = vmatmul.bf16.gmra.mxu0 %v554
        %v2893 = vpop.f32.mrf.mxu0
        %v2894 = vadd.f32 %v2845, %v2893
        %v2895 = vpop.f32.mrf.mxu0
        %v2896 = vadd.f32 %v2847, %v2895
        %2897 = vdwg.mxu0
        %2898 = vmatpush.bf16.msra.mxu0 %v1449
        %2899 = vmatpush.bf16.msra.mxu0 %v1445
        %2900 = vmatpush.bf16.msra.mxu0 %v1441
        %2901 = vmatpush.bf16.msra.mxu0 %v1437
        %2902 = vmatpush.bf16.msra.mxu0 %v1433
        %2903 = vmatpush.bf16.msra.mxu0 %v1429
        %2904 = vmatpush.bf16.msra.mxu0 %v1425
        %2905 = vmatpush.bf16.msra.mxu0 %v1421
        %2906 = vmatmul.bf16.gmra.mxu0 %v506
        %v2907 = vpop.f32.mrf.mxu0
        %v2908 = vadd.f32 %v2859, %v2907
        %v2909 = vpop.f32.mrf.mxu0
        %v2910 = vadd.f32 %v2861, %v2909
        %2911 = vmatmul.bf16.gmra.mxu0 %v513
        %v2912 = vpop.f32.mrf.mxu0
        %v2913 = vadd.f32 %v2864, %v2912
        %v2914 = vpop.f32.mrf.mxu0
        %v2915 = vadd.f32 %v2866, %v2914
        %2916 = vmatmul.bf16.gmra.mxu0 %v520
        %v2917 = vpop.f32.mrf.mxu0
        %v2918 = vadd.f32 %v2869, %v2917
        %v2919 = vpop.f32.mrf.mxu0
        %v2920 = vadd.f32 %v2871, %v2919
        %2921 = vmatmul.bf16.gmra.mxu0 %v527
        %v2922 = vpop.f32.mrf.mxu0
        %v2923 = vadd.f32 %v2874, %v2922
        %v2924 = vpop.f32.mrf.mxu0
        %v2925 = vadd.f32 %v2876, %v2924
        %2926 = vmatmul.bf16.gmra.mxu0 %v534
        %v2927 = vpop.f32.mrf.mxu0
        %v2928 = vadd.f32 %v2879, %v2927
        %v2929 = vpop.f32.mrf.mxu0
        %v2930 = vadd.f32 %v2881, %v2929
        %2931 = vmatmul.bf16.gmra.mxu0 %v541
        %v2932 = vpop.f32.mrf.mxu0
        %v2933 = vadd.f32 %v2884, %v2932
        %v2934 = vpop.f32.mrf.mxu0
        %v2935 = vadd.f32 %v2886, %v2934
        %2936 = vmatmul.bf16.gmra.mxu0 %v548
        %v2937 = vpop.f32.mrf.mxu0
        %v2938 = vadd.f32 %v2889, %v2937
        %v2939 = vpop.f32.mrf.mxu0
        %v2940 = vadd.f32 %v2891, %v2939
        %2941 = vmatmul.bf16.gmra.mxu0 %v555
        %v2942 = vpop.f32.mrf.mxu0
        %v2943 = vadd.f32 %v2894, %v2942
        %v2944 = vpop.f32.mrf.mxu0
        %v2945 = vadd.f32 %v2896, %v2944
        %2946 = vdwg.mxu0
        %2947 = vmatpush.bf16.msra.mxu0 %v1481
        %2948 = vmatpush.bf16.msra.mxu0 %v1477
        %2949 = vmatpush.bf16.msra.mxu0 %v1473
        %2950 = vmatpush.bf16.msra.mxu0 %v1469
        %2951 = vmatpush.bf16.msra.mxu0 %v1465
        %2952 = vmatpush.bf16.msra.mxu0 %v1461
        %2953 = vmatpush.bf16.msra.mxu0 %v1457
        %2954 = vmatpush.bf16.msra.mxu0 %v1453
        %2955 = vmatmul.bf16.gmra.mxu0 %v507
        %v2956 = vpop.f32.mrf.mxu0
        %v2957 = vadd.f32 %v2908, %v2956
        %v2958 = vpop.f32.mrf.mxu0
        %v2959 = vadd.f32 %v2910, %v2958
        %2960 = vmatmul.bf16.gmra.mxu0 %v514
        %v2961 = vpop.f32.mrf.mxu0
        %v2962 = vadd.f32 %v2913, %v2961
        %v2963 = vpop.f32.mrf.mxu0
        %v2964 = vadd.f32 %v2915, %v2963
        %2965 = vmatmul.bf16.gmra.mxu0 %v521
        %v2966 = vpop.f32.mrf.mxu0
        %v2967 = vadd.f32 %v2918, %v2966
        %v2968 = vpop.f32.mrf.mxu0
        %v2969 = vadd.f32 %v2920, %v2968
        %2970 = vmatmul.bf16.gmra.mxu0 %v528
        %v2971 = vpop.f32.mrf.mxu0
        %v2972 = vadd.f32 %v2923, %v2971
        %v2973 = vpop.f32.mrf.mxu0
        %v2974 = vadd.f32 %v2925, %v2973
        %2975 = vmatmul.bf16.gmra.mxu0 %v535
        %v2976 = vpop.f32.mrf.mxu0
        %v2977 = vadd.f32 %v2928, %v2976
        %v2978 = vpop.f32.mrf.mxu0
        %v2979 = vadd.f32 %v2930, %v2978
        %2980 = vmatmul.bf16.gmra.mxu0 %v542
        %v2981 = vpop.f32.mrf.mxu0
        %v2982 = vadd.f32 %v2933, %v2981
        %v2983 = vpop.f32.mrf.mxu0
        %v2984 = vadd.f32 %v2935, %v2983
        %2985 = vmatmul.bf16.gmra.mxu0 %v549
        %v2986 = vpop.f32.mrf.mxu0
        %v2987 = vadd.f32 %v2938, %v2986
        %v2988 = vpop.f32.mrf.mxu0
        %v2989 = vadd.f32 %v2940, %v2988
        %2990 = vmatmul.bf16.gmra.mxu0 %v556
        %v2991 = vpop.f32.mrf.mxu0
        %v2992 = vadd.f32 %v2943, %v2991
        %v2993 = vpop.f32.mrf.mxu0
        %v2994 = vadd.f32 %v2945, %v2993
        %2995 = vdwg.mxu0
        %2996 = vmatpush.bf16.msra.mxu0 %v1513
        %2997 = vmatpush.bf16.msra.mxu0 %v1509
        %2998 = vmatpush.bf16.msra.mxu0 %v1505
        %2999 = vmatpush.bf16.msra.mxu0 %v1501
        %3000 = vmatpush.bf16.msra.mxu0 %v1497
        %3001 = vmatpush.bf16.msra.mxu0 %v1493
        %3002 = vmatpush.bf16.msra.mxu0 %v1489
        %3003 = vmatpush.bf16.msra.mxu0 %v1485
        %3004 = vmatmul.bf16.gmra.mxu0 %v508
        %v3005 = vpop.f32.mrf.mxu0
        %v3006 = vadd.f32 %v2957, %v3005
        %v3007 = vpop.f32.mrf.mxu0
        %v3008 = vadd.f32 %v2959, %v3007
        %3009 = vmatmul.bf16.gmra.mxu0 %v515
        %v3010 = vpop.f32.mrf.mxu0
        %v3011 = vadd.f32 %v2962, %v3010
        %v3012 = vpop.f32.mrf.mxu0
        %v3013 = vadd.f32 %v2964, %v3012
        %3014 = vmatmul.bf16.gmra.mxu0 %v522
        %v3015 = vpop.f32.mrf.mxu0
        %v3016 = vadd.f32 %v2967, %v3015
        %v3017 = vpop.f32.mrf.mxu0
        %v3018 = vadd.f32 %v2969, %v3017
        %3019 = vmatmul.bf16.gmra.mxu0 %v529
        %v3020 = vpop.f32.mrf.mxu0
        %v3021 = vadd.f32 %v2972, %v3020
        %v3022 = vpop.f32.mrf.mxu0
        %v3023 = vadd.f32 %v2974, %v3022
        %3024 = vmatmul.bf16.gmra.mxu0 %v536
        %v3025 = vpop.f32.mrf.mxu0
        %v3026 = vadd.f32 %v2977, %v3025
        %v3027 = vpop.f32.mrf.mxu0
        %v3028 = vadd.f32 %v2979, %v3027
        %3029 = vmatmul.bf16.gmra.mxu0 %v543
        %v3030 = vpop.f32.mrf.mxu0
        %v3031 = vadd.f32 %v2982, %v3030
        %v3032 = vpop.f32.mrf.mxu0
        %v3033 = vadd.f32 %v2984, %v3032
        %3034 = vmatmul.bf16.gmra.mxu0 %v550
        %v3035 = vpop.f32.mrf.mxu0
        %v3036 = vadd.f32 %v2987, %v3035
        %v3037 = vpop.f32.mrf.mxu0
        %v3038 = vadd.f32 %v2989, %v3037
        %3039 = vmatmul.bf16.gmra.mxu0 %v557
        %v3040 = vpop.f32.mrf.mxu0
        %v3041 = vadd.f32 %v2992, %v3040
        %v3042 = vpop.f32.mrf.mxu0
        %v3043 = vadd.f32 %v2994, %v3042
        %3044 = vdwg.mxu0
        %3045 = vmatpush.bf16.msra.mxu0 %v1545
        %3046 = vmatpush.bf16.msra.mxu0 %v1541
        %3047 = vmatpush.bf16.msra.mxu0 %v1537
        %3048 = vmatpush.bf16.msra.mxu0 %v1533
        %3049 = vmatpush.bf16.msra.mxu0 %v1529
        %3050 = vmatpush.bf16.msra.mxu0 %v1525
        %3051 = vmatpush.bf16.msra.mxu0 %v1521
        %3052 = vmatpush.bf16.msra.mxu0 %v1517
        %3053 = vmatmul.bf16.gmra.mxu0 %v509
        %v3054 = vpop.f32.mrf.mxu0
        %v3055 = vadd.f32 %v3006, %v3054
        %v3056 = vpop.f32.mrf.mxu0
        %v3057 = vadd.f32 %v3008, %v3056
        %3058 = vmatmul.bf16.gmra.mxu0 %v516
        %v3059 = vpop.f32.mrf.mxu0
        %v3060 = vadd.f32 %v3011, %v3059
        %v3061 = vpop.f32.mrf.mxu0
        %v3062 = vadd.f32 %v3013, %v3061
        %3063 = vmatmul.bf16.gmra.mxu0 %v523
        %v3064 = vpop.f32.mrf.mxu0
        %v3065 = vadd.f32 %v3016, %v3064
        %v3066 = vpop.f32.mrf.mxu0
        %v3067 = vadd.f32 %v3018, %v3066
        %3068 = vmatmul.bf16.gmra.mxu0 %v530
        %v3069 = vpop.f32.mrf.mxu0
        %v3070 = vadd.f32 %v3021, %v3069
        %v3071 = vpop.f32.mrf.mxu0
        %v3072 = vadd.f32 %v3023, %v3071
        %3073 = vmatmul.bf16.gmra.mxu0 %v537
        %v3074 = vpop.f32.mrf.mxu0
        %v3075 = vadd.f32 %v3026, %v3074
        %v3076 = vpop.f32.mrf.mxu0
        %v3077 = vadd.f32 %v3028, %v3076
        %3078 = vmatmul.bf16.gmra.mxu0 %v544
        %v3079 = vpop.f32.mrf.mxu0
        %v3080 = vadd.f32 %v3031, %v3079
        %v3081 = vpop.f32.mrf.mxu0
        %v3082 = vadd.f32 %v3033, %v3081
        %3083 = vmatmul.bf16.gmra.mxu0 %v551
        %v3084 = vpop.f32.mrf.mxu0
        %v3085 = vadd.f32 %v3036, %v3084
        %v3086 = vpop.f32.mrf.mxu0
        %v3087 = vadd.f32 %v3038, %v3086
        %3088 = vmatmul.bf16.gmra.mxu0 %v558
        %v3089 = vpop.f32.mrf.mxu0
        %v3090 = vadd.f32 %v3041, %v3089
        %v3091 = vpop.f32.mrf.mxu0
        %v3092 = vadd.f32 %v3043, %v3091
        %3093 = vdwg.mxu0
        %3094 = vmatpush.bf16.msra.mxu0 0
        %3095 = vmatpush.bf16.msra.mxu0 0
        %3096 = vmatpush.bf16.msra.mxu0 0
        %3097 = vmatpush.bf16.msra.mxu0 0
        %3098 = vmatpush.bf16.msra.mxu0 0
        %3099 = vmatpush.bf16.msra.mxu0 0
        %3100 = vmatpush.bf16.msra.mxu0 0
        %3101 = vmatpush.bf16.msra.mxu0 %v1549
        %3102 = vmatmul.bf16.gmra.mxu0 %v1748
        %v3103 = vpop.f32.mrf.mxu0
        %v3104 = vadd.f32 %v3055, %v3103
        %v3105 = vpop.f32.mrf.mxu0
        %v3106 = vadd.f32 %v3057, %v3105
        %3107 = vmatmul.bf16.gmra.mxu0 %v1751
        %v3108 = vpop.f32.mrf.mxu0
        %v3109 = vadd.f32 %v3060, %v3108
        %v3110 = vpop.f32.mrf.mxu0
        %v3111 = vadd.f32 %v3062, %v3110
        %3112 = vmatmul.bf16.gmra.mxu0 %v1754
        %v3113 = vpop.f32.mrf.mxu0
        %v3114 = vadd.f32 %v3065, %v3113
        %v3115 = vpop.f32.mrf.mxu0
        %v3116 = vadd.f32 %v3067, %v3115
        %3117 = vmatmul.bf16.gmra.mxu0 %v1757
        %v3118 = vpop.f32.mrf.mxu0
        %v3119 = vadd.f32 %v3070, %v3118
        %v3120 = vpop.f32.mrf.mxu0
        %v3121 = vadd.f32 %v3072, %v3120
        %3122 = vmatmul.bf16.gmra.mxu0 %v1760
        %v3123 = vpop.f32.mrf.mxu0
        %v3124 = vadd.f32 %v3075, %v3123
        %v3125 = vpop.f32.mrf.mxu0
        %v3126 = vadd.f32 %v3077, %v3125
        %3127 = vmatmul.bf16.gmra.mxu0 %v1763
        %v3128 = vpop.f32.mrf.mxu0
        %v3129 = vadd.f32 %v3080, %v3128
        %v3130 = vpop.f32.mrf.mxu0
        %v3131 = vadd.f32 %v3082, %v3130
        %3132 = vmatmul.bf16.gmra.mxu0 %v1766
        %v3133 = vpop.f32.mrf.mxu0
        %v3134 = vadd.f32 %v3085, %v3133
        %v3135 = vpop.f32.mrf.mxu0
        %v3136 = vadd.f32 %v3087, %v3135
        %3137 = vmatmul.bf16.gmra.mxu0 %v1769
        %v3138 = vpop.f32.mrf.mxu0
        %v3139 = vadd.f32 %v3090, %v3138
        %v3140 = vpop.f32.mrf.mxu0
        %v3141 = vadd.f32 %v3092, %v3140
        %3142 = vdwg.mxu0
        %v3143 = vmax.f32 %v2075, 0.0
        %v3144 = vmax.f32 %v2418, 0.0
        %v3145 = vmax.f32 %v2761, 0.0
        %v3146 = vmax.f32 %v3104, 0.0
        %v3147 = vmax.f32 %v2077, 0.0
        %v3148 = vmax.f32 %v2420, 0.0
        %v3149 = vmax.f32 %v2763, 0.0
        %v3150 = vmax.f32 %v3106, 0.0
        %v3151 = vmax.f32 %v2080, 0.0
        %v3152 = vmax.f32 %v2423, 0.0
        %v3153 = vmax.f32 %v2766, 0.0
        %v3154 = vmax.f32 %v3109, 0.0
        %v3155 = vmax.f32 %v2082, 0.0
        %v3156 = vmax.f32 %v2425, 0.0
        %v3157 = vmax.f32 %v2768, 0.0
        %v3158 = vmax.f32 %v3111, 0.0
        %v3159 = vmax.f32 %v2085, 0.0
        %v3160 = vmax.f32 %v2428, 0.0
        %v3161 = vmax.f32 %v2771, 0.0
        %v3162 = vmax.f32 %v3114, 0.0
        %v3163 = vmax.f32 %v2087, 0.0
        %v3164 = vmax.f32 %v2430, 0.0
        %v3165 = vmax.f32 %v2773, 0.0
        %v3166 = vmax.f32 %v3116, 0.0
        %v3167 = vmax.f32 %v2090, 0.0
        %v3168 = vmax.f32 %v2433, 0.0
        %v3169 = vmax.f32 %v2776, 0.0
        %v3170 = vmax.f32 %v3119, 0.0
        %v3171 = vmax.f32 %v2092, 0.0
        %v3172 = vmax.f32 %v2435, 0.0
        %v3173 = vmax.f32 %v2778, 0.0
        %v3174 = vmax.f32 %v3121, 0.0
        %v3175 = vmax.f32 %v2095, 0.0
        %v3176 = vmax.f32 %v2438, 0.0
        %v3177 = vmax.f32 %v2781, 0.0
        %v3178 = vmax.f32 %v3124, 0.0
        %v3179 = vmax.f32 %v2097, 0.0
        %v3180 = vmax.f32 %v2440, 0.0
        %v3181 = vmax.f32 %v2783, 0.0
        %v3182 = vmax.f32 %v3126, 0.0
        %v3183 = vmax.f32 %v2100, 0.0
        %v3184 = vmax.f32 %v2443, 0.0
        %v3185 = vmax.f32 %v2786, 0.0
        %v3186 = vmax.f32 %v3129, 0.0
        %v3187 = vmax.f32 %v2102, 0.0
        %v3188 = vmax.f32 %v2445, 0.0
        %v3189 = vmax.f32 %v2788, 0.0
        %v3190 = vmax.f32 %v3131, 0.0
        %v3191 = vmax.f32 %v2105, 0.0
        %v3192 = vmax.f32 %v2448, 0.0
        %v3193 = vmax.f32 %v2791, 0.0
        %v3194 = vmax.f32 %v3134, 0.0
        %v3195 = vmax.f32 %v2107, 0.0
        %v3196 = vmax.f32 %v2450, 0.0
        %v3197 = vmax.f32 %v2793, 0.0
        %v3198 = vmax.f32 %v3136, 0.0
        %v3199 = vmax.f32 %v2110, 0.0
        %v3200 = vmax.f32 %v2453, 0.0
        %v3201 = vmax.f32 %v2796, 0.0
        %v3202 = vmax.f32 %v3139, 0.0
        %v3203 = vmax.f32 %v2112, 0.0
        %v3204 = vmax.f32 %v2455, 0.0
        %v3205 = vmax.f32 %v2798, 0.0
        %v3206 = vmax.f32 %v3141, 0.0
        %v3207 = vpack.c.bf16 %v3147, %v3143
        %v3208 = vpack.c.bf16 %v3148, %v3144
        %v3209 = vpack.c.bf16 %v3149, %v3145
        %v3210 = vpack.c.bf16 %v3150, %v3146
        %v3211 = vpack.c.bf16 %v3155, %v3151
        %v3212 = vpack.c.bf16 %v3156, %v3152
        %v3213 = vpack.c.bf16 %v3157, %v3153
        %v3214 = vpack.c.bf16 %v3158, %v3154
        %v3215 = vpack.c.bf16 %v3163, %v3159
        %v3216 = vpack.c.bf16 %v3164, %v3160
        %v3217 = vpack.c.bf16 %v3165, %v3161
        %v3218 = vpack.c.bf16 %v3166, %v3162
        %v3219 = vpack.c.bf16 %v3171, %v3167
        %v3220 = vpack.c.bf16 %v3172, %v3168
        %v3221 = vpack.c.bf16 %v3173, %v3169
        %v3222 = vpack.c.bf16 %v3174, %v3170
        %v3223 = vpack.c.bf16 %v3179, %v3175
        %v3224 = vpack.c.bf16 %v3180, %v3176
        %v3225 = vpack.c.bf16 %v3181, %v3177
        %v3226 = vpack.c.bf16 %v3182, %v3178
        %v3227 = vpack.c.bf16 %v3187, %v3183
        %v3228 = vpack.c.bf16 %v3188, %v3184
        %v3229 = vpack.c.bf16 %v3189, %v3185
        %v3230 = vpack.c.bf16 %v3190, %v3186
        %v3231 = vpack.c.bf16 %v3195, %v3191
        %v3232 = vpack.c.bf16 %v3196, %v3192
        %v3233 = vpack.c.bf16 %v3197, %v3193
        %v3234 = vpack.c.bf16 %v3198, %v3194
        %v3235 = vpack.c.bf16 %v3203, %v3199
        %v3236 = vpack.c.bf16 %v3204, %v3200
        %v3237 = vpack.c.bf16 %v3205, %v3201
        %v3238 = vpack.c.bf16 %v3206, %v3202
        %v3239 = vld [vmem:[%s3] sm:$0xff]
        %v3240 = vld [vmem:[%s3 + $0x8] sm:$0xff]
        %v3241 = vld [vmem:[%s3 + $0x10] sm:$0xff]
        %v3242 = vld [vmem:[%s3 + $0x18] sm:$0xff]
        %v3243 = vld [vmem:[%s3 + $0x20] sm:$0xff]
        %v3244 = vld [vmem:[%s3 + $0x28] sm:$0xff]
        %v3245 = vld [vmem:[%s3 + $0x30] sm:$0xff]
        %v3246 = vld [vmem:[%s3 + $0x38] sm:$0xff]
        %v3247 = vld [vmem:[%s3 + $0x40] sm:$0xff]
        %v3248 = vld [vmem:[%s3 + $0x48] sm:$0xff]
        %v3249 = vld [vmem:[%s3 + $0x50] sm:$0xff]
        %v3250 = vld [vmem:[%s3 + $0x58] sm:$0xff]
        %v3251 = vld [vmem:[%s3 + $0x60] sm:$0xff]
        %v3252 = vld [vmem:[%s3 + $0x68] sm:$0xff]
        %v3253 = vld [vmem:[%s3 + $0x70] sm:$0xff]
        %v3254 = vld [vmem:[%s3 + $0x78] sm:$0xff]
        %v3255 = vld [vmem:[%s3 + $0x80] sm:$0xff]
        %v3256 = vld [vmem:[%s3 + $0x88] sm:$0xff]
        %v3257 = vld [vmem:[%s3 + $0x90] sm:$0xff]
        %v3258 = vld [vmem:[%s3 + $0x98] sm:$0xff]
        %v3259 = vld [vmem:[%s3 + $0xa0] sm:$0xff]
        %v3260 = vld [vmem:[%s3 + $0xa8] sm:$0xff]
        %v3261 = vld [vmem:[%s3 + $0xb0] sm:$0xff]
        %v3262 = vld [vmem:[%s3 + $0xb8] sm:$0xff]
        %v3263 = vld [vmem:[%s3 + $0xc0] sm:$0xff]
        %v3264 = vld [vmem:[%s3 + $0xc8] sm:$0xff]
        %v3265 = vld [vmem:[%s3 + $0xd0] sm:$0xff]
        %v3266 = vld [vmem:[%s3 + $0xd8] sm:$0xff]
        %v3267 = vld [vmem:[%s3 + $0xe0] sm:$0xff]
        %v3268 = vld [vmem:[%s3 + $0xe8] sm:$0xff]
        %v3269 = vld [vmem:[%s3 + $0xf0] sm:$0xff]
        %v3270 = vld [vmem:[%s3 + $0xf8] sm:$0xff]
        %v3271 = vld [vmem:[%s3 + $0x100] sm:$0xff]
        %v3272 = vld [vmem:[%s3 + $0x108] sm:$0xff]
        %v3273 = vld [vmem:[%s3 + $0x110] sm:$0xff]
        %v3274 = vld [vmem:[%s3 + $0x118] sm:$0xff]
        %v3275 = vld [vmem:[%s3 + $0x120] sm:$0xff]
        %v3276 = vld [vmem:[%s3 + $0x128] sm:$0xff]
        %v3277 = vld [vmem:[%s3 + $0x130] sm:$0xff]
        %v3278 = vld [vmem:[%s3 + $0x138] sm:$0xff]
        %v3279 = vld [vmem:[%s3 + $0x140] sm:$0xff]
        %v3280 = vld [vmem:[%s3 + $0x148] sm:$0xff]
        %v3281 = vld [vmem:[%s3 + $0x150] sm:$0xff]
        %v3282 = vld [vmem:[%s3 + $0x158] sm:$0xff]
        %v3283 = vld [vmem:[%s3 + $0x160] sm:$0xff]
        %v3284 = vld [vmem:[%s3 + $0x168] sm:$0xff]
        %v3285 = vld [vmem:[%s3 + $0x170] sm:$0xff]
        %v3286 = vld [vmem:[%s3 + $0x178] sm:$0xff]
        %v3287 = vld [vmem:[%s3 + $0x180] sm:$0xff]
        %v3288 = vld [vmem:[%s3 + $0x188] sm:$0xff]
        %v3289 = vld [vmem:[%s3 + $0x190] sm:$0xff]
        %v3290 = vld [vmem:[%s3 + $0x198] sm:$0xff]
        %v3291 = vld [vmem:[%s3 + $0x1a0] sm:$0xff]
        %v3292 = vld [vmem:[%s3 + $0x1a8] sm:$0xff]
        %v3293 = vld [vmem:[%s3 + $0x1b0] sm:$0xff]
        %v3294 = vld [vmem:[%s3 + $0x1b8] sm:$0xff]
        %v3295 = vld [vmem:[%s3 + $0x1c0] sm:$0xff]
        %v3296 = vld [vmem:[%s3 + $0x1c8] sm:$0xff]
        %v3297 = vld [vmem:[%s3 + $0x1d0] sm:$0xff]
        %v3298 = vld [vmem:[%s3 + $0x1d8] sm:$0xff]
        %v3299 = vld [vmem:[%s3 + $0x1e0] sm:$0xff]
        %v3300 = vld [vmem:[%s3 + $0x1e8] sm:$0xff]
        %v3301 = vld [vmem:[%s3 + $0x1f0] sm:$0xff]
        %v3302 = vld [vmem:[%s3 + $0x1f8] sm:$0xff]
        %v3303 = vld [vmem:[%s4] sm:$0x3]
        %v3305 = vperm.slane %v3303, 0
        %v3306 = vperm.slane %v3303, 1
        %v3373 = vunpack.c.l.b16 %v3239
        %v3374 = vunpack.c.h.b16 %v3239
        %v3375 = vunpack.c.l.b16 %v3240
        %v3376 = vunpack.c.h.b16 %v3240
        %v3377 = vunpack.c.l.b16 %v3241
        %v3378 = vunpack.c.h.b16 %v3241
        %v3379 = vunpack.c.l.b16 %v3242
        %v3380 = vunpack.c.h.b16 %v3242
        %v3381 = vunpack.c.l.b16 %v3243
        %v3382 = vunpack.c.h.b16 %v3243
        %v3383 = vunpack.c.l.b16 %v3244
        %v3384 = vunpack.c.h.b16 %v3244
        %v3385 = vunpack.c.l.b16 %v3245
        %v3386 = vunpack.c.h.b16 %v3245
        %v3387 = vunpack.c.l.b16 %v3246
        %v3388 = vunpack.c.h.b16 %v3246
        %v3389 = vunpack.c.l.b16 %v3247
        %v3390 = vunpack.c.h.b16 %v3247
        %v3391 = vunpack.c.l.b16 %v3248
        %v3392 = vunpack.c.h.b16 %v3248
        %v3393 = vunpack.c.l.b16 %v3249
        %v3394 = vunpack.c.h.b16 %v3249
        %v3395 = vunpack.c.l.b16 %v3250
        %v3396 = vunpack.c.h.b16 %v3250
        %v3397 = vunpack.c.l.b16 %v3251
        %v3398 = vunpack.c.h.b16 %v3251
        %v3399 = vunpack.c.l.b16 %v3252
        %v3400 = vunpack.c.h.b16 %v3252
        %v3401 = vunpack.c.l.b16 %v3253
        %v3402 = vunpack.c.h.b16 %v3253
        %v3403 = vunpack.c.l.b16 %v3254
        %v3404 = vunpack.c.h.b16 %v3254
        %v3405 = vunpack.c.l.b16 %v3255
        %v3406 = vunpack.c.h.b16 %v3255
        %v3407 = vunpack.c.l.b16 %v3256
        %v3408 = vunpack.c.h.b16 %v3256
        %v3409 = vunpack.c.l.b16 %v3257
        %v3410 = vunpack.c.h.b16 %v3257
        %v3411 = vunpack.c.l.b16 %v3258
        %v3412 = vunpack.c.h.b16 %v3258
        %v3413 = vunpack.c.l.b16 %v3259
        %v3414 = vunpack.c.h.b16 %v3259
        %v3415 = vunpack.c.l.b16 %v3260
        %v3416 = vunpack.c.h.b16 %v3260
        %v3417 = vunpack.c.l.b16 %v3261
        %v3418 = vunpack.c.h.b16 %v3261
        %v3419 = vunpack.c.l.b16 %v3262
        %v3420 = vunpack.c.h.b16 %v3262
        %v3421 = vunpack.c.l.b16 %v3263
        %v3422 = vunpack.c.h.b16 %v3263
        %v3423 = vunpack.c.l.b16 %v3264
        %v3424 = vunpack.c.h.b16 %v3264
        %v3425 = vunpack.c.l.b16 %v3265
        %v3426 = vunpack.c.h.b16 %v3265
        %v3427 = vunpack.c.l.b16 %v3266
        %v3428 = vunpack.c.h.b16 %v3266
        %v3429 = vunpack.c.l.b16 %v3267
        %v3430 = vunpack.c.h.b16 %v3267
        %v3431 = vunpack.c.l.b16 %v3268
        %v3432 = vunpack.c.h.b16 %v3268
        %v3433 = vunpack.c.l.b16 %v3269
        %v3434 = vunpack.c.h.b16 %v3269
        %v3435 = vunpack.c.l.b16 %v3270
        %v3436 = vunpack.c.h.b16 %v3270
        %v3437 = vunpack.c.l.b16 %v3271
        %v3438 = vunpack.c.h.b16 %v3271
        %v3439 = vunpack.c.l.b16 %v3272
        %v3440 = vunpack.c.h.b16 %v3272
        %v3441 = vunpack.c.l.b16 %v3273
        %v3442 = vunpack.c.h.b16 %v3273
        %v3443 = vunpack.c.l.b16 %v3274
        %v3444 = vunpack.c.h.b16 %v3274
        %v3445 = vunpack.c.l.b16 %v3275
        %v3446 = vunpack.c.h.b16 %v3275
        %v3447 = vunpack.c.l.b16 %v3276
        %v3448 = vunpack.c.h.b16 %v3276
        %v3449 = vunpack.c.l.b16 %v3277
        %v3450 = vunpack.c.h.b16 %v3277
        %v3451 = vunpack.c.l.b16 %v3278
        %v3452 = vunpack.c.h.b16 %v3278
        %v3453 = vunpack.c.l.b16 %v3279
        %v3454 = vunpack.c.h.b16 %v3279
        %v3455 = vunpack.c.l.b16 %v3280
        %v3456 = vunpack.c.h.b16 %v3280
        %v3457 = vunpack.c.l.b16 %v3281
        %v3458 = vunpack.c.h.b16 %v3281
        %v3459 = vunpack.c.l.b16 %v3282
        %v3460 = vunpack.c.h.b16 %v3282
        %v3461 = vunpack.c.l.b16 %v3283
        %v3462 = vunpack.c.h.b16 %v3283
        %v3463 = vunpack.c.l.b16 %v3284
        %v3464 = vunpack.c.h.b16 %v3284
        %v3465 = vunpack.c.l.b16 %v3285
        %v3466 = vunpack.c.h.b16 %v3285
        %v3467 = vunpack.c.l.b16 %v3286
        %v3468 = vunpack.c.h.b16 %v3286
        %v3469 = vunpack.c.l.b16 %v3287
        %v3470 = vunpack.c.h.b16 %v3287
        %v3471 = vunpack.c.l.b16 %v3288
        %v3472 = vunpack.c.h.b16 %v3288
        %v3473 = vunpack.c.l.b16 %v3289
        %v3474 = vunpack.c.h.b16 %v3289
        %v3475 = vunpack.c.l.b16 %v3290
        %v3476 = vunpack.c.h.b16 %v3290
        %v3477 = vunpack.c.l.b16 %v3291
        %v3478 = vunpack.c.h.b16 %v3291
        %v3479 = vunpack.c.l.b16 %v3292
        %v3480 = vunpack.c.h.b16 %v3292
        %v3481 = vunpack.c.l.b16 %v3293
        %v3482 = vunpack.c.h.b16 %v3293
        %v3483 = vunpack.c.l.b16 %v3294
        %v3484 = vunpack.c.h.b16 %v3294
        %v3485 = vunpack.c.l.b16 %v3295
        %v3486 = vunpack.c.h.b16 %v3295
        %v3487 = vunpack.c.l.b16 %v3296
        %v3488 = vunpack.c.h.b16 %v3296
        %v3489 = vunpack.c.l.b16 %v3297
        %v3490 = vunpack.c.h.b16 %v3297
        %v3491 = vunpack.c.l.b16 %v3298
        %v3492 = vunpack.c.h.b16 %v3298
        %v3493 = vunpack.c.l.b16 %v3299
        %v3494 = vunpack.c.h.b16 %v3299
        %v3495 = vunpack.c.l.b16 %v3300
        %v3496 = vunpack.c.h.b16 %v3300
        %v3497 = vunpack.c.l.b16 %v3301
        %v3498 = vunpack.c.h.b16 %v3301
        %v3499 = vunpack.c.l.b16 %v3302
        %v3500 = vunpack.c.h.b16 %v3302
        %v3501 = vpack.c.b16 %v3375, %v3373
        %v3502 = vpack.c.b16 %v3376, %v3374
        %v3503 = vpack.c.b16 %v3379, %v3377
        %v3504 = vpack.c.b16 %v3380, %v3378
        %v3505 = vpack.c.b16 %v3383, %v3381
        %v3506 = vpack.c.b16 %v3384, %v3382
        %v3507 = vpack.c.b16 %v3387, %v3385
        %v3508 = vpack.c.b16 %v3388, %v3386
        %v3509 = vpack.c.b16 %v3391, %v3389
        %v3510 = vpack.c.b16 %v3392, %v3390
        %v3511 = vpack.c.b16 %v3395, %v3393
        %v3512 = vpack.c.b16 %v3396, %v3394
        %v3513 = vpack.c.b16 %v3399, %v3397
        %v3514 = vpack.c.b16 %v3400, %v3398
        %v3515 = vpack.c.b16 %v3403, %v3401
        %v3516 = vpack.c.b16 %v3404, %v3402
        %v3517 = vpack.c.b16 %v3407, %v3405
        %v3518 = vpack.c.b16 %v3408, %v3406
        %v3519 = vpack.c.b16 %v3411, %v3409
        %v3520 = vpack.c.b16 %v3412, %v3410
        %v3521 = vpack.c.b16 %v3415, %v3413
        %v3522 = vpack.c.b16 %v3416, %v3414
        %v3523 = vpack.c.b16 %v3419, %v3417
        %v3524 = vpack.c.b16 %v3420, %v3418
        %v3525 = vpack.c.b16 %v3423, %v3421
        %v3526 = vpack.c.b16 %v3424, %v3422
        %v3527 = vpack.c.b16 %v3427, %v3425
        %v3528 = vpack.c.b16 %v3428, %v3426
        %v3529 = vpack.c.b16 %v3431, %v3429
        %v3530 = vpack.c.b16 %v3432, %v3430
        %v3531 = vpack.c.b16 %v3435, %v3433
        %v3532 = vpack.c.b16 %v3436, %v3434
        %v3533 = vpack.c.b16 %v3439, %v3437
        %v3534 = vpack.c.b16 %v3440, %v3438
        %v3535 = vpack.c.b16 %v3443, %v3441
        %v3536 = vpack.c.b16 %v3444, %v3442
        %v3537 = vpack.c.b16 %v3447, %v3445
        %v3538 = vpack.c.b16 %v3448, %v3446
        %v3539 = vpack.c.b16 %v3451, %v3449
        %v3540 = vpack.c.b16 %v3452, %v3450
        %v3541 = vpack.c.b16 %v3455, %v3453
        %v3542 = vpack.c.b16 %v3456, %v3454
        %v3543 = vpack.c.b16 %v3459, %v3457
        %v3544 = vpack.c.b16 %v3460, %v3458
        %v3545 = vpack.c.b16 %v3463, %v3461
        %v3546 = vpack.c.b16 %v3464, %v3462
        %v3547 = vpack.c.b16 %v3467, %v3465
        %v3548 = vpack.c.b16 %v3468, %v3466
        %v3549 = vpack.c.b16 %v3471, %v3469
        %v3550 = vpack.c.b16 %v3472, %v3470
        %v3551 = vpack.c.b16 %v3475, %v3473
        %v3552 = vpack.c.b16 %v3476, %v3474
        %v3553 = vpack.c.b16 %v3479, %v3477
        %v3554 = vpack.c.b16 %v3480, %v3478
        %v3555 = vpack.c.b16 %v3483, %v3481
        %v3556 = vpack.c.b16 %v3484, %v3482
        %v3557 = vpack.c.b16 %v3487, %v3485
        %v3558 = vpack.c.b16 %v3488, %v3486
        %v3559 = vpack.c.b16 %v3491, %v3489
        %v3560 = vpack.c.b16 %v3492, %v3490
        %v3561 = vpack.c.b16 %v3495, %v3493
        %v3562 = vpack.c.b16 %v3496, %v3494
        %v3563 = vpack.c.b16 %v3499, %v3497
        %v3564 = vpack.c.b16 %v3500, %v3498
        %3629 = vmatpush.bf16.msra.mxu0 %v3515
        %3630 = vmatpush.bf16.msra.mxu0 %v3513
        %3631 = vmatpush.bf16.msra.mxu0 %v3511
        %3632 = vmatpush.bf16.msra.mxu0 %v3509
        %3633 = vmatpush.bf16.msra.mxu0 %v3507
        %3634 = vmatpush.bf16.msra.mxu0 %v3505
        %3635 = vmatpush.bf16.msra.mxu0 %v3503
        %3636 = vmatpush.bf16.msra.mxu0 %v3501
        %3637 = vmatmul.bf16.gmra.mxu0 %v3207
        %v3638 = vpop.f32.mrf.mxu0
        %v3639 = vadd.f32 %v3305, %v3638
        %v3640 = vpop.f32.mrf.mxu0
        %v3641 = vadd.f32 %v3305, %v3640
        %3642 = vmatmul.bf16.gmra.mxu0 %v3211
        %v3643 = vpop.f32.mrf.mxu0
        %v3644 = vadd.f32 %v3305, %v3643
        %v3645 = vpop.f32.mrf.mxu0
        %v3646 = vadd.f32 %v3305, %v3645
        %3647 = vmatmul.bf16.gmra.mxu0 %v3215
        %v3648 = vpop.f32.mrf.mxu0
        %v3649 = vadd.f32 %v3305, %v3648
        %v3650 = vpop.f32.mrf.mxu0
        %v3651 = vadd.f32 %v3305, %v3650
        %3652 = vmatmul.bf16.gmra.mxu0 %v3219
        %v3653 = vpop.f32.mrf.mxu0
        %v3654 = vadd.f32 %v3305, %v3653
        %v3655 = vpop.f32.mrf.mxu0
        %v3656 = vadd.f32 %v3305, %v3655
        %3657 = vmatmul.bf16.gmra.mxu0 %v3223
        %v3658 = vpop.f32.mrf.mxu0
        %v3659 = vadd.f32 %v3305, %v3658
        %v3660 = vpop.f32.mrf.mxu0
        %v3661 = vadd.f32 %v3305, %v3660
        %3662 = vmatmul.bf16.gmra.mxu0 %v3227
        %v3663 = vpop.f32.mrf.mxu0
        %v3664 = vadd.f32 %v3305, %v3663
        %v3665 = vpop.f32.mrf.mxu0
        %v3666 = vadd.f32 %v3305, %v3665
        %3667 = vmatmul.bf16.gmra.mxu0 %v3231
        %v3668 = vpop.f32.mrf.mxu0
        %v3669 = vadd.f32 %v3305, %v3668
        %v3670 = vpop.f32.mrf.mxu0
        %v3671 = vadd.f32 %v3305, %v3670
        %3672 = vmatmul.bf16.gmra.mxu0 %v3235
        %v3673 = vpop.f32.mrf.mxu0
        %v3674 = vadd.f32 %v3305, %v3673
        %v3675 = vpop.f32.mrf.mxu0
        %v3676 = vadd.f32 %v3305, %v3675
        %3677 = vdwg.mxu0
        %3678 = vmatpush.bf16.msra.mxu0 %v3531
        %3679 = vmatpush.bf16.msra.mxu0 %v3529
        %3680 = vmatpush.bf16.msra.mxu0 %v3527
        %3681 = vmatpush.bf16.msra.mxu0 %v3525
        %3682 = vmatpush.bf16.msra.mxu0 %v3523
        %3683 = vmatpush.bf16.msra.mxu0 %v3521
        %3684 = vmatpush.bf16.msra.mxu0 %v3519
        %3685 = vmatpush.bf16.msra.mxu0 %v3517
        %3686 = vmatmul.bf16.gmra.mxu0 %v3208
        %v3687 = vpop.f32.mrf.mxu0
        %v3688 = vadd.f32 %v3639, %v3687
        %v3689 = vpop.f32.mrf.mxu0
        %v3690 = vadd.f32 %v3641, %v3689
        %3691 = vmatmul.bf16.gmra.mxu0 %v3212
        %v3692 = vpop.f32.mrf.mxu0
        %v3693 = vadd.f32 %v3644, %v3692
        %v3694 = vpop.f32.mrf.mxu0
        %v3695 = vadd.f32 %v3646, %v3694
        %3696 = vmatmul.bf16.gmra.mxu0 %v3216
        %v3697 = vpop.f32.mrf.mxu0
        %v3698 = vadd.f32 %v3649, %v3697
        %v3699 = vpop.f32.mrf.mxu0
        %v3700 = vadd.f32 %v3651, %v3699
        %3701 = vmatmul.bf16.gmra.mxu0 %v3220
        %v3702 = vpop.f32.mrf.mxu0
        %v3703 = vadd.f32 %v3654, %v3702
        %v3704 = vpop.f32.mrf.mxu0
        %v3705 = vadd.f32 %v3656, %v3704
        %3706 = vmatmul.bf16.gmra.mxu0 %v3224
        %v3707 = vpop.f32.mrf.mxu0
        %v3708 = vadd.f32 %v3659, %v3707
        %v3709 = vpop.f32.mrf.mxu0
        %v3710 = vadd.f32 %v3661, %v3709
        %3711 = vmatmul.bf16.gmra.mxu0 %v3228
        %v3712 = vpop.f32.mrf.mxu0
        %v3713 = vadd.f32 %v3664, %v3712
        %v3714 = vpop.f32.mrf.mxu0
        %v3715 = vadd.f32 %v3666, %v3714
        %3716 = vmatmul.bf16.gmra.mxu0 %v3232
        %v3717 = vpop.f32.mrf.mxu0
        %v3718 = vadd.f32 %v3669, %v3717
        %v3719 = vpop.f32.mrf.mxu0
        %v3720 = vadd.f32 %v3671, %v3719
        %3721 = vmatmul.bf16.gmra.mxu0 %v3236
        %v3722 = vpop.f32.mrf.mxu0
        %v3723 = vadd.f32 %v3674, %v3722
        %v3724 = vpop.f32.mrf.mxu0
        %v3725 = vadd.f32 %v3676, %v3724
        %3726 = vdwg.mxu0
        %3727 = vmatpush.bf16.msra.mxu0 %v3547
        %3728 = vmatpush.bf16.msra.mxu0 %v3545
        %3729 = vmatpush.bf16.msra.mxu0 %v3543
        %3730 = vmatpush.bf16.msra.mxu0 %v3541
        %3731 = vmatpush.bf16.msra.mxu0 %v3539
        %3732 = vmatpush.bf16.msra.mxu0 %v3537
        %3733 = vmatpush.bf16.msra.mxu0 %v3535
        %3734 = vmatpush.bf16.msra.mxu0 %v3533
        %3735 = vmatmul.bf16.gmra.mxu0 %v3209
        %v3736 = vpop.f32.mrf.mxu0
        %v3737 = vadd.f32 %v3688, %v3736
        %v3738 = vpop.f32.mrf.mxu0
        %v3739 = vadd.f32 %v3690, %v3738
        %3740 = vmatmul.bf16.gmra.mxu0 %v3213
        %v3741 = vpop.f32.mrf.mxu0
        %v3742 = vadd.f32 %v3693, %v3741
        %v3743 = vpop.f32.mrf.mxu0
        %v3744 = vadd.f32 %v3695, %v3743
        %3745 = vmatmul.bf16.gmra.mxu0 %v3217
        %v3746 = vpop.f32.mrf.mxu0
        %v3747 = vadd.f32 %v3698, %v3746
        %v3748 = vpop.f32.mrf.mxu0
        %v3749 = vadd.f32 %v3700, %v3748
        %3750 = vmatmul.bf16.gmra.mxu0 %v3221
        %v3751 = vpop.f32.mrf.mxu0
        %v3752 = vadd.f32 %v3703, %v3751
        %v3753 = vpop.f32.mrf.mxu0
        %v3754 = vadd.f32 %v3705, %v3753
        %3755 = vmatmul.bf16.gmra.mxu0 %v3225
        %v3756 = vpop.f32.mrf.mxu0
        %v3757 = vadd.f32 %v3708, %v3756
        %v3758 = vpop.f32.mrf.mxu0
        %v3759 = vadd.f32 %v3710, %v3758
        %3760 = vmatmul.bf16.gmra.mxu0 %v3229
        %v3761 = vpop.f32.mrf.mxu0
        %v3762 = vadd.f32 %v3713, %v3761
        %v3763 = vpop.f32.mrf.mxu0
        %v3764 = vadd.f32 %v3715, %v3763
        %3765 = vmatmul.bf16.gmra.mxu0 %v3233
        %v3766 = vpop.f32.mrf.mxu0
        %v3767 = vadd.f32 %v3718, %v3766
        %v3768 = vpop.f32.mrf.mxu0
        %v3769 = vadd.f32 %v3720, %v3768
        %3770 = vmatmul.bf16.gmra.mxu0 %v3237
        %v3771 = vpop.f32.mrf.mxu0
        %v3772 = vadd.f32 %v3723, %v3771
        %v3773 = vpop.f32.mrf.mxu0
        %v3774 = vadd.f32 %v3725, %v3773
        %3775 = vdwg.mxu0
        %3776 = vmatpush.bf16.msra.mxu0 %v3563
        %3777 = vmatpush.bf16.msra.mxu0 %v3561
        %3778 = vmatpush.bf16.msra.mxu0 %v3559
        %3779 = vmatpush.bf16.msra.mxu0 %v3557
        %3780 = vmatpush.bf16.msra.mxu0 %v3555
        %3781 = vmatpush.bf16.msra.mxu0 %v3553
        %3782 = vmatpush.bf16.msra.mxu0 %v3551
        %3783 = vmatpush.bf16.msra.mxu0 %v3549
        %3784 = vmatmul.bf16.gmra.mxu0 %v3210
        %v3785 = vpop.f32.mrf.mxu0
        %v3786 = vadd.f32 %v3737, %v3785
        %v3787 = vpop.f32.mrf.mxu0
        %v3788 = vadd.f32 %v3739, %v3787
        %3789 = vmatmul.bf16.gmra.mxu0 %v3214
        %v3790 = vpop.f32.mrf.mxu0
        %v3791 = vadd.f32 %v3742, %v3790
        %v3792 = vpop.f32.mrf.mxu0
        %v3793 = vadd.f32 %v3744, %v3792
        %3794 = vmatmul.bf16.gmra.mxu0 %v3218
        %v3795 = vpop.f32.mrf.mxu0
        %v3796 = vadd.f32 %v3747, %v3795
        %v3797 = vpop.f32.mrf.mxu0
        %v3798 = vadd.f32 %v3749, %v3797
        %3799 = vmatmul.bf16.gmra.mxu0 %v3222
        %v3800 = vpop.f32.mrf.mxu0
        %v3801 = vadd.f32 %v3752, %v3800
        %v3802 = vpop.f32.mrf.mxu0
        %v3803 = vadd.f32 %v3754, %v3802
        %3804 = vmatmul.bf16.gmra.mxu0 %v3226
        %v3805 = vpop.f32.mrf.mxu0
        %v3806 = vadd.f32 %v3757, %v3805
        %v3807 = vpop.f32.mrf.mxu0
        %v3808 = vadd.f32 %v3759, %v3807
        %3809 = vmatmul.bf16.gmra.mxu0 %v3230
        %v3810 = vpop.f32.mrf.mxu0
        %v3811 = vadd.f32 %v3762, %v3810
        %v3812 = vpop.f32.mrf.mxu0
        %v3813 = vadd.f32 %v3764, %v3812
        %3814 = vmatmul.bf16.gmra.mxu0 %v3234
        %v3815 = vpop.f32.mrf.mxu0
        %v3816 = vadd.f32 %v3767, %v3815
        %v3817 = vpop.f32.mrf.mxu0
        %v3818 = vadd.f32 %v3769, %v3817
        %3819 = vmatmul.bf16.gmra.mxu0 %v3238
        %v3820 = vpop.f32.mrf.mxu0
        %v3821 = vadd.f32 %v3772, %v3820
        %v3822 = vpop.f32.mrf.mxu0
        %v3823 = vadd.f32 %v3774, %v3822
        %3824 = vdwg.mxu0
        %3825 = vmatpush.bf16.msra.mxu0 %v3516
        %3826 = vmatpush.bf16.msra.mxu0 %v3514
        %3827 = vmatpush.bf16.msra.mxu0 %v3512
        %3828 = vmatpush.bf16.msra.mxu0 %v3510
        %3829 = vmatpush.bf16.msra.mxu0 %v3508
        %3830 = vmatpush.bf16.msra.mxu0 %v3506
        %3831 = vmatpush.bf16.msra.mxu0 %v3504
        %3832 = vmatpush.bf16.msra.mxu0 %v3502
        %3833 = vmatmul.bf16.gmra.mxu0 %v3207
        %v3834 = vpop.f32.mrf.mxu0
        %v3835 = vadd.f32 %v3306, %v3834
        %v3836 = vpop.f32.mrf.mxu0
        %v3837 = vadd.f32 %v3306, %v3836
        %3838 = vmatmul.bf16.gmra.mxu0 %v3211
        %v3839 = vpop.f32.mrf.mxu0
        %v3840 = vadd.f32 %v3306, %v3839
        %v3841 = vpop.f32.mrf.mxu0
        %v3842 = vadd.f32 %v3306, %v3841
        %3843 = vmatmul.bf16.gmra.mxu0 %v3215
        %v3844 = vpop.f32.mrf.mxu0
        %v3845 = vadd.f32 %v3306, %v3844
        %v3846 = vpop.f32.mrf.mxu0
        %v3847 = vadd.f32 %v3306, %v3846
        %3848 = vmatmul.bf16.gmra.mxu0 %v3219
        %v3849 = vpop.f32.mrf.mxu0
        %v3850 = vadd.f32 %v3306, %v3849
        %v3851 = vpop.f32.mrf.mxu0
        %v3852 = vadd.f32 %v3306, %v3851
        %3853 = vmatmul.bf16.gmra.mxu0 %v3223
        %v3854 = vpop.f32.mrf.mxu0
        %v3855 = vadd.f32 %v3306, %v3854
        %v3856 = vpop.f32.mrf.mxu0
        %v3857 = vadd.f32 %v3306, %v3856
        %3858 = vmatmul.bf16.gmra.mxu0 %v3227
        %v3859 = vpop.f32.mrf.mxu0
        %v3860 = vadd.f32 %v3306, %v3859
        %v3861 = vpop.f32.mrf.mxu0
        %v3862 = vadd.f32 %v3306, %v3861
        %3863 = vmatmul.bf16.gmra.mxu0 %v3231
        %v3864 = vpop.f32.mrf.mxu0
        %v3865 = vadd.f32 %v3306, %v3864
        %v3866 = vpop.f32.mrf.mxu0
        %v3867 = vadd.f32 %v3306, %v3866
        %3868 = vmatmul.bf16.gmra.mxu0 %v3235
        %v3869 = vpop.f32.mrf.mxu0
        %v3870 = vadd.f32 %v3306, %v3869
        %v3871 = vpop.f32.mrf.mxu0
        %v3872 = vadd.f32 %v3306, %v3871
        %3873 = vdwg.mxu0
        %3874 = vmatpush.bf16.msra.mxu0 %v3532
        %3875 = vmatpush.bf16.msra.mxu0 %v3530
        %3876 = vmatpush.bf16.msra.mxu0 %v3528
        %3877 = vmatpush.bf16.msra.mxu0 %v3526
        %3878 = vmatpush.bf16.msra.mxu0 %v3524
        %3879 = vmatpush.bf16.msra.mxu0 %v3522
        %3880 = vmatpush.bf16.msra.mxu0 %v3520
        %3881 = vmatpush.bf16.msra.mxu0 %v3518
        %3882 = vmatmul.bf16.gmra.mxu0 %v3208
        %v3883 = vpop.f32.mrf.mxu0
        %v3884 = vadd.f32 %v3835, %v3883
        %v3885 = vpop.f32.mrf.mxu0
        %v3886 = vadd.f32 %v3837, %v3885
        %3887 = vmatmul.bf16.gmra.mxu0 %v3212
        %v3888 = vpop.f32.mrf.mxu0
        %v3889 = vadd.f32 %v3840, %v3888
        %v3890 = vpop.f32.mrf.mxu0
        %v3891 = vadd.f32 %v3842, %v3890
        %3892 = vmatmul.bf16.gmra.mxu0 %v3216
        %v3893 = vpop.f32.mrf.mxu0
        %v3894 = vadd.f32 %v3845, %v3893
        %v3895 = vpop.f32.mrf.mxu0
        %v3896 = vadd.f32 %v3847, %v3895
        %3897 = vmatmul.bf16.gmra.mxu0 %v3220
        %v3898 = vpop.f32.mrf.mxu0
        %v3899 = vadd.f32 %v3850, %v3898
        %v3900 = vpop.f32.mrf.mxu0
        %v3901 = vadd.f32 %v3852, %v3900
        %3902 = vmatmul.bf16.gmra.mxu0 %v3224
        %v3903 = vpop.f32.mrf.mxu0
        %v3904 = vadd.f32 %v3855, %v3903
        %v3905 = vpop.f32.mrf.mxu0
        %v3906 = vadd.f32 %v3857, %v3905
        %3907 = vmatmul.bf16.gmra.mxu0 %v3228
        %v3908 = vpop.f32.mrf.mxu0
        %v3909 = vadd.f32 %v3860, %v3908
        %v3910 = vpop.f32.mrf.mxu0
        %v3911 = vadd.f32 %v3862, %v3910
        %3912 = vmatmul.bf16.gmra.mxu0 %v3232
        %v3913 = vpop.f32.mrf.mxu0
        %v3914 = vadd.f32 %v3865, %v3913
        %v3915 = vpop.f32.mrf.mxu0
        %v3916 = vadd.f32 %v3867, %v3915
        %3917 = vmatmul.bf16.gmra.mxu0 %v3236
        %v3918 = vpop.f32.mrf.mxu0
        %v3919 = vadd.f32 %v3870, %v3918
        %v3920 = vpop.f32.mrf.mxu0
        %v3921 = vadd.f32 %v3872, %v3920
        %3922 = vdwg.mxu0
        %3923 = vmatpush.bf16.msra.mxu0 %v3548
        %3924 = vmatpush.bf16.msra.mxu0 %v3546
        %3925 = vmatpush.bf16.msra.mxu0 %v3544
        %3926 = vmatpush.bf16.msra.mxu0 %v3542
        %3927 = vmatpush.bf16.msra.mxu0 %v3540
        %3928 = vmatpush.bf16.msra.mxu0 %v3538
        %3929 = vmatpush.bf16.msra.mxu0 %v3536
        %3930 = vmatpush.bf16.msra.mxu0 %v3534
        %3931 = vmatmul.bf16.gmra.mxu0 %v3209
        %v3932 = vpop.f32.mrf.mxu0
        %v3933 = vadd.f32 %v3884, %v3932
        %v3934 = vpop.f32.mrf.mxu0
        %v3935 = vadd.f32 %v3886, %v3934
        %3936 = vmatmul.bf16.gmra.mxu0 %v3213
        %v3937 = vpop.f32.mrf.mxu0
        %v3938 = vadd.f32 %v3889, %v3937
        %v3939 = vpop.f32.mrf.mxu0
        %v3940 = vadd.f32 %v3891, %v3939
        %3941 = vmatmul.bf16.gmra.mxu0 %v3217
        %v3942 = vpop.f32.mrf.mxu0
        %v3943 = vadd.f32 %v3894, %v3942
        %v3944 = vpop.f32.mrf.mxu0
        %v3945 = vadd.f32 %v3896, %v3944
        %3946 = vmatmul.bf16.gmra.mxu0 %v3221
        %v3947 = vpop.f32.mrf.mxu0
        %v3948 = vadd.f32 %v3899, %v3947
        %v3949 = vpop.f32.mrf.mxu0
        %v3950 = vadd.f32 %v3901, %v3949
        %3951 = vmatmul.bf16.gmra.mxu0 %v3225
        %v3952 = vpop.f32.mrf.mxu0
        %v3953 = vadd.f32 %v3904, %v3952
        %v3954 = vpop.f32.mrf.mxu0
        %v3955 = vadd.f32 %v3906, %v3954
        %3956 = vmatmul.bf16.gmra.mxu0 %v3229
        %v3957 = vpop.f32.mrf.mxu0
        %v3958 = vadd.f32 %v3909, %v3957
        %v3959 = vpop.f32.mrf.mxu0
        %v3960 = vadd.f32 %v3911, %v3959
        %3961 = vmatmul.bf16.gmra.mxu0 %v3233
        %v3962 = vpop.f32.mrf.mxu0
        %v3963 = vadd.f32 %v3914, %v3962
        %v3964 = vpop.f32.mrf.mxu0
        %v3965 = vadd.f32 %v3916, %v3964
        %3966 = vmatmul.bf16.gmra.mxu0 %v3237
        %v3967 = vpop.f32.mrf.mxu0
        %v3968 = vadd.f32 %v3919, %v3967
        %v3969 = vpop.f32.mrf.mxu0
        %v3970 = vadd.f32 %v3921, %v3969
        %3971 = vdwg.mxu0
        %3972 = vmatpush.bf16.msra.mxu0 %v3564
        %3973 = vmatpush.bf16.msra.mxu0 %v3562
        %3974 = vmatpush.bf16.msra.mxu0 %v3560
        %3975 = vmatpush.bf16.msra.mxu0 %v3558
        %3976 = vmatpush.bf16.msra.mxu0 %v3556
        %3977 = vmatpush.bf16.msra.mxu0 %v3554
        %3978 = vmatpush.bf16.msra.mxu0 %v3552
        %3979 = vmatpush.bf16.msra.mxu0 %v3550
        %3980 = vmatmul.bf16.gmra.mxu0 %v3210
        %v3981 = vpop.f32.mrf.mxu0
        %v3982 = vadd.f32 %v3933, %v3981
        %v3983 = vpop.f32.mrf.mxu0
        %v3984 = vadd.f32 %v3935, %v3983
        %3985 = vmatmul.bf16.gmra.mxu0 %v3214
        %v3986 = vpop.f32.mrf.mxu0
        %v3987 = vadd.f32 %v3938, %v3986
        %v3988 = vpop.f32.mrf.mxu0
        %v3989 = vadd.f32 %v3940, %v3988
        %3990 = vmatmul.bf16.gmra.mxu0 %v3218
        %v3991 = vpop.f32.mrf.mxu0
        %v3992 = vadd.f32 %v3943, %v3991
        %v3993 = vpop.f32.mrf.mxu0
        %v3994 = vadd.f32 %v3945, %v3993
        %3995 = vmatmul.bf16.gmra.mxu0 %v3222
        %v3996 = vpop.f32.mrf.mxu0
        %v3997 = vadd.f32 %v3948, %v3996
        %v3998 = vpop.f32.mrf.mxu0
        %v3999 = vadd.f32 %v3950, %v3998
        %4000 = vmatmul.bf16.gmra.mxu0 %v3226
        %v4001 = vpop.f32.mrf.mxu0
        %v4002 = vadd.f32 %v3953, %v4001
        %v4003 = vpop.f32.mrf.mxu0
        %v4004 = vadd.f32 %v3955, %v4003
        %4005 = vmatmul.bf16.gmra.mxu0 %v3230
        %v4006 = vpop.f32.mrf.mxu0
        %v4007 = vadd.f32 %v3958, %v4006
        %v4008 = vpop.f32.mrf.mxu0
        %v4009 = vadd.f32 %v3960, %v4008
        %4010 = vmatmul.bf16.gmra.mxu0 %v3234
        %v4011 = vpop.f32.mrf.mxu0
        %v4012 = vadd.f32 %v3963, %v4011
        %v4013 = vpop.f32.mrf.mxu0
        %v4014 = vadd.f32 %v3965, %v4013
        %4015 = vmatmul.bf16.gmra.mxu0 %v3238
        %v4016 = vpop.f32.mrf.mxu0
        %v4017 = vadd.f32 %v3968, %v4016
        %v4018 = vpop.f32.mrf.mxu0
        %v4019 = vadd.f32 %v3970, %v4018
        %4020 = vdwg.mxu0
        %v4021 = vmax.f32 %v3786, 0.0
        %v4022 = vmax.f32 %v3982, 0.0
        %v4023 = vmax.f32 %v3788, 0.0
        %v4024 = vmax.f32 %v3984, 0.0
        %v4025 = vmax.f32 %v3791, 0.0
        %v4026 = vmax.f32 %v3987, 0.0
        %v4027 = vmax.f32 %v3793, 0.0
        %v4028 = vmax.f32 %v3989, 0.0
        %v4029 = vmax.f32 %v3796, 0.0
        %v4030 = vmax.f32 %v3992, 0.0
        %v4031 = vmax.f32 %v3798, 0.0
        %v4032 = vmax.f32 %v3994, 0.0
        %v4033 = vmax.f32 %v3801, 0.0
        %v4034 = vmax.f32 %v3997, 0.0
        %v4035 = vmax.f32 %v3803, 0.0
        %v4036 = vmax.f32 %v3999, 0.0
        %v4037 = vmax.f32 %v3806, 0.0
        %v4038 = vmax.f32 %v4002, 0.0
        %v4039 = vmax.f32 %v3808, 0.0
        %v4040 = vmax.f32 %v4004, 0.0
        %v4041 = vmax.f32 %v3811, 0.0
        %v4042 = vmax.f32 %v4007, 0.0
        %v4043 = vmax.f32 %v3813, 0.0
        %v4044 = vmax.f32 %v4009, 0.0
        %v4045 = vmax.f32 %v3816, 0.0
        %v4046 = vmax.f32 %v4012, 0.0
        %v4047 = vmax.f32 %v3818, 0.0
        %v4048 = vmax.f32 %v4014, 0.0
        %v4049 = vmax.f32 %v3821, 0.0
        %v4050 = vmax.f32 %v4017, 0.0
        %v4051 = vmax.f32 %v3823, 0.0
        %v4052 = vmax.f32 %v4019, 0.0
        %v4053 = vpack.c.bf16 %v4023, %v4021
        %v4054 = vpack.c.bf16 %v4024, %v4022
        %v4055 = vpack.c.bf16 %v4027, %v4025
        %v4056 = vpack.c.bf16 %v4028, %v4026
        %v4057 = vpack.c.bf16 %v4031, %v4029
        %v4058 = vpack.c.bf16 %v4032, %v4030
        %v4059 = vpack.c.bf16 %v4035, %v4033
        %v4060 = vpack.c.bf16 %v4036, %v4034
        %v4061 = vpack.c.bf16 %v4039, %v4037
        %v4062 = vpack.c.bf16 %v4040, %v4038
        %v4063 = vpack.c.bf16 %v4043, %v4041
        %v4064 = vpack.c.bf16 %v4044, %v4042
        %v4065 = vpack.c.bf16 %v4047, %v4045
        %v4066 = vpack.c.bf16 %v4048, %v4046
        %v4067 = vpack.c.bf16 %v4051, %v4049
        %v4068 = vpack.c.bf16 %v4052, %v4050
        %v4069 = vld [vmem:[%s5] sm:$0xf]
        %v4070 = vld [vmem:[%s5 + $0x4] sm:$0xf]
        %v4071 = vld [vmem:[%s5 + $0x8] sm:$0xf]
        %v4072 = vld [vmem:[%s5 + $0xc] sm:$0xf]
        %v4073 = vld [vmem:[%s5 + $0x10] sm:$0xf]
        %v4074 = vld [vmem:[%s5 + $0x14] sm:$0xf]
        %v4075 = vld [vmem:[%s5 + $0x18] sm:$0xf]
        %v4076 = vld [vmem:[%s5 + $0x1c] sm:$0xf]
        %v4077 = vld [vmem:[%s5 + $0x20] sm:$0xf]
        %v4078 = vld [vmem:[%s5 + $0x24] sm:$0xf]
        %v4079 = vld [vmem:[%s5 + $0x28] sm:$0xf]
        %v4080 = vld [vmem:[%s5 + $0x2c] sm:$0xf]
        %v4081 = vld [vmem:[%s5 + $0x30] sm:$0xf]
        %v4082 = vld [vmem:[%s5 + $0x34] sm:$0xf]
        %v4083 = vld [vmem:[%s5 + $0x38] sm:$0xf]
        %v4084 = vld [vmem:[%s5 + $0x3c] sm:$0xf]
        %v4085 = vld [vmem:[%s5 + $0x40] sm:$0xf]
        %v4086 = vld [vmem:[%s5 + $0x44] sm:$0xf]
        %v4087 = vld [vmem:[%s5 + $0x48] sm:$0xf]
        %v4088 = vld [vmem:[%s5 + $0x4c] sm:$0xf]
        %v4089 = vld [vmem:[%s5 + $0x50] sm:$0xf]
        %v4090 = vld [vmem:[%s5 + $0x54] sm:$0xf]
        %v4091 = vld [vmem:[%s5 + $0x58] sm:$0xf]
        %v4092 = vld [vmem:[%s5 + $0x5c] sm:$0xf]
        %v4093 = vld [vmem:[%s5 + $0x60] sm:$0xf]
        %v4094 = vld [vmem:[%s5 + $0x64] sm:$0xf]
        %v4095 = vld [vmem:[%s5 + $0x68] sm:$0xf]
        %v4096 = vld [vmem:[%s5 + $0x6c] sm:$0xf]
        %v4097 = vld [vmem:[%s5 + $0x70] sm:$0xf]
        %v4098 = vld [vmem:[%s5 + $0x74] sm:$0xf]
        %v4099 = vld [vmem:[%s5 + $0x78] sm:$0xf]
        %v4100 = vld [vmem:[%s5 + $0x7c] sm:$0xf]
        %v4101 = vld [vmem:[%s6] sm:$0x1]
        %v4103 = vperm.slane %v4101, 0
        %v4137 = vunpack.c.l.b16 %v4069
        %v4138 = vunpack.c.l.b16 %v4070
        %v4139 = vunpack.c.l.b16 %v4071
        %v4140 = vunpack.c.l.b16 %v4072
        %v4141 = vunpack.c.l.b16 %v4073
        %v4142 = vunpack.c.l.b16 %v4074
        %v4143 = vunpack.c.l.b16 %v4075
        %v4144 = vunpack.c.l.b16 %v4076
        %v4145 = vunpack.c.l.b16 %v4077
        %v4146 = vunpack.c.l.b16 %v4078
        %v4147 = vunpack.c.l.b16 %v4079
        %v4148 = vunpack.c.l.b16 %v4080
        %v4149 = vunpack.c.l.b16 %v4081
        %v4150 = vunpack.c.l.b16 %v4082
        %v4151 = vunpack.c.l.b16 %v4083
        %v4152 = vunpack.c.l.b16 %v4084
        %v4153 = vunpack.c.l.b16 %v4085
        %v4154 = vunpack.c.l.b16 %v4086
        %v4155 = vunpack.c.l.b16 %v4087
        %v4156 = vunpack.c.l.b16 %v4088
        %v4157 = vunpack.c.l.b16 %v4089
        %v4158 = vunpack.c.l.b16 %v4090
        %v4159 = vunpack.c.l.b16 %v4091
        %v4160 = vunpack.c.l.b16 %v4092
        %v4161 = vunpack.c.l.b16 %v4093
        %v4162 = vunpack.c.l.b16 %v4094
        %v4163 = vunpack.c.l.b16 %v4095
        %v4164 = vunpack.c.l.b16 %v4096
        %v4165 = vunpack.c.l.b16 %v4097
        %v4166 = vunpack.c.l.b16 %v4098
        %v4167 = vunpack.c.l.b16 %v4099
        %v4168 = vunpack.c.l.b16 %v4100
        %v4169 = vpack.c.b16 %v4138, %v4137
        %v4170 = vpack.c.b16 %v4140, %v4139
        %v4171 = vpack.c.b16 %v4142, %v4141
        %v4172 = vpack.c.b16 %v4144, %v4143
        %v4173 = vpack.c.b16 %v4146, %v4145
        %v4174 = vpack.c.b16 %v4148, %v4147
        %v4175 = vpack.c.b16 %v4150, %v4149
        %v4176 = vpack.c.b16 %v4152, %v4151
        %v4177 = vpack.c.b16 %v4154, %v4153
        %v4178 = vpack.c.b16 %v4156, %v4155
        %v4179 = vpack.c.b16 %v4158, %v4157
        %v4180 = vpack.c.b16 %v4160, %v4159
        %v4181 = vpack.c.b16 %v4162, %v4161
        %v4182 = vpack.c.b16 %v4164, %v4163
        %v4183 = vpack.c.b16 %v4166, %v4165
        %v4184 = vpack.c.b16 %v4168, %v4167
        %4201 = vmatpush.bf16.msra.mxu0 %v4176
        %4202 = vmatpush.bf16.msra.mxu0 %v4175
        %4203 = vmatpush.bf16.msra.mxu0 %v4174
        %4204 = vmatpush.bf16.msra.mxu0 %v4173
        %4205 = vmatpush.bf16.msra.mxu0 %v4172
        %4206 = vmatpush.bf16.msra.mxu0 %v4171
        %4207 = vmatpush.bf16.msra.mxu0 %v4170
        %4208 = vmatpush.bf16.msra.mxu0 %v4169
        %4209 = vmatmul.bf16.gmra.mxu0 %v4053
        %v4210 = vpop.f32.mrf.mxu0
        %v4211 = vadd.f32 %v4103, %v4210
        %v4212 = vpop.f32.mrf.mxu0
        %v4213 = vadd.f32 %v4103, %v4212
        %4214 = vmatmul.bf16.gmra.mxu0 %v4055
        %v4215 = vpop.f32.mrf.mxu0
        %v4216 = vadd.f32 %v4103, %v4215
        %v4217 = vpop.f32.mrf.mxu0
        %v4218 = vadd.f32 %v4103, %v4217
        %4219 = vmatmul.bf16.gmra.mxu0 %v4057
        %v4220 = vpop.f32.mrf.mxu0
        %v4221 = vadd.f32 %v4103, %v4220
        %v4222 = vpop.f32.mrf.mxu0
        %v4223 = vadd.f32 %v4103, %v4222
        %4224 = vmatmul.bf16.gmra.mxu0 %v4059
        %v4225 = vpop.f32.mrf.mxu0
        %v4226 = vadd.f32 %v4103, %v4225
        %v4227 = vpop.f32.mrf.mxu0
        %v4228 = vadd.f32 %v4103, %v4227
        %4229 = vmatmul.bf16.gmra.mxu0 %v4061
        %v4230 = vpop.f32.mrf.mxu0
        %v4231 = vadd.f32 %v4103, %v4230
        %v4232 = vpop.f32.mrf.mxu0
        %v4233 = vadd.f32 %v4103, %v4232
        %4234 = vmatmul.bf16.gmra.mxu0 %v4063
        %v4235 = vpop.f32.mrf.mxu0
        %v4236 = vadd.f32 %v4103, %v4235
        %v4237 = vpop.f32.mrf.mxu0
        %v4238 = vadd.f32 %v4103, %v4237
        %4239 = vmatmul.bf16.gmra.mxu0 %v4065
        %v4240 = vpop.f32.mrf.mxu0
        %v4241 = vadd.f32 %v4103, %v4240
        %v4242 = vpop.f32.mrf.mxu0
        %v4243 = vadd.f32 %v4103, %v4242
        %4244 = vmatmul.bf16.gmra.mxu0 %v4067
        %v4245 = vpop.f32.mrf.mxu0
        %v4246 = vadd.f32 %v4103, %v4245
        %v4247 = vpop.f32.mrf.mxu0
        %v4248 = vadd.f32 %v4103, %v4247
        %4249 = vdwg.mxu0
        %4250 = vmatpush.bf16.msra.mxu0 %v4184
        %4251 = vmatpush.bf16.msra.mxu0 %v4183
        %4252 = vmatpush.bf16.msra.mxu0 %v4182
        %4253 = vmatpush.bf16.msra.mxu0 %v4181
        %4254 = vmatpush.bf16.msra.mxu0 %v4180
        %4255 = vmatpush.bf16.msra.mxu0 %v4179
        %4256 = vmatpush.bf16.msra.mxu0 %v4178
        %4257 = vmatpush.bf16.msra.mxu0 %v4177
        %4258 = vmatmul.bf16.gmra.mxu0 %v4054
        %v4259 = vpop.f32.mrf.mxu0
        %v4260 = vadd.f32 %v4211, %v4259
        %v4261 = vpop.f32.mrf.mxu0
        %v4262 = vadd.f32 %v4213, %v4261
        %4263 = vmatmul.bf16.gmra.mxu0 %v4056
        %v4264 = vpop.f32.mrf.mxu0
        %v4265 = vadd.f32 %v4216, %v4264
        %v4266 = vpop.f32.mrf.mxu0
        %v4267 = vadd.f32 %v4218, %v4266
        %4268 = vmatmul.bf16.gmra.mxu0 %v4058
        %v4269 = vpop.f32.mrf.mxu0
        %v4270 = vadd.f32 %v4221, %v4269
        %v4271 = vpop.f32.mrf.mxu0
        %v4272 = vadd.f32 %v4223, %v4271
        %4273 = vmatmul.bf16.gmra.mxu0 %v4060
        %v4274 = vpop.f32.mrf.mxu0
        %v4275 = vadd.f32 %v4226, %v4274
        %v4276 = vpop.f32.mrf.mxu0
        %v4277 = vadd.f32 %v4228, %v4276
        %4278 = vmatmul.bf16.gmra.mxu0 %v4062
        %v4279 = vpop.f32.mrf.mxu0
        %v4280 = vadd.f32 %v4231, %v4279
        %v4281 = vpop.f32.mrf.mxu0
        %v4282 = vadd.f32 %v4233, %v4281
        %4283 = vmatmul.bf16.gmra.mxu0 %v4064
        %v4284 = vpop.f32.mrf.mxu0
        %v4285 = vadd.f32 %v4236, %v4284
        %v4286 = vpop.f32.mrf.mxu0
        %v4287 = vadd.f32 %v4238, %v4286
        %4288 = vmatmul.bf16.gmra.mxu0 %v4066
        %v4289 = vpop.f32.mrf.mxu0
        %v4290 = vadd.f32 %v4241, %v4289
        %v4291 = vpop.f32.mrf.mxu0
        %v4292 = vadd.f32 %v4243, %v4291
        %4293 = vmatmul.bf16.gmra.mxu0 %v4068
        %v4294 = vpop.f32.mrf.mxu0
        %v4295 = vadd.f32 %v4246, %v4294
        %v4296 = vpop.f32.mrf.mxu0
        %v4297 = vadd.f32 %v4248, %v4296
        %4298 = vdwg.mxu0
        %v4299 = vmax.f32 %v4260, 0.0
        %v4300 = vmax.f32 %v4262, 0.0
        %v4301 = vmax.f32 %v4265, 0.0
        %v4302 = vmax.f32 %v4267, 0.0
        %v4303 = vmax.f32 %v4270, 0.0
        %v4304 = vmax.f32 %v4272, 0.0
        %v4305 = vmax.f32 %v4275, 0.0
        %v4306 = vmax.f32 %v4277, 0.0
        %v4307 = vmax.f32 %v4280, 0.0
        %v4308 = vmax.f32 %v4282, 0.0
        %v4309 = vmax.f32 %v4285, 0.0
        %v4310 = vmax.f32 %v4287, 0.0
        %v4311 = vmax.f32 %v4290, 0.0
        %v4312 = vmax.f32 %v4292, 0.0
        %v4313 = vmax.f32 %v4295, 0.0
        %v4314 = vmax.f32 %v4297, 0.0
        %v4315 = vpack.c.bf16 %v4300, %v4299
        %v4316 = vpack.c.bf16 %v4302, %v4301
        %v4317 = vpack.c.bf16 %v4304, %v4303
        %v4318 = vpack.c.bf16 %v4306, %v4305
        %v4319 = vpack.c.bf16 %v4308, %v4307
        %v4320 = vpack.c.bf16 %v4310, %v4309
        %v4321 = vpack.c.bf16 %v4312, %v4311
        %v4322 = vpack.c.bf16 %v4314, %v4313
        %v4323 = vld [vmem:[%s7] sm:$0xf]
        %v4324 = vld [vmem:[%s7 + $0x4] sm:$0xf]
        %v4325 = vld [vmem:[%s7 + $0x8] sm:$0xf]
        %v4326 = vld [vmem:[%s7 + $0xc] sm:$0xf]
        %v4327 = vld [vmem:[%s7 + $0x10] sm:$0xf]
        %v4328 = vld [vmem:[%s7 + $0x14] sm:$0xf]
        %v4329 = vld [vmem:[%s7 + $0x18] sm:$0xf]
        %v4330 = vld [vmem:[%s7 + $0x1c] sm:$0xf]
        %v4331 = vld [vmem:[%s7 + $0x20] sm:$0xf]
        %v4332 = vld [vmem:[%s7 + $0x24] sm:$0xf]
        %v4333 = vld [vmem:[%s7 + $0x28] sm:$0xf]
        %v4334 = vld [vmem:[%s7 + $0x2c] sm:$0xf]
        %v4335 = vld [vmem:[%s7 + $0x30] sm:$0xf]
        %v4336 = vld [vmem:[%s7 + $0x34] sm:$0xf]
        %v4337 = vld [vmem:[%s7 + $0x38] sm:$0xf]
        %v4338 = vld [vmem:[%s7 + $0x3c] sm:$0xf]
        %v4339 = vld [vmem:[%s8] sm:$0x1]
        %v4341 = vperm.slane %v4339, 0
        %v4359 = vunpack.c.l.b16 %v4323
        %v4360 = vunpack.c.l.b16 %v4324
        %v4361 = vunpack.c.l.b16 %v4325
        %v4362 = vunpack.c.l.b16 %v4326
        %v4363 = vunpack.c.l.b16 %v4327
        %v4364 = vunpack.c.l.b16 %v4328
        %v4365 = vunpack.c.l.b16 %v4329
        %v4366 = vunpack.c.l.b16 %v4330
        %v4367 = vunpack.c.l.b16 %v4331
        %v4368 = vunpack.c.l.b16 %v4332
        %v4369 = vunpack.c.l.b16 %v4333
        %v4370 = vunpack.c.l.b16 %v4334
        %v4371 = vunpack.c.l.b16 %v4335
        %v4372 = vunpack.c.l.b16 %v4336
        %v4373 = vunpack.c.l.b16 %v4337
        %v4374 = vunpack.c.l.b16 %v4338
        %v4375 = vpack.c.b16 %v4360, %v4359
        %v4376 = vpack.c.b16 %v4362, %v4361
        %v4377 = vpack.c.b16 %v4364, %v4363
        %v4378 = vpack.c.b16 %v4366, %v4365
        %v4379 = vpack.c.b16 %v4368, %v4367
        %v4380 = vpack.c.b16 %v4370, %v4369
        %v4381 = vpack.c.b16 %v4372, %v4371
        %v4382 = vpack.c.b16 %v4374, %v4373
        %4391 = vmatpush.bf16.msra.mxu0 %v4382
        %4392 = vmatpush.bf16.msra.mxu0 %v4381
        %4393 = vmatpush.bf16.msra.mxu0 %v4380
        %4394 = vmatpush.bf16.msra.mxu0 %v4379
        %4395 = vmatpush.bf16.msra.mxu0 %v4378
        %4396 = vmatpush.bf16.msra.mxu0 %v4377
        %4397 = vmatpush.bf16.msra.mxu0 %v4376
        %4398 = vmatpush.bf16.msra.mxu0 %v4375
        %4399 = vmatmul.bf16.gmra.mxu0 %v4315
        %v4400 = vpop.f32.mrf.mxu0
        %v4401 = vadd.f32 %v4341, %v4400
        %v4402 = vpop.f32.mrf.mxu0
        %v4403 = vadd.f32 %v4341, %v4402
        %4404 = vmatmul.bf16.gmra.mxu0 %v4316
        %v4405 = vpop.f32.mrf.mxu0
        %v4406 = vadd.f32 %v4341, %v4405
        %v4407 = vpop.f32.mrf.mxu0
        %v4408 = vadd.f32 %v4341, %v4407
        %4409 = vmatmul.bf16.gmra.mxu0 %v4317
        %v4410 = vpop.f32.mrf.mxu0
        %v4411 = vadd.f32 %v4341, %v4410
        %v4412 = vpop.f32.mrf.mxu0
        %v4413 = vadd.f32 %v4341, %v4412
        %4414 = vmatmul.bf16.gmra.mxu0 %v4318
        %v4415 = vpop.f32.mrf.mxu0
        %v4416 = vadd.f32 %v4341, %v4415
        %v4417 = vpop.f32.mrf.mxu0
        %v4418 = vadd.f32 %v4341, %v4417
        %4419 = vmatmul.bf16.gmra.mxu0 %v4319
        %v4420 = vpop.f32.mrf.mxu0
        %v4421 = vadd.f32 %v4341, %v4420
        %v4422 = vpop.f32.mrf.mxu0
        %v4423 = vadd.f32 %v4341, %v4422
        %4424 = vmatmul.bf16.gmra.mxu0 %v4320
        %v4425 = vpop.f32.mrf.mxu0
        %v4426 = vadd.f32 %v4341, %v4425
        %v4427 = vpop.f32.mrf.mxu0
        %v4428 = vadd.f32 %v4341, %v4427
        %4429 = vmatmul.bf16.gmra.mxu0 %v4321
        %v4430 = vpop.f32.mrf.mxu0
        %v4431 = vadd.f32 %v4341, %v4430
        %v4432 = vpop.f32.mrf.mxu0
        %v4433 = vadd.f32 %v4341, %v4432
        %4434 = vmatmul.bf16.gmra.mxu0 %v4322
        %v4435 = vpop.f32.mrf.mxu0
        %v4436 = vadd.f32 %v4341, %v4435
        %v4437 = vpop.f32.mrf.mxu0
        %v4438 = vadd.f32 %v4341, %v4437
        %4439 = vdwg.mxu0
        %v4440 = vmax.f32 %v4401, 0.0
        %v4441 = vmax.f32 %v4403, 0.0
        %v4442 = vmax.f32 %v4406, 0.0
        %v4443 = vmax.f32 %v4408, 0.0
        %v4444 = vmax.f32 %v4411, 0.0
        %v4445 = vmax.f32 %v4413, 0.0
        %v4446 = vmax.f32 %v4416, 0.0
        %v4447 = vmax.f32 %v4418, 0.0
        %v4448 = vmax.f32 %v4421, 0.0
        %v4449 = vmax.f32 %v4423, 0.0
        %v4450 = vmax.f32 %v4426, 0.0
        %v4451 = vmax.f32 %v4428, 0.0
        %v4452 = vmax.f32 %v4431, 0.0
        %v4453 = vmax.f32 %v4433, 0.0
        %v4454 = vmax.f32 %v4436, 0.0
        %v4455 = vmax.f32 %v4438, 0.0
        %v4456 = vpack.c.bf16 %v4441, %v4440
        %v4457 = vpack.c.bf16 %v4443, %v4442
        %v4458 = vpack.c.bf16 %v4445, %v4444
        %v4459 = vpack.c.bf16 %v4447, %v4446
        %v4460 = vpack.c.bf16 %v4449, %v4448
        %v4461 = vpack.c.bf16 %v4451, %v4450
        %v4462 = vpack.c.bf16 %v4453, %v4452
        %v4463 = vpack.c.bf16 %v4455, %v4454
        %v4464 = vld [vmem:[%s9] sm:$0xf]
        %v4465 = vld [vmem:[%s9 + $0x4] sm:$0xf]
        %v4466 = vld [vmem:[%s9 + $0x8] sm:$0xf]
        %v4467 = vld [vmem:[%s9 + $0xc] sm:$0xf]
        %v4468 = vld [vmem:[%s9 + $0x10] sm:$0xf]
        %v4469 = vld [vmem:[%s9 + $0x14] sm:$0xf]
        %v4470 = vld [vmem:[%s9 + $0x18] sm:$0xf]
        %v4471 = vld [vmem:[%s9 + $0x1c] sm:$0xf]
        %v4472 = vld [vmem:[%s10] sm:$0x1]
        %v4474 = vperm.slane %v4472, 0
        %v4484 = vunpack.c.l.b16 %v4464
        %v4485 = vunpack.c.l.b16 %v4465
        %v4486 = vunpack.c.l.b16 %v4466
        %v4487 = vunpack.c.l.b16 %v4467
        %v4488 = vunpack.c.l.b16 %v4468
        %v4489 = vunpack.c.l.b16 %v4469
        %v4490 = vunpack.c.l.b16 %v4470
        %v4491 = vunpack.c.l.b16 %v4471
        %v4492 = vpack.c.b16 %v4485, %v4484
        %v4493 = vpack.c.b16 %v4487, %v4486
        %v4494 = vpack.c.b16 %v4489, %v4488
        %v4495 = vpack.c.b16 %v4491, %v4490
        %vm4500 = vcmask 523264
        %v4502 = vsel %vm4500, %v4456, 0
        %v4505 = vsel %vm4500, %v4457, 0
        %v4508 = vsel %vm4500, %v4458, 0
        %v4511 = vsel %vm4500, %v4459, 0
        %v4514 = vsel %vm4500, %v4460, 0
        %v4517 = vsel %vm4500, %v4461, 0
        %v4520 = vsel %vm4500, %v4462, 0
        %v4523 = vsel %vm4500, %v4463, 0
        %4525 = vmatpush.bf16.msra.mxu0 0
        %4526 = vmatpush.bf16.msra.mxu0 0
        %4527 = vmatpush.bf16.msra.mxu0 0
        %4528 = vmatpush.bf16.msra.mxu0 0
        %4529 = vmatpush.bf16.msra.mxu0 %v4495
        %4530 = vmatpush.bf16.msra.mxu0 %v4494
        %4531 = vmatpush.bf16.msra.mxu0 %v4493
        %4532 = vmatpush.bf16.msra.mxu0 %v4492
        %4533 = vmatmul.bf16.gmra.mxu0 %v4502
        %v4534 = vpop.f32.mrf.mxu0
        %v4535 = vadd.f32 %v4474, %v4534
        %v4536 = vpop.f32.mrf.mxu0
        %v4537 = vadd.f32 %v4474, %v4536
        %4538 = vmatmul.bf16.gmra.mxu0 %v4505
        %v4539 = vpop.f32.mrf.mxu0
        %v4540 = vadd.f32 %v4474, %v4539
        %v4541 = vpop.f32.mrf.mxu0
        %v4542 = vadd.f32 %v4474, %v4541
        %4543 = vmatmul.bf16.gmra.mxu0 %v4508
        %v4544 = vpop.f32.mrf.mxu0
        %v4545 = vadd.f32 %v4474, %v4544
        %v4546 = vpop.f32.mrf.mxu0
        %v4547 = vadd.f32 %v4474, %v4546
        %4548 = vmatmul.bf16.gmra.mxu0 %v4511
        %v4549 = vpop.f32.mrf.mxu0
        %v4550 = vadd.f32 %v4474, %v4549
        %v4551 = vpop.f32.mrf.mxu0
        %v4552 = vadd.f32 %v4474, %v4551
        %4553 = vmatmul.bf16.gmra.mxu0 %v4514
        %v4554 = vpop.f32.mrf.mxu0
        %v4555 = vadd.f32 %v4474, %v4554
        %v4556 = vpop.f32.mrf.mxu0
        %v4557 = vadd.f32 %v4474, %v4556
        %4558 = vmatmul.bf16.gmra.mxu0 %v4517
        %v4559 = vpop.f32.mrf.mxu0
        %v4560 = vadd.f32 %v4474, %v4559
        %v4561 = vpop.f32.mrf.mxu0
        %v4562 = vadd.f32 %v4474, %v4561
        %4563 = vmatmul.bf16.gmra.mxu0 %v4520
        %v4564 = vpop.f32.mrf.mxu0
        %v4565 = vadd.f32 %v4474, %v4564
        %v4566 = vpop.f32.mrf.mxu0
        %v4567 = vadd.f32 %v4474, %v4566
        %4568 = vmatmul.bf16.gmra.mxu0 %v4523
        %v4569 = vpop.f32.mrf.mxu0
        %v4570 = vadd.f32 %v4474, %v4569
        %v4571 = vpop.f32.mrf.mxu0
        %v4572 = vadd.f32 %v4474, %v4571
        %4573 = vdwg.mxu0
        %v4574 = vpack.c.bf16 %v4535, %v4535
        %v4575 = vpack.c.bf16 %v4537, %v4537
        %v4576 = vpack.c.bf16 %v4540, %v4540
        %v4577 = vpack.c.bf16 %v4542, %v4542
        %v4578 = vpack.c.bf16 %v4545, %v4545
        %v4579 = vpack.c.bf16 %v4547, %v4547
        %v4580 = vpack.c.bf16 %v4550, %v4550
        %v4581 = vpack.c.bf16 %v4552, %v4552
        %v4582 = vpack.c.bf16 %v4555, %v4555
        %v4583 = vpack.c.bf16 %v4557, %v4557
        %v4584 = vpack.c.bf16 %v4560, %v4560
        %v4585 = vpack.c.bf16 %v4562, %v4562
        %v4586 = vpack.c.bf16 %v4565, %v4565
        %v4587 = vpack.c.bf16 %v4567, %v4567
        %v4588 = vpack.c.bf16 %v4570, %v4570
        %v4589 = vpack.c.bf16 %v4572, %v4572
        %4590 = vst [vmem:[%s382] sm:$0xf] %v4574
        %4591 = vst [vmem:[%s382 + $0x4] sm:$0xf] %v4575
        %4592 = vst [vmem:[%s382 + $0x8] sm:$0xf] %v4576
        %4593 = vst [vmem:[%s382 + $0xc] sm:$0xf] %v4577
        %4594 = vst [vmem:[%s382 + $0x10] sm:$0xf] %v4578
        %4595 = vst [vmem:[%s382 + $0x14] sm:$0xf] %v4579
        %4596 = vst [vmem:[%s382 + $0x18] sm:$0xf] %v4580
        %4597 = vst [vmem:[%s382 + $0x1c] sm:$0xf] %v4581
        %4598 = vst [vmem:[%s382 + $0x20] sm:$0xf] %v4582
        %4599 = vst [vmem:[%s382 + $0x24] sm:$0xf] %v4583
        %4600 = vst [vmem:[%s382 + $0x28] sm:$0xf] %v4584
        %4601 = vst [vmem:[%s382 + $0x2c] sm:$0xf] %v4585
        %4602 = vst [vmem:[%s382 + $0x30] sm:$0xf] %v4586
        %4603 = vst [vmem:[%s382 + $0x34] sm:$0xf] %v4587
        %4604 = vst [vmem:[%s382 + $0x38] sm:$0xf] %v4588
        %4605 = vst [vmem:[%s382 + $0x3c] sm:$0xf] %v4589
        %s4606 = sand.u32 %s269, 1
        %s4607 = scalar_lea.sflag [#allocation3], %s4606
        %s4608 = sand.u32 %s269, 1
        %s4609 = smul.addr %s4608, 64
        %s4610 = scalar_lea.vmem [#allocation2], %s4609
        // Predicated region
        $region65: #{tpu_custom_call.1} parent=63 // pred_check
          %p4611 = pneg %p279
        $region66: #{tpu_custom_call.1} parent=63 // pred_check_branch
          %4613 = sbr.rel (%p4611) target = $region68
        $region67: #{tpu_custom_call.1} parent=63 // pred_region
          %s4614 = smul.u32 16, %s25
          %4616 = vsyncadd %s4607, 0
          %s4617 = smul.addr %s4614, 4
          %s4618 = scalar_lea.hbm %s11, %s4617
          %s4619 = sshll.u32 %s4610, 4
          %s4620 = int_to_ptr.vmem [resolvable:$true] %s4619
          %s4621 = sshll.u32 %s4618, 4
          %s4622 = int_to_ptr.hbm [resolvable:$true] %s4621
          %4627 = dma.vmem_to_hbm [thread:$0]  %s4620, 1024, %s4622, %s4607, 64, 64, 4
        $region68: #{tpu_custom_call.1} parent=63 // pred_fallthru
          _
      $region64: #{tpu_custom_call.1} parent=5 // pred_fallthru
        _
      %p4628 = scmp.le.s32.totalorder 2, %s20
      // Predicated region
      $region69: #{tpu_custom_call.1} parent=5 // pred_check
        %p4629 = pneg %p4628
      $region70: #{tpu_custom_call.1} parent=5 // pred_check_branch
        %4631 = sbr.rel (%p4629) target = $region72
      $region71: #{tpu_custom_call.1} parent=5 // pred_region
        %s4632 = ssub.s32 %s20, 2
        // Predicated region
        $region73: #{tpu_custom_call.1} parent=71 // pred_check
          %p4633 = pneg %p285
        $region74: #{tpu_custom_call.1} parent=71 // pred_check_branch
          %4635 = sbr.rel (%p4633) target = $region76
        $region75: #{tpu_custom_call.1} parent=71 // pred_region
          %s4636 = sand.u32 %s270, 1
          %s4637 = scalar_lea.sflag [#allocation3], %s4636
          %s4638 = sand.u32 %s270, 1
          %s4639 = smul.addr %s4638, 64
          %s4640 = scalar_lea.vmem [#allocation2], %s4639
          %4642 = dma.done %s4637, 1024
        $region76: #{tpu_custom_call.1} parent=71 // pred_fallthru
          _
      $region72: #{tpu_custom_call.1} parent=5 // pred_fallthru
        _
    $region6: #{tpu_custom_call.1} parent=1 // loop_footer
      %s24 = sadd.s32 1, %s20
    $region7: #{tpu_custom_call.1} parent=1 // loop_footer_branch
      %19 = sbr.rel target = $region3
    $region8: #{tpu_custom_call.1} parent=1 // loop_exit
      _
    %4643 = vsyncpa [#allocation3], 1
    %s4644 = scalar_lea.sflag [#allocation3], 1
    %4645 = vsyncpa %s4644, 1

</llo_original>
